<compile_context>
chip_gen: v7x
topology: tpu7x:2x2x1
jax: 0.10.0
libtpu: 0.0.40
codegen_flags: <defaults>
</compile_context>

<pallas_src>
import math

import numpy as np
import jax
import jax.numpy as jnp
from jax import lax
from jax.experimental import pallas as pl
from jax.experimental.pallas import tpu as pltpu

# ------------------------- model configuration (small) -------------------------
N_VOCAB    = 64
D_MODEL    = 32
N_HEADS    = 4
D_HEAD     = D_MODEL // N_HEADS
D_FF       = 64
N_LAYERS   = 2
D_LATENT   = 16
LORA_RANK  = 4
LORA_ALPHA = 16.0
LORA_SCALE = LORA_ALPHA / LORA_RANK
LN_EPS     = 1e-5
LANE       = 128


# ------------------------------ slab layout -------------------------------------
def _slab_layout(B, S):
    """Row layout of the single packed weight slab (rows x 128 f32)."""
    T = B * S
    entries = [
        ("inv_freq", (1, D_MODEL)),
        ("even",     (1, D_MODEL)),
        ("emb",      (N_VOCAB, D_MODEL)),
        ("w_latent", (D_LATENT, D_MODEL)),
        ("b_latent", (1, D_MODEL)),
        ("mask",     (T, T)),
    ]
    for i in range(N_LAYERS):
        entries += [
            (f"ln1_g_{i}", (1, D_MODEL)),
            (f"ln1_b_{i}", (1, D_MODEL)),
            (f"w_qkv_{i}", (D_MODEL, 3 * D_MODEL)),
            (f"b_qkv_{i}", (1, 3 * D_MODEL)),
            (f"w_o_{i}",   (D_MODEL, D_MODEL)),
            (f"b_o_{i}",   (1, D_MODEL)),
            (f"ln2_g_{i}", (1, D_MODEL)),
            (f"ln2_b_{i}", (1, D_MODEL)),
            (f"w1_{i}",    (D_MODEL, D_FF)),
            (f"b1_{i}",    (1, D_FF)),
            (f"w2_{i}",    (D_FF, D_MODEL)),
            (f"b2_{i}",    (1, D_MODEL)),
        ]
    entries += [
        ("lnf_g", (1, D_MODEL)),
        ("lnf_b", (1, D_MODEL)),
        ("w_out", (D_MODEL, LANE)),   # padded to 128 output columns
        ("b_out", (1, LANE)),
    ]
    layout = {}
    row = 0
    for name, shape in entries:
        layout[name] = (row, shape)
        row += ((shape[0] + 7) // 8) * 8        # 8-row (sublane-tile) alignment
    total_rows = ((row + 7) // 8) * 8
    return layout, total_rows


# ------------------------------ in-kernel helpers --------------------------------
def _ln(x, g, b):
    m = jnp.mean(x, axis=-1, keepdims=True)
    c = x - m
    v = jnp.mean(c * c, axis=-1, keepdims=True)
    return c * lax.rsqrt(v + LN_EPS) * g + b


# ---------------------------------- kernel ---------------------------------------
def _make_kernel(B, S, layout):
    T = B * S
    f32 = jnp.float32

    def kernel(ids_ref, pos_ref, lat_ref, slab_ref, o_ref):
        def w(name):
            r0, (nr, nc) = layout[name]
            return slab_ref[r0:r0 + nr, :nc]          # static slice of the resident slab

        # ---- embedding gather as one-hot matmul (table resident in VMEM) ----
        ids = ids_ref[...]                                             # (T, 1) int32
        vocab = lax.broadcasted_iota(jnp.int32, (T, N_VOCAB), 1)
        onehot = (vocab == ids).astype(f32)                            # (T, V)
        x = jnp.dot(onehot, w("emb"), preferred_element_type=f32)      # (T, D), *sqrt(D) folded

        # ---- sinusoidal PE from float positions (constants precomputed host-side) ----
        ang = pos_ref[...] * w("inv_freq")                             # (T,1)*(1,D) -> (T,D)
        even = w("even")                                               # (1, D) 1.0/0.0
        x = x + even * jnp.sin(ang) + (1.0 - even) * jnp.cos(ang)

        # ---- additive latent injection ----
        x = x + jnp.dot(lat_ref[...], w("w_latent"),
                        preferred_element_type=f32) + w("b_latent")

        # ---- precomputed block-diagonal causal additive mask (0 / -1e30) ----
        mask = w("mask")                                               # (T, T)

        for i in range(N_LAYERS):
            # -------- pre-LN + fused lane-dense QKV (LoRA + scales folded host-side) --------
            h = _ln(x, w(f"ln1_g_{i}"), w(f"ln1_b_{i}"))               # (T, D)
            qkv = jnp.dot(h, w(f"w_qkv_{i}"),
                          preferred_element_type=f32) + w(f"b_qkv_{i}")  # (T, 3D)

            # K transposed once per layer -> per-head scores are plain matmuls
            kT = qkv[:, D_MODEL:2 * D_MODEL].T                         # (D, T)
            wo = w(f"w_o_{i}")                                         # (D, D)  rows = head-concat dim

            att = jnp.zeros((T, D_MODEL), f32)
            for hh in range(N_HEADS):
                c0 = hh * D_HEAD
                q_h = qkv[:, c0:c0 + D_HEAD]                           # (T, Dh)
                v_h = qkv[:, 2 * D_MODEL + c0:2 * D_MODEL + c0 + D_HEAD]
                kT_h = kT[c0:c0 + D_HEAD, :]                           # (Dh, T)

                s = jnp.dot(q_h, kT_h, preferred_element_type=f32) + mask
                s = s - jnp.max(s, axis=-1, keepdims=True)
                e = jnp.exp(s)
                p = e * pl.reciprocal(jnp.sum(e, axis=-1, keepdims=True), approx=True)
                o_h = jnp.dot(p, v_h, preferred_element_type=f32)      # (T, Dh)
                # merge heads via accumulated contraction (no concat / relayout)
                att = att + jnp.dot(o_h, wo[c0:c0 + D_HEAD, :],
                                    preferred_element_type=f32)        # (T, D)

            x = x + att + w(f"b_o_{i}")

            # -------- MLP --------
            h2 = _ln(x, w(f"ln2_g_{i}"), w(f"ln2_b_{i}"))
            f = jnp.dot(h2, w(f"w1_{i}"), preferred_element_type=f32) + w(f"b1_{i}")
            # TODO(synk): PyTorch nn.GELU default is exact erf; tanh approximation used here.
            f = jax.nn.gelu(f, approximate=True)
            x = x + jnp.dot(f, w(f"w2_{i}"), preferred_element_type=f32) + w(f"b2_{i}")

        # -------- final LN + vocab head (padded to 128 lanes) --------
        hf = _ln(x, w("lnf_g"), w("lnf_b"))
        o_ref[...] = jnp.dot(hf, w("w_out"), preferred_element_type=f32) + w("b_out")

    return kernel


# -------------------------------- parameters -------------------------------------
def init_params(key):
    """Parameters in PyTorch layout ([out, in] weights, [1, D] biases/gains)."""
    def take():
        nonlocal key
        key, sub = jax.random.split(key)
        return sub

    def nrm(shape, scale=0.02):
        return (scale * jax.random.normal(take(), shape)).astype(jnp.float32)

    params = {
        "embedding": nrm((N_VOCAB, D_MODEL)),
        "w_latent": nrm((D_MODEL, D_LATENT)),
        "b_latent": jnp.zeros((1, D_MODEL), jnp.float32),
        "layers": [],
        "lnf_g": jnp.ones((1, D_MODEL), jnp.float32),
        "lnf_b": jnp.zeros((1, D_MODEL), jnp.float32),
        "w_out": nrm((N_VOCAB, D_MODEL)),
        "b_out": jnp.zeros((1, N_VOCAB), jnp.float32),
    }
    for _ in range(N_LAYERS):
        layer = {
            "ln1_g": jnp.ones((1, D_MODEL), jnp.float32),
            "ln1_b": jnp.zeros((1, D_MODEL), jnp.float32),
            "wq": nrm((D_MODEL, D_MODEL)), "bq": jnp.zeros((1, D_MODEL), jnp.float32),
            "wk": nrm((D_MODEL, D_MODEL)), "bk": jnp.zeros((1, D_MODEL), jnp.float32),
            "wv": nrm((D_MODEL, D_MODEL)), "bv": jnp.zeros((1, D_MODEL), jnp.float32),
            "wo": nrm((D_MODEL, D_MODEL)), "bo": jnp.zeros((1, D_MODEL), jnp.float32),
            # LoRA adapters (A: r x D, B: D x r); B kept non-zero so the path is exercised
            "aq": nrm((LORA_RANK, D_MODEL)), "bq_l": nrm((D_MODEL, LORA_RANK), 0.01),
            "av": nrm((LORA_RANK, D_MODEL)), "bv_l": nrm((D_MODEL, LORA_RANK), 0.01),
            "ln2_g": jnp.ones((1, D_MODEL), jnp.float32),
            "ln2_b": jnp.zeros((1, D_MODEL), jnp.float32),
            "w1": nrm((D_FF, D_MODEL)), "b1": jnp.zeros((1, D_FF), jnp.float32),
            "w2": nrm((D_MODEL, D_FF)), "b2": jnp.zeros((1, D_MODEL), jnp.float32),
        }
        params["layers"].append(layer)
    return params


def prepare_weights(params, B, S):
    """One-time host-side prep: fold LoRA / scales, transpose to [in,out], fuse QKV,
    precompute PE constants + causal mask, and pack everything into ONE (rows,128) slab."""
    layout, total_rows = _slab_layout(B, S)
    T = B * S
    scale_q = 1.0 / math.sqrt(float(D_HEAD))

    tensors = {}

    # positional-encoding constants
    d_idx = np.arange(D_MODEL, dtype=np.float64)
    half = np.floor(d_idx * 0.5)
    tensors["inv_freq"] = np.exp(-(2.0 * half / float(D_MODEL)) * math.log(10000.0)
                                 ).reshape(1, D_MODEL)
    tensors["even"] = (np.arange(D_MODEL) % 2 == 0).astype(np.float32).reshape(1, D_MODEL)

    # embedding (sqrt(D) folded) / latent projection
    tensors["emb"] = np.asarray(params["embedding"]) * math.sqrt(float(D_MODEL))
    tensors["w_latent"] = np.asarray(params["w_latent"]).T
    tensors["b_latent"] = np.asarray(params["b_latent"])

    # block-diagonal causal mask as additive bias
    r = np.arange(T)
    allowed = (r[:, None] // S == r[None, :] // S) & (r[:, None] >= r[None, :])
    tensors["mask"] = np.where(allowed, 0.0, -1e30).astype(np.float32)

    for i, layer in enumerate(params["layers"]):
        wq = np.asarray(layer["wq"]); wk = np.asarray(layer["wk"]); wv = np.asarray(layer["wv"])
        # fold LoRA deltas (exact at inference): W_eff = W + scale * B @ A  ([out,in])
        wq_eff = wq + LORA_SCALE * (np.asarray(layer["bq_l"]) @ np.asarray(layer["aq"]))
        wv_eff = wv + LORA_SCALE * (np.asarray(layer["bv_l"]) @ np.asarray(layer["av"]))
        # fused lane-dense QKV, [in, 3*out]; 1/sqrt(Dh) folded into the Q columns + bias
        tensors[f"w_qkv_{i}"] = np.concatenate(
            [wq_eff.T * scale_q, wk.T, wv_eff.T], axis=1)
        tensors[f"b_qkv_{i}"] = np.concatenate(
            [np.asarray(layer["bq"]) * scale_q, np.asarray(layer["bk"]),
             np.asarray(layer["bv"])], axis=1)

        tensors[f"ln1_g_{i}"] = np.asarray(layer["ln1_g"])
        tensors[f"ln1_b_{i}"] = np.asarray(layer["ln1_b"])
        tensors[f"w_o_{i}"] = np.asarray(layer["wo"]).T       # (in=head-concat, out)
        tensors[f"b_o_{i}"] = np.asarray(layer["bo"])
        tensors[f"ln2_g_{i}"] = np.asarray(layer["ln2_g"])
        tensors[f"ln2_b_{i}"] = np.asarray(layer["ln2_b"])
        tensors[f"w1_{i}"] = np.asarray(layer["w1"]).T
        tensors[f"b1_{i}"] = np.asarray(layer["b1"])
        tensors[f"w2_{i}"] = np.asarray(layer["w2"]).T
        tensors[f"b2_{i}"] = np.asarray(layer["b2"])

    tensors["lnf_g"] = np.asarray(params["lnf_g"])
    tensors["lnf_b"] = np.asarray(params["lnf_b"])
    w_out_pad = np.zeros((D_MODEL, LANE), np.float32)
    w_out_pad[:, :N_VOCAB] = np.asarray(params["w_out"]).T
    b_out_pad = np.zeros((1, LANE), np.float32)
    b_out_pad[:, :N_VOCAB] = np.asarray(params["b_out"])
    tensors["w_out"] = w_out_pad
    tensors["b_out"] = b_out_pad

    slab = np.zeros((total_rows, LANE), np.float32)
    for name, arr in tensors.items():
        r0, (nr, nc) = layout[name]
        a = np.asarray(arr, np.float32)
        assert a.shape == (nr, nc), (name, a.shape, (nr, nc))
        slab[r0:r0 + nr, :nc] = a
    return jnp.asarray(slab)


# --------------------------------- forward ----------------------------------------
def make_forward(B, S):
    layout, _ = _slab_layout(B, S)
    kernel = _make_kernel(B, S, layout)
    T = B * S
    vmem = pl.BlockSpec(memory_space=pltpu.MemorySpace.VMEM)

    @jax.jit
    def fwd(slab, input_ids, position, latent):
        ids = input_ids.reshape(T, 1).astype(jnp.int32)
        pos = position.astype(jnp.float32).reshape(T, 1)          # position.float()
        lat = jnp.broadcast_to(latent.astype(jnp.float32)[:, None, :],
                               (B, S, D_LATENT)).reshape(T, D_LATENT)
        out = pl.pallas_call(
            kernel,
            out_shape=jax.ShapeDtypeStruct((T, LANE), jnp.float32),
            in_specs=[vmem, vmem, vmem, vmem],
            out_specs=vmem,
        )(ids, pos, lat, slab)
        return out[:, :N_VOCAB].reshape(B, S, N_VOCAB)

    return fwd


# ----------------------------------- main ------------------------------------------
if __name__ == "__main__":
    B, S = 2, 8
    key = jax.random.PRNGKey(0)
    k_ids, k_lat = jax.random.split(key)

    input_ids = jax.random.randint(k_ids, (B, S), 0, N_VOCAB, dtype=jnp.int32)
    position = jnp.broadcast_to(jnp.arange(S, dtype=jnp.int32), (B, S))
    latent = jax.random.normal(k_lat, (B, D_LATENT), dtype=jnp.float32)

    params = init_params(jax.random.PRNGKey(42))
    slab = prepare_weights(params, B, S)          # host-side prep, done once
    phase_gen_decoder_lora = make_forward(B, S)

    logits = phase_gen_decoder_lora(slab, input_ids, position, latent)
    jax.block_until_ready(logits)

    assert logits.shape == (B, S, N_VOCAB)
    assert bool(jnp.all(jnp.isfinite(logits)))
    print("KERNEL_OK")
</pallas_src>

<mosaic_0001>
module attributes {stable_mosaic.version = 11 : i64} {
  func.func @kernel(%arg0: memref<16x1xi32, #tpu.memory_space<vmem>>, %arg1: memref<16x1xf32, #tpu.memory_space<vmem>>, %arg2: memref<16x16xf32, #tpu.memory_space<vmem>>, %arg3: memref<624x128xf32, #tpu.memory_space<vmem>>, %arg4: memref<16x128xf32, #tpu.memory_space<vmem>>) attributes {dimension_semantics = [], scalar_prefetch = 0 : i64, scratch_operands = 0 : i64, tpu.core_type = #tpu.core_type<tc>} {
    %c0 = arith.constant 0 : index
    %c0_0 = arith.constant 0 : index
    %0 = vector.load %arg0[%c0, %c0_0] : memref<16x1xi32, #tpu.memory_space<vmem>>, vector<16x1xi32>
    %1 = tpu.iota {dimensions = array<i32: 1>} : vector<16x64xi32>
    %2 = vector.broadcast %0 : vector<16x1xi32> to vector<16x64xi32>
    %3 = arith.cmpi eq, %1, %2 : vector<16x64xi32>
    %4 = arith.extui %3 : vector<16x64xi1> to vector<16x64xi32>
    %5 = arith.sitofp %4 : vector<16x64xi32> to vector<16x64xf32>
    %c16 = arith.constant 16 : index
    %c0_1 = arith.constant 0 : index
    %6 = vector.load %arg3[%c16, %c0_1] : memref<624x128xf32, #tpu.memory_space<vmem>>, vector<64x32xf32>
    %cst = arith.constant dense<0.000000e+00> : vector<16x32xf32>
    %7 = tpu.matmul %5, %6, %cst {dimension_numbers = #tpu.dot_dimension_numbers<[1], [0], [0], [1], [0, 0, 1, 1], [], []>} : vector<16x64xf32>, vector<64x32xf32>, vector<16x32xf32> -> vector<16x32xf32>
    %c0_2 = arith.constant 0 : index
    %c0_3 = arith.constant 0 : index
    %8 = vector.load %arg1[%c0_2, %c0_3] : memref<16x1xf32, #tpu.memory_space<vmem>>, vector<16x1xf32>
    %c0_4 = arith.constant 0 : index
    %c0_5 = arith.constant 0 : index
    %9 = vector.load %arg3[%c0_4, %c0_5] : memref<624x128xf32, #tpu.memory_space<vmem>>, vector<1x32xf32>
    %10 = vector.broadcast %8 : vector<16x1xf32> to vector<16x32xf32>
    %11 = vector.broadcast %9 : vector<1x32xf32> to vector<16x32xf32>
    %12 = arith.mulf %10, %11 : vector<16x32xf32>
    %c8 = arith.constant 8 : index
    %c0_6 = arith.constant 0 : index
    %13 = vector.load %arg3[%c8, %c0_6] : memref<624x128xf32, #tpu.memory_space<vmem>>, vector<1x32xf32>
    %14 = math.sin %12 : vector<16x32xf32>
    %15 = vector.broadcast %13 : vector<1x32xf32> to vector<16x32xf32>
    %16 = arith.mulf %15, %14 : vector<16x32xf32>
    %17 = arith.addf %7, %16 : vector<16x32xf32>
    %cst_7 = arith.constant 1.000000e+00 : f32
    %18 = vector.broadcast %cst_7 : f32 to vector<1x32xf32>
    %19 = arith.subf %18, %13 : vector<1x32xf32>
    %20 = math.cos %12 : vector<16x32xf32>
    %21 = vector.broadcast %19 : vector<1x32xf32> to vector<16x32xf32>
    %22 = arith.mulf %21, %20 : vector<16x32xf32>
    %23 = arith.addf %17, %22 : vector<16x32xf32>
    %c0_8 = arith.constant 0 : index
    %c0_9 = arith.constant 0 : index
    %24 = vector.load %arg2[%c0_8, %c0_9] : memref<16x16xf32, #tpu.memory_space<vmem>>, vector<16x16xf32>
    %c80 = arith.constant 80 : index
    %c0_10 = arith.constant 0 : index
    %25 = vector.load %arg3[%c80, %c0_10] : memref<624x128xf32, #tpu.memory_space<vmem>>, vector<16x32xf32>
    %cst_11 = arith.constant dense<0.000000e+00> : vector<16x32xf32>
    %26 = tpu.matmul %24, %25, %cst_11 {dimension_numbers = #tpu.dot_dimension_numbers<[1], [0], [0], [1], [0, 0, 1, 1], [], []>} : vector<16x16xf32>, vector<16x32xf32>, vector<16x32xf32> -> vector<16x32xf32>
    %27 = arith.addf %23, %26 : vector<16x32xf32>
    %c96 = arith.constant 96 : index
    %c0_12 = arith.constant 0 : index
    %28 = vector.load %arg3[%c96, %c0_12] : memref<624x128xf32, #tpu.memory_space<vmem>>, vector<1x32xf32>
    %29 = vector.broadcast %28 : vector<1x32xf32> to vector<16x32xf32>
    %30 = arith.addf %27, %29 : vector<16x32xf32>
    %c104 = arith.constant 104 : index
    %c0_13 = arith.constant 0 : index
    %31 = vector.load %arg3[%c104, %c0_13] : memref<624x128xf32, #tpu.memory_space<vmem>>, vector<16x16xf32>
    %c120 = arith.constant 120 : index
    %c0_14 = arith.constant 0 : index
    %32 = vector.load %arg3[%c120, %c0_14] : memref<624x128xf32, #tpu.memory_space<vmem>>, vector<1x32xf32>
    %c128 = arith.constant 128 : index
    %c0_15 = arith.constant 0 : index
    %33 = vector.load %arg3[%c128, %c0_15] : memref<624x128xf32, #tpu.memory_space<vmem>>, vector<1x32xf32>
    %cst_16 = arith.constant dense<0.000000e+00> : vector<16xf32>
    %34 = vector.multi_reduction <add>, %30, %cst_16 [1] : vector<16x32xf32> to vector<16xf32>
    %35 = vector.shape_cast %34 : vector<16xf32> to vector<16x1xf32>
    %cst_17 = arith.constant 3.200000e+01 : f32
    %36 = vector.broadcast %cst_17 : f32 to vector<16x1xf32>
    %37 = arith.divf %35, %36 : vector<16x1xf32>
    %38 = vector.broadcast %37 : vector<16x1xf32> to vector<16x32xf32>
    %39 = arith.subf %30, %38 : vector<16x32xf32>
    %40 = arith.mulf %39, %39 : vector<16x32xf32>
    %cst_18 = arith.constant dense<0.000000e+00> : vector<16xf32>
    %41 = vector.multi_reduction <add>, %40, %cst_18 [1] : vector<16x32xf32> to vector<16xf32>
    %42 = vector.shape_cast %41 : vector<16xf32> to vector<16x1xf32>
    %cst_19 = arith.constant 3.200000e+01 : f32
    %43 = vector.broadcast %cst_19 : f32 to vector<16x1xf32>
    %44 = arith.divf %42, %43 : vector<16x1xf32>
    %cst_20 = arith.constant 9.99999974E-6 : f32
    %45 = vector.broadcast %cst_20 : f32 to vector<16x1xf32>
    %46 = arith.addf %44, %45 : vector<16x1xf32>
    %47 = math.rsqrt %46 : vector<16x1xf32>
    %48 = vector.broadcast %47 : vector<16x1xf32> to vector<16x32xf32>
    %49 = arith.mulf %39, %48 : vector<16x32xf32>
    %50 = vector.broadcast %32 : vector<1x32xf32> to vector<16x32xf32>
    %51 = arith.mulf %49, %50 : vector<16x32xf32>
    %52 = vector.broadcast %33 : vector<1x32xf32> to vector<16x32xf32>
    %53 = arith.addf %51, %52 : vector<16x32xf32>
    %c136 = arith.constant 136 : index
    %c0_21 = arith.constant 0 : index
    %54 = vector.load %arg3[%c136, %c0_21] : memref<624x128xf32, #tpu.memory_space<vmem>>, vector<32x96xf32>
    %cst_22 = arith.constant dense<0.000000e+00> : vector<16x96xf32>
    %55 = tpu.matmul %53, %54, %cst_22 {dimension_numbers = #tpu.dot_dimension_numbers<[1], [0], [0], [1], [0, 0, 1, 1], [], []>} : vector<16x32xf32>, vector<32x96xf32>, vector<16x96xf32> -> vector<16x96xf32>
    %c168 = arith.constant 168 : index
    %c0_23 = arith.constant 0 : index
    %56 = vector.load %arg3[%c168, %c0_23] : memref<624x128xf32, #tpu.memory_space<vmem>>, vector<1x96xf32>
    %57 = vector.broadcast %56 : vector<1x96xf32> to vector<16x96xf32>
    %58 = arith.addf %55, %57 : vector<16x96xf32>
    %59 = vector.extract_strided_slice %58 {offsets = [0, 32], sizes = [16, 32], strides = [1, 1]} : vector<16x96xf32> to vector<16x32xf32>
    %60 = tpu.transpose %59, [1, 0] : vector<16x32xf32> -> vector<32x16xf32>
    %c176 = arith.constant 176 : index
    %c0_24 = arith.constant 0 : index
    %61 = vector.load %arg3[%c176, %c0_24] : memref<624x128xf32, #tpu.memory_space<vmem>>, vector<32x32xf32>
    %cst_25 = arith.constant 0.000000e+00 : f32
    %62 = vector.broadcast %cst_25 : f32 to vector<16x32xf32>
    %63 = vector.extract_strided_slice %58 {offsets = [0, 0], sizes = [16, 8], strides = [1, 1]} : vector<16x96xf32> to vector<16x8xf32>
    %64 = vector.extract_strided_slice %58 {offsets = [0, 64], sizes = [16, 8], strides = [1, 1]} : vector<16x96xf32> to vector<16x8xf32>
    %65 = vector.extract_strided_slice %60 {offsets = [0, 0], sizes = [8, 16], strides = [1, 1]} : vector<32x16xf32> to vector<8x16xf32>
    %cst_26 = arith.constant dense<0.000000e+00> : vector<16x16xf32>
    %66 = tpu.matmul %63, %65, %cst_26 {dimension_numbers = #tpu.dot_dimension_numbers<[1], [0], [0], [1], [0, 0, 1, 1], [], []>} : vector<16x8xf32>, vector<8x16xf32>, vector<16x16xf32> -> vector<16x16xf32>
    %67 = arith.addf %66, %31 : vector<16x16xf32>
    %cst_27 = arith.constant dense<0xFF800000> : vector<16xf32>
    %68 = vector.multi_reduction <maximumf>, %67, %cst_27 [1] : vector<16x16xf32> to vector<16xf32>
    %69 = vector.shape_cast %68 : vector<16xf32> to vector<16x1xf32>
    %70 = vector.broadcast %69 : vector<16x1xf32> to vector<16x16xf32>
    %71 = arith.subf %67, %70 : vector<16x16xf32>
    %72 = math.exp %71 : vector<16x16xf32>
    %cst_28 = arith.constant dense<0.000000e+00> : vector<16xf32>
    %73 = vector.multi_reduction <add>, %72, %cst_28 [1] : vector<16x16xf32> to vector<16xf32>
    %74 = vector.shape_cast %73 : vector<16xf32> to vector<16x1xf32>
    %75 = tpu.reciprocal %74 {approx = true} : vector<16x1xf32> -> vector<16x1xf32>
    %76 = vector.broadcast %75 : vector<16x1xf32> to vector<16x16xf32>
    %77 = arith.mulf %72, %76 : vector<16x16xf32>
    %cst_29 = arith.constant dense<0.000000e+00> : vector<16x8xf32>
    %78 = tpu.matmul %77, %64, %cst_29 {dimension_numbers = #tpu.dot_dimension_numbers<[1], [0], [0], [1], [0, 0, 1, 1], [], []>} : vector<16x16xf32>, vector<16x8xf32>, vector<16x8xf32> -> vector<16x8xf32>
    %79 = vector.extract_strided_slice %61 {offsets = [0, 0], sizes = [8, 32], strides = [1, 1]} : vector<32x32xf32> to vector<8x32xf32>
    %cst_30 = arith.constant dense<0.000000e+00> : vector<16x32xf32>
    %80 = tpu.matmul %78, %79, %cst_30 {dimension_numbers = #tpu.dot_dimension_numbers<[1], [0], [0], [1], [0, 0, 1, 1], [], []>} : vector<16x8xf32>, vector<8x32xf32>, vector<16x32xf32> -> vector<16x32xf32>
    %81 = arith.addf %62, %80 : vector<16x32xf32>
    %82 = vector.extract_strided_slice %58 {offsets = [0, 8], sizes = [16, 8], strides = [1, 1]} : vector<16x96xf32> to vector<16x8xf32>
    %83 = vector.extract_strided_slice %58 {offsets = [0, 72], sizes = [16, 8], strides = [1, 1]} : vector<16x96xf32> to vector<16x8xf32>
    %84 = vector.extract_strided_slice %60 {offsets = [8, 0], sizes = [8, 16], strides = [1, 1]} : vector<32x16xf32> to vector<8x16xf32>
    %cst_31 = arith.constant dense<0.000000e+00> : vector<16x16xf32>
    %85 = tpu.matmul %82, %84, %cst_31 {dimension_numbers = #tpu.dot_dimension_numbers<[1], [0], [0], [1], [0, 0, 1, 1], [], []>} : vector<16x8xf32>, vector<8x16xf32>, vector<16x16xf32> -> vector<16x16xf32>
    %86 = arith.addf %85, %31 : vector<16x16xf32>
    %cst_32 = arith.constant dense<0xFF800000> : vector<16xf32>
    %87 = vector.multi_reduction <maximumf>, %86, %cst_32 [1] : vector<16x16xf32> to vector<16xf32>
    %88 = vector.shape_cast %87 : vector<16xf32> to vector<16x1xf32>
    %89 = vector.broadcast %88 : vector<16x1xf32> to vector<16x16xf32>
    %90 = arith.subf %86, %89 : vector<16x16xf32>
    %91 = math.exp %90 : vector<16x16xf32>
    %cst_33 = arith.constant dense<0.000000e+00> : vector<16xf32>
    %92 = vector.multi_reduction <add>, %91, %cst_33 [1] : vector<16x16xf32> to vector<16xf32>
    %93 = vector.shape_cast %92 : vector<16xf32> to vector<16x1xf32>
    %94 = tpu.reciprocal %93 {approx = true} : vector<16x1xf32> -> vector<16x1xf32>
    %95 = vector.broadcast %94 : vector<16x1xf32> to vector<16x16xf32>
    %96 = arith.mulf %91, %95 : vector<16x16xf32>
    %cst_34 = arith.constant dense<0.000000e+00> : vector<16x8xf32>
    %97 = tpu.matmul %96, %83, %cst_34 {dimension_numbers = #tpu.dot_dimension_numbers<[1], [0], [0], [1], [0, 0, 1, 1], [], []>} : vector<16x16xf32>, vector<16x8xf32>, vector<16x8xf32> -> vector<16x8xf32>
    %98 = vector.extract_strided_slice %61 {offsets = [8, 0], sizes = [8, 32], strides = [1, 1]} : vector<32x32xf32> to vector<8x32xf32>
    %cst_35 = arith.constant dense<0.000000e+00> : vector<16x32xf32>
    %99 = tpu.matmul %97, %98, %cst_35 {dimension_numbers = #tpu.dot_dimension_numbers<[1], [0], [0], [1], [0, 0, 1, 1], [], []>} : vector<16x8xf32>, vector<8x32xf32>, vector<16x32xf32> -> vector<16x32xf32>
    %100 = arith.addf %81, %99 : vector<16x32xf32>
    %101 = vector.extract_strided_slice %58 {offsets = [0, 16], sizes = [16, 8], strides = [1, 1]} : vector<16x96xf32> to vector<16x8xf32>
    %102 = vector.extract_strided_slice %58 {offsets = [0, 80], sizes = [16, 8], strides = [1, 1]} : vector<16x96xf32> to vector<16x8xf32>
    %103 = vector.extract_strided_slice %60 {offsets = [16, 0], sizes = [8, 16], strides = [1, 1]} : vector<32x16xf32> to vector<8x16xf32>
    %cst_36 = arith.constant dense<0.000000e+00> : vector<16x16xf32>
    %104 = tpu.matmul %101, %103, %cst_36 {dimension_numbers = #tpu.dot_dimension_numbers<[1], [0], [0], [1], [0, 0, 1, 1], [], []>} : vector<16x8xf32>, vector<8x16xf32>, vector<16x16xf32> -> vector<16x16xf32>
    %105 = arith.addf %104, %31 : vector<16x16xf32>
    %cst_37 = arith.constant dense<0xFF800000> : vector<16xf32>
    %106 = vector.multi_reduction <maximumf>, %105, %cst_37 [1] : vector<16x16xf32> to vector<16xf32>
    %107 = vector.shape_cast %106 : vector<16xf32> to vector<16x1xf32>
    %108 = vector.broadcast %107 : vector<16x1xf32> to vector<16x16xf32>
    %109 = arith.subf %105, %108 : vector<16x16xf32>
    %110 = math.exp %109 : vector<16x16xf32>
    %cst_38 = arith.constant dense<0.000000e+00> : vector<16xf32>
    %111 = vector.multi_reduction <add>, %110, %cst_38 [1] : vector<16x16xf32> to vector<16xf32>
    %112 = vector.shape_cast %111 : vector<16xf32> to vector<16x1xf32>
    %113 = tpu.reciprocal %112 {approx = true} : vector<16x1xf32> -> vector<16x1xf32>
    %114 = vector.broadcast %113 : vector<16x1xf32> to vector<16x16xf32>
    %115 = arith.mulf %110, %114 : vector<16x16xf32>
    %cst_39 = arith.constant dense<0.000000e+00> : vector<16x8xf32>
    %116 = tpu.matmul %115, %102, %cst_39 {dimension_numbers = #tpu.dot_dimension_numbers<[1], [0], [0], [1], [0, 0, 1, 1], [], []>} : vector<16x16xf32>, vector<16x8xf32>, vector<16x8xf32> -> vector<16x8xf32>
    %117 = vector.extract_strided_slice %61 {offsets = [16, 0], sizes = [8, 32], strides = [1, 1]} : vector<32x32xf32> to vector<8x32xf32>
    %cst_40 = arith.constant dense<0.000000e+00> : vector<16x32xf32>
    %118 = tpu.matmul %116, %117, %cst_40 {dimension_numbers = #tpu.dot_dimension_numbers<[1], [0], [0], [1], [0, 0, 1, 1], [], []>} : vector<16x8xf32>, vector<8x32xf32>, vector<16x32xf32> -> vector<16x32xf32>
    %119 = arith.addf %100, %118 : vector<16x32xf32>
    %120 = vector.extract_strided_slice %58 {offsets = [0, 24], sizes = [16, 8], strides = [1, 1]} : vector<16x96xf32> to vector<16x8xf32>
    %121 = vector.extract_strided_slice %58 {offsets = [0, 88], sizes = [16, 8], strides = [1, 1]} : vector<16x96xf32> to vector<16x8xf32>
    %122 = vector.extract_strided_slice %60 {offsets = [24, 0], sizes = [8, 16], strides = [1, 1]} : vector<32x16xf32> to vector<8x16xf32>
    %cst_41 = arith.constant dense<0.000000e+00> : vector<16x16xf32>
    %123 = tpu.matmul %120, %122, %cst_41 {dimension_numbers = #tpu.dot_dimension_numbers<[1], [0], [0], [1], [0, 0, 1, 1], [], []>} : vector<16x8xf32>, vector<8x16xf32>, vector<16x16xf32> -> vector<16x16xf32>
    %124 = arith.addf %123, %31 : vector<16x16xf32>
    %cst_42 = arith.constant dense<0xFF800000> : vector<16xf32>
    %125 = vector.multi_reduction <maximumf>, %124, %cst_42 [1] : vector<16x16xf32> to vector<16xf32>
    %126 = vector.shape_cast %125 : vector<16xf32> to vector<16x1xf32>
    %127 = vector.broadcast %126 : vector<16x1xf32> to vector<16x16xf32>
    %128 = arith.subf %124, %127 : vector<16x16xf32>
    %129 = math.exp %128 : vector<16x16xf32>
    %cst_43 = arith.constant dense<0.000000e+00> : vector<16xf32>
    %130 = vector.multi_reduction <add>, %129, %cst_43 [1] : vector<16x16xf32> to vector<16xf32>
    %131 = vector.shape_cast %130 : vector<16xf32> to vector<16x1xf32>
    %132 = tpu.reciprocal %131 {approx = true} : vector<16x1xf32> -> vector<16x1xf32>
    %133 = vector.broadcast %132 : vector<16x1xf32> to vector<16x16xf32>
    %134 = arith.mulf %129, %133 : vector<16x16xf32>
    %cst_44 = arith.constant dense<0.000000e+00> : vector<16x8xf32>
    %135 = tpu.matmul %134, %121, %cst_44 {dimension_numbers = #tpu.dot_dimension_numbers<[1], [0], [0], [1], [0, 0, 1, 1], [], []>} : vector<16x16xf32>, vector<16x8xf32>, vector<16x8xf32> -> vector<16x8xf32>
    %136 = vector.extract_strided_slice %61 {offsets = [24, 0], sizes = [8, 32], strides = [1, 1]} : vector<32x32xf32> to vector<8x32xf32>
    %cst_45 = arith.constant dense<0.000000e+00> : vector<16x32xf32>
    %137 = tpu.matmul %135, %136, %cst_45 {dimension_numbers = #tpu.dot_dimension_numbers<[1], [0], [0], [1], [0, 0, 1, 1], [], []>} : vector<16x8xf32>, vector<8x32xf32>, vector<16x32xf32> -> vector<16x32xf32>
    %138 = arith.addf %119, %137 : vector<16x32xf32>
    %139 = arith.addf %30, %138 : vector<16x32xf32>
    %c208 = arith.constant 208 : index
    %c0_46 = arith.constant 0 : index
    %140 = vector.load %arg3[%c208, %c0_46] : memref<624x128xf32, #tpu.memory_space<vmem>>, vector<1x32xf32>
    %141 = vector.broadcast %140 : vector<1x32xf32> to vector<16x32xf32>
    %142 = arith.addf %139, %141 : vector<16x32xf32>
    %c216 = arith.constant 216 : index
    %c0_47 = arith.constant 0 : index
    %143 = vector.load %arg3[%c216, %c0_47] : memref<624x128xf32, #tpu.memory_space<vmem>>, vector<1x32xf32>
    %c224 = arith.constant 224 : index
    %c0_48 = arith.constant 0 : index
    %144 = vector.load %arg3[%c224, %c0_48] : memref<624x128xf32, #tpu.memory_space<vmem>>, vector<1x32xf32>
    %cst_49 = arith.constant dense<0.000000e+00> : vector<16xf32>
    %145 = vector.multi_reduction <add>, %142, %cst_49 [1] : vector<16x32xf32> to vector<16xf32>
    %146 = vector.shape_cast %145 : vector<16xf32> to vector<16x1xf32>
    %cst_50 = arith.constant 3.200000e+01 : f32
    %147 = vector.broadcast %cst_50 : f32 to vector<16x1xf32>
    %148 = arith.divf %146, %147 : vector<16x1xf32>
    %149 = vector.broadcast %148 : vector<16x1xf32> to vector<16x32xf32>
    %150 = arith.subf %142, %149 : vector<16x32xf32>
    %151 = arith.mulf %150, %150 : vector<16x32xf32>
    %cst_51 = arith.constant dense<0.000000e+00> : vector<16xf32>
    %152 = vector.multi_reduction <add>, %151, %cst_51 [1] : vector<16x32xf32> to vector<16xf32>
    %153 = vector.shape_cast %152 : vector<16xf32> to vector<16x1xf32>
    %cst_52 = arith.constant 3.200000e+01 : f32
    %154 = vector.broadcast %cst_52 : f32 to vector<16x1xf32>
    %155 = arith.divf %153, %154 : vector<16x1xf32>
    %cst_53 = arith.constant 9.99999974E-6 : f32
    %156 = vector.broadcast %cst_53 : f32 to vector<16x1xf32>
    %157 = arith.addf %155, %156 : vector<16x1xf32>
    %158 = math.rsqrt %157 : vector<16x1xf32>
    %159 = vector.broadcast %158 : vector<16x1xf32> to vector<16x32xf32>
    %160 = arith.mulf %150, %159 : vector<16x32xf32>
    %161 = vector.broadcast %143 : vector<1x32xf32> to vector<16x32xf32>
    %162 = arith.mulf %160, %161 : vector<16x32xf32>
    %163 = vector.broadcast %144 : vector<1x32xf32> to vector<16x32xf32>
    %164 = arith.addf %162, %163 : vector<16x32xf32>
    %c232 = arith.constant 232 : index
    %c0_54 = arith.constant 0 : index
    %165 = vector.load %arg3[%c232, %c0_54] : memref<624x128xf32, #tpu.memory_space<vmem>>, vector<32x64xf32>
    %cst_55 = arith.constant dense<0.000000e+00> : vector<16x64xf32>
    %166 = tpu.matmul %164, %165, %cst_55 {dimension_numbers = #tpu.dot_dimension_numbers<[1], [0], [0], [1], [0, 0, 1, 1], [], []>} : vector<16x32xf32>, vector<32x64xf32>, vector<16x64xf32> -> vector<16x64xf32>
    %c264 = arith.constant 264 : index
    %c0_56 = arith.constant 0 : index
    %167 = vector.load %arg3[%c264, %c0_56] : memref<624x128xf32, #tpu.memory_space<vmem>>, vector<1x64xf32>
    %168 = vector.broadcast %167 : vector<1x64xf32> to vector<16x64xf32>
    %169 = arith.addf %166, %168 : vector<16x64xf32>
    %170 = arith.mulf %169, %169 : vector<16x64xf32>
    %171 = arith.mulf %169, %170 : vector<16x64xf32>
    %cst_57 = arith.constant 4.471500e-02 : f32
    %172 = vector.broadcast %cst_57 : f32 to vector<16x64xf32>
    %173 = arith.mulf %172, %171 : vector<16x64xf32>
    %174 = arith.addf %169, %173 : vector<16x64xf32>
    %cst_58 = arith.constant 0.797884583 : f32
    %175 = vector.broadcast %cst_58 : f32 to vector<16x64xf32>
    %176 = arith.mulf %175, %174 : vector<16x64xf32>
    %177 = math.tanh %176 : vector<16x64xf32>
    %cst_59 = arith.constant 1.000000e+00 : f32
    %178 = vector.broadcast %cst_59 : f32 to vector<16x64xf32>
    %179 = arith.addf %178, %177 : vector<16x64xf32>
    %cst_60 = arith.constant 5.000000e-01 : f32
    %180 = vector.broadcast %cst_60 : f32 to vector<16x64xf32>
    %181 = arith.mulf %180, %179 : vector<16x64xf32>
    %182 = arith.mulf %169, %181 : vector<16x64xf32>
    %c272 = arith.constant 272 : index
    %c0_61 = arith.constant 0 : index
    %183 = vector.load %arg3[%c272, %c0_61] : memref<624x128xf32, #tpu.memory_space<vmem>>, vector<64x32xf32>
    %cst_62 = arith.constant dense<0.000000e+00> : vector<16x32xf32>
    %184 = tpu.matmul %182, %183, %cst_62 {dimension_numbers = #tpu.dot_dimension_numbers<[1], [0], [0], [1], [0, 0, 1, 1], [], []>} : vector<16x64xf32>, vector<64x32xf32>, vector<16x32xf32> -> vector<16x32xf32>
    %185 = arith.addf %142, %184 : vector<16x32xf32>
    %c336 = arith.constant 336 : index
    %c0_63 = arith.constant 0 : index
    %186 = vector.load %arg3[%c336, %c0_63] : memref<624x128xf32, #tpu.memory_space<vmem>>, vector<1x32xf32>
    %187 = vector.broadcast %186 : vector<1x32xf32> to vector<16x32xf32>
    %188 = arith.addf %185, %187 : vector<16x32xf32>
    %c344 = arith.constant 344 : index
    %c0_64 = arith.constant 0 : index
    %189 = vector.load %arg3[%c344, %c0_64] : memref<624x128xf32, #tpu.memory_space<vmem>>, vector<1x32xf32>
    %c352 = arith.constant 352 : index
    %c0_65 = arith.constant 0 : index
    %190 = vector.load %arg3[%c352, %c0_65] : memref<624x128xf32, #tpu.memory_space<vmem>>, vector<1x32xf32>
    %cst_66 = arith.constant dense<0.000000e+00> : vector<16xf32>
    %191 = vector.multi_reduction <add>, %188, %cst_66 [1] : vector<16x32xf32> to vector<16xf32>
    %192 = vector.shape_cast %191 : vector<16xf32> to vector<16x1xf32>
    %cst_67 = arith.constant 3.200000e+01 : f32
    %193 = vector.broadcast %cst_67 : f32 to vector<16x1xf32>
    %194 = arith.divf %192, %193 : vector<16x1xf32>
    %195 = vector.broadcast %194 : vector<16x1xf32> to vector<16x32xf32>
    %196 = arith.subf %188, %195 : vector<16x32xf32>
    %197 = arith.mulf %196, %196 : vector<16x32xf32>
    %cst_68 = arith.constant dense<0.000000e+00> : vector<16xf32>
    %198 = vector.multi_reduction <add>, %197, %cst_68 [1] : vector<16x32xf32> to vector<16xf32>
    %199 = vector.shape_cast %198 : vector<16xf32> to vector<16x1xf32>
    %cst_69 = arith.constant 3.200000e+01 : f32
    %200 = vector.broadcast %cst_69 : f32 to vector<16x1xf32>
    %201 = arith.divf %199, %200 : vector<16x1xf32>
    %cst_70 = arith.constant 9.99999974E-6 : f32
    %202 = vector.broadcast %cst_70 : f32 to vector<16x1xf32>
    %203 = arith.addf %201, %202 : vector<16x1xf32>
    %204 = math.rsqrt %203 : vector<16x1xf32>
    %205 = vector.broadcast %204 : vector<16x1xf32> to vector<16x32xf32>
    %206 = arith.mulf %196, %205 : vector<16x32xf32>
    %207 = vector.broadcast %189 : vector<1x32xf32> to vector<16x32xf32>
    %208 = arith.mulf %206, %207 : vector<16x32xf32>
    %209 = vector.broadcast %190 : vector<1x32xf32> to vector<16x32xf32>
    %210 = arith.addf %208, %209 : vector<16x32xf32>
    %c360 = arith.constant 360 : index
    %c0_71 = arith.constant 0 : index
    %211 = vector.load %arg3[%c360, %c0_71] : memref<624x128xf32, #tpu.memory_space<vmem>>, vector<32x96xf32>
    %cst_72 = arith.constant dense<0.000000e+00> : vector<16x96xf32>
    %212 = tpu.matmul %210, %211, %cst_72 {dimension_numbers = #tpu.dot_dimension_numbers<[1], [0], [0], [1], [0, 0, 1, 1], [], []>} : vector<16x32xf32>, vector<32x96xf32>, vector<16x96xf32> -> vector<16x96xf32>
    %c392 = arith.constant 392 : index
    %c0_73 = arith.constant 0 : index
    %213 = vector.load %arg3[%c392, %c0_73] : memref<624x128xf32, #tpu.memory_space<vmem>>, vector<1x96xf32>
    %214 = vector.broadcast %213 : vector<1x96xf32> to vector<16x96xf32>
    %215 = arith.addf %212, %214 : vector<16x96xf32>
    %216 = vector.extract_strided_slice %215 {offsets = [0, 32], sizes = [16, 32], strides = [1, 1]} : vector<16x96xf32> to vector<16x32xf32>
    %217 = tpu.transpose %216, [1, 0] : vector<16x32xf32> -> vector<32x16xf32>
    %c400 = arith.constant 400 : index
    %c0_74 = arith.constant 0 : index
    %218 = vector.load %arg3[%c400, %c0_74] : memref<624x128xf32, #tpu.memory_space<vmem>>, vector<32x32xf32>
    %cst_75 = arith.constant 0.000000e+00 : f32
    %219 = vector.broadcast %cst_75 : f32 to vector<16x32xf32>
    %220 = vector.extract_strided_slice %215 {offsets = [0, 0], sizes = [16, 8], strides = [1, 1]} : vector<16x96xf32> to vector<16x8xf32>
    %221 = vector.extract_strided_slice %215 {offsets = [0, 64], sizes = [16, 8], strides = [1, 1]} : vector<16x96xf32> to vector<16x8xf32>
    %222 = vector.extract_strided_slice %217 {offsets = [0, 0], sizes = [8, 16], strides = [1, 1]} : vector<32x16xf32> to vector<8x16xf32>
    %cst_76 = arith.constant dense<0.000000e+00> : vector<16x16xf32>
    %223 = tpu.matmul %220, %222, %cst_76 {dimension_numbers = #tpu.dot_dimension_numbers<[1], [0], [0], [1], [0, 0, 1, 1], [], []>} : vector<16x8xf32>, vector<8x16xf32>, vector<16x16xf32> -> vector<16x16xf32>
    %224 = arith.addf %223, %31 : vector<16x16xf32>
    %cst_77 = arith.constant dense<0xFF800000> : vector<16xf32>
    %225 = vector.multi_reduction <maximumf>, %224, %cst_77 [1] : vector<16x16xf32> to vector<16xf32>
    %226 = vector.shape_cast %225 : vector<16xf32> to vector<16x1xf32>
    %227 = vector.broadcast %226 : vector<16x1xf32> to vector<16x16xf32>
    %228 = arith.subf %224, %227 : vector<16x16xf32>
    %229 = math.exp %228 : vector<16x16xf32>
    %cst_78 = arith.constant dense<0.000000e+00> : vector<16xf32>
    %230 = vector.multi_reduction <add>, %229, %cst_78 [1] : vector<16x16xf32> to vector<16xf32>
    %231 = vector.shape_cast %230 : vector<16xf32> to vector<16x1xf32>
    %232 = tpu.reciprocal %231 {approx = true} : vector<16x1xf32> -> vector<16x1xf32>
    %233 = vector.broadcast %232 : vector<16x1xf32> to vector<16x16xf32>
    %234 = arith.mulf %229, %233 : vector<16x16xf32>
    %cst_79 = arith.constant dense<0.000000e+00> : vector<16x8xf32>
    %235 = tpu.matmul %234, %221, %cst_79 {dimension_numbers = #tpu.dot_dimension_numbers<[1], [0], [0], [1], [0, 0, 1, 1], [], []>} : vector<16x16xf32>, vector<16x8xf32>, vector<16x8xf32> -> vector<16x8xf32>
    %236 = vector.extract_strided_slice %218 {offsets = [0, 0], sizes = [8, 32], strides = [1, 1]} : vector<32x32xf32> to vector<8x32xf32>
    %cst_80 = arith.constant dense<0.000000e+00> : vector<16x32xf32>
    %237 = tpu.matmul %235, %236, %cst_80 {dimension_numbers = #tpu.dot_dimension_numbers<[1], [0], [0], [1], [0, 0, 1, 1], [], []>} : vector<16x8xf32>, vector<8x32xf32>, vector<16x32xf32> -> vector<16x32xf32>
    %238 = arith.addf %219, %237 : vector<16x32xf32>
    %239 = vector.extract_strided_slice %215 {offsets = [0, 8], sizes = [16, 8], strides = [1, 1]} : vector<16x96xf32> to vector<16x8xf32>
    %240 = vector.extract_strided_slice %215 {offsets = [0, 72], sizes = [16, 8], strides = [1, 1]} : vector<16x96xf32> to vector<16x8xf32>
    %241 = vector.extract_strided_slice %217 {offsets = [8, 0], sizes = [8, 16], strides = [1, 1]} : vector<32x16xf32> to vector<8x16xf32>
    %cst_81 = arith.constant dense<0.000000e+00> : vector<16x16xf32>
    %242 = tpu.matmul %239, %241, %cst_81 {dimension_numbers = #tpu.dot_dimension_numbers<[1], [0], [0], [1], [0, 0, 1, 1], [], []>} : vector<16x8xf32>, vector<8x16xf32>, vector<16x16xf32> -> vector<16x16xf32>
    %243 = arith.addf %242, %31 : vector<16x16xf32>
    %cst_82 = arith.constant dense<0xFF800000> : vector<16xf32>
    %244 = vector.multi_reduction <maximumf>, %243, %cst_82 [1] : vector<16x16xf32> to vector<16xf32>
    %245 = vector.shape_cast %244 : vector<16xf32> to vector<16x1xf32>
    %246 = vector.broadcast %245 : vector<16x1xf32> to vector<16x16xf32>
    %247 = arith.subf %243, %246 : vector<16x16xf32>
    %248 = math.exp %247 : vector<16x16xf32>
    %cst_83 = arith.constant dense<0.000000e+00> : vector<16xf32>
    %249 = vector.multi_reduction <add>, %248, %cst_83 [1] : vector<16x16xf32> to vector<16xf32>
    %250 = vector.shape_cast %249 : vector<16xf32> to vector<16x1xf32>
    %251 = tpu.reciprocal %250 {approx = true} : vector<16x1xf32> -> vector<16x1xf32>
    %252 = vector.broadcast %251 : vector<16x1xf32> to vector<16x16xf32>
    %253 = arith.mulf %248, %252 : vector<16x16xf32>
    %cst_84 = arith.constant dense<0.000000e+00> : vector<16x8xf32>
    %254 = tpu.matmul %253, %240, %cst_84 {dimension_numbers = #tpu.dot_dimension_numbers<[1], [0], [0], [1], [0, 0, 1, 1], [], []>} : vector<16x16xf32>, vector<16x8xf32>, vector<16x8xf32> -> vector<16x8xf32>
    %255 = vector.extract_strided_slice %218 {offsets = [8, 0], sizes = [8, 32], strides = [1, 1]} : vector<32x32xf32> to vector<8x32xf32>
    %cst_85 = arith.constant dense<0.000000e+00> : vector<16x32xf32>
    %256 = tpu.matmul %254, %255, %cst_85 {dimension_numbers = #tpu.dot_dimension_numbers<[1], [0], [0], [1], [0, 0, 1, 1], [], []>} : vector<16x8xf32>, vector<8x32xf32>, vector<16x32xf32> -> vector<16x32xf32>
    %257 = arith.addf %238, %256 : vector<16x32xf32>
    %258 = vector.extract_strided_slice %215 {offsets = [0, 16], sizes = [16, 8], strides = [1, 1]} : vector<16x96xf32> to vector<16x8xf32>
    %259 = vector.extract_strided_slice %215 {offsets = [0, 80], sizes = [16, 8], strides = [1, 1]} : vector<16x96xf32> to vector<16x8xf32>
    %260 = vector.extract_strided_slice %217 {offsets = [16, 0], sizes = [8, 16], strides = [1, 1]} : vector<32x16xf32> to vector<8x16xf32>
    %cst_86 = arith.constant dense<0.000000e+00> : vector<16x16xf32>
    %261 = tpu.matmul %258, %260, %cst_86 {dimension_numbers = #tpu.dot_dimension_numbers<[1], [0], [0], [1], [0, 0, 1, 1], [], []>} : vector<16x8xf32>, vector<8x16xf32>, vector<16x16xf32> -> vector<16x16xf32>
    %262 = arith.addf %261, %31 : vector<16x16xf32>
    %cst_87 = arith.constant dense<0xFF800000> : vector<16xf32>
    %263 = vector.multi_reduction <maximumf>, %262, %cst_87 [1] : vector<16x16xf32> to vector<16xf32>
    %264 = vector.shape_cast %263 : vector<16xf32> to vector<16x1xf32>
    %265 = vector.broadcast %264 : vector<16x1xf32> to vector<16x16xf32>
    %266 = arith.subf %262, %265 : vector<16x16xf32>
    %267 = math.exp %266 : vector<16x16xf32>
    %cst_88 = arith.constant dense<0.000000e+00> : vector<16xf32>
    %268 = vector.multi_reduction <add>, %267, %cst_88 [1] : vector<16x16xf32> to vector<16xf32>
    %269 = vector.shape_cast %268 : vector<16xf32> to vector<16x1xf32>
    %270 = tpu.reciprocal %269 {approx = true} : vector<16x1xf32> -> vector<16x1xf32>
    %271 = vector.broadcast %270 : vector<16x1xf32> to vector<16x16xf32>
    %272 = arith.mulf %267, %271 : vector<16x16xf32>
    %cst_89 = arith.constant dense<0.000000e+00> : vector<16x8xf32>
    %273 = tpu.matmul %272, %259, %cst_89 {dimension_numbers = #tpu.dot_dimension_numbers<[1], [0], [0], [1], [0, 0, 1, 1], [], []>} : vector<16x16xf32>, vector<16x8xf32>, vector<16x8xf32> -> vector<16x8xf32>
    %274 = vector.extract_strided_slice %218 {offsets = [16, 0], sizes = [8, 32], strides = [1, 1]} : vector<32x32xf32> to vector<8x32xf32>
    %cst_90 = arith.constant dense<0.000000e+00> : vector<16x32xf32>
    %275 = tpu.matmul %273, %274, %cst_90 {dimension_numbers = #tpu.dot_dimension_numbers<[1], [0], [0], [1], [0, 0, 1, 1], [], []>} : vector<16x8xf32>, vector<8x32xf32>, vector<16x32xf32> -> vector<16x32xf32>
    %276 = arith.addf %257, %275 : vector<16x32xf32>
    %277 = vector.extract_strided_slice %215 {offsets = [0, 24], sizes = [16, 8], strides = [1, 1]} : vector<16x96xf32> to vector<16x8xf32>
    %278 = vector.extract_strided_slice %215 {offsets = [0, 88], sizes = [16, 8], strides = [1, 1]} : vector<16x96xf32> to vector<16x8xf32>
    %279 = vector.extract_strided_slice %217 {offsets = [24, 0], sizes = [8, 16], strides = [1, 1]} : vector<32x16xf32> to vector<8x16xf32>
    %cst_91 = arith.constant dense<0.000000e+00> : vector<16x16xf32>
    %280 = tpu.matmul %277, %279, %cst_91 {dimension_numbers = #tpu.dot_dimension_numbers<[1], [0], [0], [1], [0, 0, 1, 1], [], []>} : vector<16x8xf32>, vector<8x16xf32>, vector<16x16xf32> -> vector<16x16xf32>
    %281 = arith.addf %280, %31 : vector<16x16xf32>
    %cst_92 = arith.constant dense<0xFF800000> : vector<16xf32>
    %282 = vector.multi_reduction <maximumf>, %281, %cst_92 [1] : vector<16x16xf32> to vector<16xf32>
    %283 = vector.shape_cast %282 : vector<16xf32> to vector<16x1xf32>
    %284 = vector.broadcast %283 : vector<16x1xf32> to vector<16x16xf32>
    %285 = arith.subf %281, %284 : vector<16x16xf32>
    %286 = math.exp %285 : vector<16x16xf32>
    %cst_93 = arith.constant dense<0.000000e+00> : vector<16xf32>
    %287 = vector.multi_reduction <add>, %286, %cst_93 [1] : vector<16x16xf32> to vector<16xf32>
    %288 = vector.shape_cast %287 : vector<16xf32> to vector<16x1xf32>
    %289 = tpu.reciprocal %288 {approx = true} : vector<16x1xf32> -> vector<16x1xf32>
    %290 = vector.broadcast %289 : vector<16x1xf32> to vector<16x16xf32>
    %291 = arith.mulf %286, %290 : vector<16x16xf32>
    %cst_94 = arith.constant dense<0.000000e+00> : vector<16x8xf32>
    %292 = tpu.matmul %291, %278, %cst_94 {dimension_numbers = #tpu.dot_dimension_numbers<[1], [0], [0], [1], [0, 0, 1, 1], [], []>} : vector<16x16xf32>, vector<16x8xf32>, vector<16x8xf32> -> vector<16x8xf32>
    %293 = vector.extract_strided_slice %218 {offsets = [24, 0], sizes = [8, 32], strides = [1, 1]} : vector<32x32xf32> to vector<8x32xf32>
    %cst_95 = arith.constant dense<0.000000e+00> : vector<16x32xf32>
    %294 = tpu.matmul %292, %293, %cst_95 {dimension_numbers = #tpu.dot_dimension_numbers<[1], [0], [0], [1], [0, 0, 1, 1], [], []>} : vector<16x8xf32>, vector<8x32xf32>, vector<16x32xf32> -> vector<16x32xf32>
    %295 = arith.addf %276, %294 : vector<16x32xf32>
    %296 = arith.addf %188, %295 : vector<16x32xf32>
    %c432 = arith.constant 432 : index
    %c0_96 = arith.constant 0 : index
    %297 = vector.load %arg3[%c432, %c0_96] : memref<624x128xf32, #tpu.memory_space<vmem>>, vector<1x32xf32>
    %298 = vector.broadcast %297 : vector<1x32xf32> to vector<16x32xf32>
    %299 = arith.addf %296, %298 : vector<16x32xf32>
    %c440 = arith.constant 440 : index
    %c0_97 = arith.constant 0 : index
    %300 = vector.load %arg3[%c440, %c0_97] : memref<624x128xf32, #tpu.memory_space<vmem>>, vector<1x32xf32>
    %c448 = arith.constant 448 : index
    %c0_98 = arith.constant 0 : index
    %301 = vector.load %arg3[%c448, %c0_98] : memref<624x128xf32, #tpu.memory_space<vmem>>, vector<1x32xf32>
    %cst_99 = arith.constant dense<0.000000e+00> : vector<16xf32>
    %302 = vector.multi_reduction <add>, %299, %cst_99 [1] : vector<16x32xf32> to vector<16xf32>
    %303 = vector.shape_cast %302 : vector<16xf32> to vector<16x1xf32>
    %cst_100 = arith.constant 3.200000e+01 : f32
    %304 = vector.broadcast %cst_100 : f32 to vector<16x1xf32>
    %305 = arith.divf %303, %304 : vector<16x1xf32>
    %306 = vector.broadcast %305 : vector<16x1xf32> to vector<16x32xf32>
    %307 = arith.subf %299, %306 : vector<16x32xf32>
    %308 = arith.mulf %307, %307 : vector<16x32xf32>
    %cst_101 = arith.constant dense<0.000000e+00> : vector<16xf32>
    %309 = vector.multi_reduction <add>, %308, %cst_101 [1] : vector<16x32xf32> to vector<16xf32>
    %310 = vector.shape_cast %309 : vector<16xf32> to vector<16x1xf32>
    %cst_102 = arith.constant 3.200000e+01 : f32
    %311 = vector.broadcast %cst_102 : f32 to vector<16x1xf32>
    %312 = arith.divf %310, %311 : vector<16x1xf32>
    %cst_103 = arith.constant 9.99999974E-6 : f32
    %313 = vector.broadcast %cst_103 : f32 to vector<16x1xf32>
    %314 = arith.addf %312, %313 : vector<16x1xf32>
    %315 = math.rsqrt %314 : vector<16x1xf32>
    %316 = vector.broadcast %315 : vector<16x1xf32> to vector<16x32xf32>
    %317 = arith.mulf %307, %316 : vector<16x32xf32>
    %318 = vector.broadcast %300 : vector<1x32xf32> to vector<16x32xf32>
    %319 = arith.mulf %317, %318 : vector<16x32xf32>
    %320 = vector.broadcast %301 : vector<1x32xf32> to vector<16x32xf32>
    %321 = arith.addf %319, %320 : vector<16x32xf32>
    %c456 = arith.constant 456 : index
    %c0_104 = arith.constant 0 : index
    %322 = vector.load %arg3[%c456, %c0_104] : memref<624x128xf32, #tpu.memory_space<vmem>>, vector<32x64xf32>
    %cst_105 = arith.constant dense<0.000000e+00> : vector<16x64xf32>
    %323 = tpu.matmul %321, %322, %cst_105 {dimension_numbers = #tpu.dot_dimension_numbers<[1], [0], [0], [1], [0, 0, 1, 1], [], []>} : vector<16x32xf32>, vector<32x64xf32>, vector<16x64xf32> -> vector<16x64xf32>
    %c488 = arith.constant 488 : index
    %c0_106 = arith.constant 0 : index
    %324 = vector.load %arg3[%c488, %c0_106] : memref<624x128xf32, #tpu.memory_space<vmem>>, vector<1x64xf32>
    %325 = vector.broadcast %324 : vector<1x64xf32> to vector<16x64xf32>
    %326 = arith.addf %323, %325 : vector<16x64xf32>
    %327 = arith.mulf %326, %326 : vector<16x64xf32>
    %328 = arith.mulf %326, %327 : vector<16x64xf32>
    %cst_107 = arith.constant 4.471500e-02 : f32
    %329 = vector.broadcast %cst_107 : f32 to vector<16x64xf32>
    %330 = arith.mulf %329, %328 : vector<16x64xf32>
    %331 = arith.addf %326, %330 : vector<16x64xf32>
    %cst_108 = arith.constant 0.797884583 : f32
    %332 = vector.broadcast %cst_108 : f32 to vector<16x64xf32>
    %333 = arith.mulf %332, %331 : vector<16x64xf32>
    %334 = math.tanh %333 : vector<16x64xf32>
    %cst_109 = arith.constant 1.000000e+00 : f32
    %335 = vector.broadcast %cst_109 : f32 to vector<16x64xf32>
    %336 = arith.addf %335, %334 : vector<16x64xf32>
    %cst_110 = arith.constant 5.000000e-01 : f32
    %337 = vector.broadcast %cst_110 : f32 to vector<16x64xf32>
    %338 = arith.mulf %337, %336 : vector<16x64xf32>
    %339 = arith.mulf %326, %338 : vector<16x64xf32>
    %c496 = arith.constant 496 : index
    %c0_111 = arith.constant 0 : index
    %340 = vector.load %arg3[%c496, %c0_111] : memref<624x128xf32, #tpu.memory_space<vmem>>, vector<64x32xf32>
    %cst_112 = arith.constant dense<0.000000e+00> : vector<16x32xf32>
    %341 = tpu.matmul %339, %340, %cst_112 {dimension_numbers = #tpu.dot_dimension_numbers<[1], [0], [0], [1], [0, 0, 1, 1], [], []>} : vector<16x64xf32>, vector<64x32xf32>, vector<16x32xf32> -> vector<16x32xf32>
    %342 = arith.addf %299, %341 : vector<16x32xf32>
    %c560 = arith.constant 560 : index
    %c0_113 = arith.constant 0 : index
    %343 = vector.load %arg3[%c560, %c0_113] : memref<624x128xf32, #tpu.memory_space<vmem>>, vector<1x32xf32>
    %344 = vector.broadcast %343 : vector<1x32xf32> to vector<16x32xf32>
    %345 = arith.addf %342, %344 : vector<16x32xf32>
    %c568 = arith.constant 568 : index
    %c0_114 = arith.constant 0 : index
    %346 = vector.load %arg3[%c568, %c0_114] : memref<624x128xf32, #tpu.memory_space<vmem>>, vector<1x32xf32>
    %c576 = arith.constant 576 : index
    %c0_115 = arith.constant 0 : index
    %347 = vector.load %arg3[%c576, %c0_115] : memref<624x128xf32, #tpu.memory_space<vmem>>, vector<1x32xf32>
    %cst_116 = arith.constant dense<0.000000e+00> : vector<16xf32>
    %348 = vector.multi_reduction <add>, %345, %cst_116 [1] : vector<16x32xf32> to vector<16xf32>
    %349 = vector.shape_cast %348 : vector<16xf32> to vector<16x1xf32>
    %cst_117 = arith.constant 3.200000e+01 : f32
    %350 = vector.broadcast %cst_117 : f32 to vector<16x1xf32>
    %351 = arith.divf %349, %350 : vector<16x1xf32>
    %352 = vector.broadcast %351 : vector<16x1xf32> to vector<16x32xf32>
    %353 = arith.subf %345, %352 : vector<16x32xf32>
    %354 = arith.mulf %353, %353 : vector<16x32xf32>
    %cst_118 = arith.constant dense<0.000000e+00> : vector<16xf32>
    %355 = vector.multi_reduction <add>, %354, %cst_118 [1] : vector<16x32xf32> to vector<16xf32>
    %356 = vector.shape_cast %355 : vector<16xf32> to vector<16x1xf32>
    %cst_119 = arith.constant 3.200000e+01 : f32
    %357 = vector.broadcast %cst_119 : f32 to vector<16x1xf32>
    %358 = arith.divf %356, %357 : vector<16x1xf32>
    %cst_120 = arith.constant 9.99999974E-6 : f32
    %359 = vector.broadcast %cst_120 : f32 to vector<16x1xf32>
    %360 = arith.addf %358, %359 : vector<16x1xf32>
    %361 = math.rsqrt %360 : vector<16x1xf32>
    %362 = vector.broadcast %361 : vector<16x1xf32> to vector<16x32xf32>
    %363 = arith.mulf %353, %362 : vector<16x32xf32>
    %364 = vector.broadcast %346 : vector<1x32xf32> to vector<16x32xf32>
    %365 = arith.mulf %363, %364 : vector<16x32xf32>
    %366 = vector.broadcast %347 : vector<1x32xf32> to vector<16x32xf32>
    %367 = arith.addf %365, %366 : vector<16x32xf32>
    %c584 = arith.constant 584 : index
    %c0_121 = arith.constant 0 : index
    %368 = vector.load %arg3[%c584, %c0_121] : memref<624x128xf32, #tpu.memory_space<vmem>>, vector<32x128xf32>
    %cst_122 = arith.constant dense<0.000000e+00> : vector<16x128xf32>
    %369 = tpu.matmul %367, %368, %cst_122 {dimension_numbers = #tpu.dot_dimension_numbers<[1], [0], [0], [1], [0, 0, 1, 1], [], []>} : vector<16x32xf32>, vector<32x128xf32>, vector<16x128xf32> -> vector<16x128xf32>
    %c616 = arith.constant 616 : index
    %c0_123 = arith.constant 0 : index
    %370 = vector.load %arg3[%c616, %c0_123] : memref<624x128xf32, #tpu.memory_space<vmem>>, vector<1x128xf32>
    %371 = vector.broadcast %370 : vector<1x128xf32> to vector<16x128xf32>
    %372 = arith.addf %369, %371 : vector<16x128xf32>
    %c0_124 = arith.constant 0 : index
    %c0_125 = arith.constant 0 : index
    %373 = vector.load %arg4[%c0_124, %c0_125] : memref<16x128xf32, #tpu.memory_space<vmem>>, vector<16x128xf32>
    tpu.vector_store %arg4[%c0_124, %c0_125], %372 {strides = array<i32>} : memref<16x128xf32, #tpu.memory_space<vmem>>, vector<16x128xf32>,
    return
  }
}

</mosaic_0001>

<llo_original>
// kernel: fwd.1
$region0: #{fwd.1}
  #allocation0 [shape = 'u32[]', space=smem, size = 0x4, offset = 0x4, fixed_abs, tag = 'smem constant byte address 0x4 - core index']
  #allocation1 [shape = 'u32[144,128]{1,0:T(1,128)}', space=vmem, size = 0x12000, scoped, tag = 'internal scratch']
  %s0 = inlined_call_operand.vmem [shape: s32[16,1], index: 0, kind: input, shape index: {}]
  %s1 = inlined_call_operand.vmem [shape: f32[16,1], index: 1, kind: input, shape index: {}]
  %s2 = inlined_call_operand.vmem [shape: f32[16,16], index: 2, kind: input, shape index: {}]
  %s3 = inlined_call_operand.hbm [shape: f32[624,128], index: 3, kind: input, shape index: {}]
  %s4 = inlined_call_operand.vmem [shape: f32[16,128], index: 4, kind: output, shape index: {}]
  %s5 = sld [smem:[#allocation0]]
  $region30: #{fwd.1} parent=0
    _
  %s7 = ssub.s32 1, %s5
  %s8 = scalar_select 0, %s7, %s5
  $region1: #{fwd.1} parent=0
    #allocation2 [shape = 'u8[319488]{0}', space=vmem, size = 0x4e000, scoped, tag = 'input window, operand 3, single buffered']
    #allocation3 [shape = 's32[1]{0}', space=sflag, size = 0x4, scoped, tag = 'scoped memory for fwd.1']
    %9 = vsyncpa [#allocation3], 0
    // Predicated region
    $region2: #{fwd.1} parent=1 // pred_check
      _
    $region3: #{fwd.1} parent=1 // pred_check_branch
      %11 = sbr.rel (0) target = $region5
    $region4: #{fwd.1} parent=1 // pred_region
      _
    $region5: #{fwd.1} parent=1 // pred_fallthru
      _
    // Predicated region
    $region6: #{fwd.1} parent=1 // pred_check
      _
    $region7: #{fwd.1} parent=1 // pred_check_branch
      %13 = sbr.rel (0) target = $region9
    $region8: #{fwd.1} parent=1 // pred_region
      _
    $region9: #{fwd.1} parent=1 // pred_fallthru
      _
    // Predicated region
    $region10: #{fwd.1} parent=1 // pred_check
      _
    $region11: #{fwd.1} parent=1 // pred_check_branch
      %15 = sbr.rel (0) target = $region13
    $region12: #{fwd.1} parent=1 // pred_region
      _
    $region13: #{fwd.1} parent=1 // pred_fallthru
      _
    // Predicated region
    $region14: #{fwd.1} parent=1 // pred_check
      _
    $region15: #{fwd.1} parent=1 // pred_check_branch
      %17 = sbr.rel (0) target = $region17
    $region16: #{fwd.1} parent=1 // pred_region
      %s19 = ssub.s32 9984, 9984
      %20 = vsyncadd [#allocation3], %s19
      %s21 = sshll.u32 [#allocation2], 4
      %s22 = int_to_ptr.vmem [resolvable:$true] %s21
      %27 = dma.hbm_to_vmem [thread:$0]  %s3, 9984, %s22, [#allocation3], 128, 128, 8
    $region17: #{fwd.1} parent=1 // pred_fallthru
      _
    // Predicated region
    $region18: #{fwd.1} parent=1 // pred_check
      _
    $region19: #{fwd.1} parent=1 // pred_check_branch
      %29 = sbr.rel (0) target = $region21
    $region20: #{fwd.1} parent=1 // pred_region
      %30 = dma.done [#allocation3], 9984
    $region21: #{fwd.1} parent=1 // pred_fallthru
      _
    %v31 = vld [vmem:[%s0] sm:$0xff]
    %v32 = vld [vmem:[%s0 + $0x8] sm:$0xff]
    %v33 = vlaneseq
    %v34 = vand.u32 %v33, 127
    %35 = vset.pattern.permute.xlu0 0
    %36 = vperm.xlu0 %35, %v31
    %v37 = vpop.permute.xlu0 %36
    %38 = vset.pattern.permute.xlu0 0
    %39 = vperm.xlu0 %38, %v32
    %v40 = vpop.permute.xlu0 %39
    %vm41 = vcmp.eq.s32.totalorder %v34, %v37
    %vm42 = vcmp.eq.s32.totalorder %v34, %v40
    %v43 = vsel %vm41, 1, 0
    %v44 = vsel %vm42, 1, 0
    %v45 = vcvt.s32.f32 %v43
    %v46 = vcvt.s32.f32 %v44
    %v47 = vld [vmem:[#allocation2 + $0x10] sm:$0xff]
    %v48 = vld [vmem:[#allocation2 + $0x18] sm:$0xff]
    %v49 = vld [vmem:[#allocation2 + $0x20] sm:$0xff]
    %v50 = vld [vmem:[#allocation2 + $0x28] sm:$0xff]
    %v51 = vld [vmem:[#allocation2 + $0x30] sm:$0xff]
    %v52 = vld [vmem:[#allocation2 + $0x38] sm:$0xff]
    %v53 = vld [vmem:[#allocation2 + $0x40] sm:$0xff]
    %v54 = vld [vmem:[#allocation2 + $0x48] sm:$0xff]
    %v55 = vld [vmem:[%s1] sm:$0xff]
    %v56 = vld [vmem:[%s1 + $0x8] sm:$0xff]
    %v57 = vld [vmem:[#allocation2] sm:$0x1]
    %59 = vset.pattern.permute.xlu0 0
    %60 = vperm.xlu0 %59, %v55
    %v61 = vpop.permute.xlu0 %60
    %64 = vset.pattern.permute.xlu0 0
    %65 = vperm.xlu0 %64, %v56
    %v66 = vpop.permute.xlu0 %65
    %v68 = vlaneseq
    %v69 = vshrl.u32 %v68, 7
    %v70 = vsub.s32 0, %v69
    %v71 = vrot.slane %v57, %v70
    %v72 = vmul.f32 %v61, %v71
    %v73 = vmul.f32 %v66, %v71
    %v74 = vld [vmem:[#allocation2 + $0x8] sm:$0x1]
    %v75 = vand.u32 2147483647, %v72
    %vm76 = vcmp.le.f32.partialorder %v75, 0.7853982
    %vm77 = vcmp.lt.s32.totalorder %v72, 0
    %v78 = vand.u32 %v72, 2139095040
    %v79 = vshrl.u32 %v78, 23
    %v80 = vsub.s32 %v79, 127
    %v81 = vand.u32 2147483647, %v72
    %v82 = vand.u32 %v81, 8388607
    %v83 = vor.u32 %v82, 8388608
    %v84 = vsub.s32 0, %v83
    %v85 = vadd.s32 %v80, 1
    %vm86 = vcmp.gt.s32.totalorder %v85, 0
    %v87 = vsel %vm86, %v85, 0
    %v88 = vshrl.u32 %v87, 5
    %v89 = vand.u32 %v87, 31
    %v90 = vsub.s32 32, %v89
    %v91 = vshrl.u32 683565275, %v90
    %v92 = vshll.u32 683565275, %v89
    %v93 = vshrl.u32 2475754826, %v90
    %v94 = vor.u32 %v92, %v93
    %v95 = vshll.u32 2475754826, %v89
    %v96 = vshrl.u32 2131351028, %v90
    %v97 = vor.u32 %v95, %v96
    %v98 = vshll.u32 2131351028, %v89
    %v99 = vshrl.u32 2102212464, %v90
    %v100 = vor.u32 %v98, %v99
    %v101 = vshll.u32 2102212464, %v89
    %v102 = vshrl.u32 920167782, %v90
    %v103 = vor.u32 %v101, %v102
    %v104 = vshll.u32 920167782, %v89
    %v105 = vshrl.u32 1326507024, %v90
    %v106 = vor.u32 %v104, %v105
    %vm107 = vcmp.lt.s32.totalorder %v88, 1
    %vm108 = vcmp.lt.s32.totalorder %v88, 2
    %vm109 = vcmp.lt.s32.totalorder %v88, 3
    %vm110 = vcmp.lt.s32.totalorder %v88, 4
    %v111 = vsel %vm107, %v91, %v94
    %v112 = vsel %vm110, %v100, 2102212464
    %v113 = vsel %vm109, %v97, %v112
    %v114 = vsel %vm108, %v111, %v113
    %v115 = vsel %vm107, %v94, %v97
    %v116 = vsel %vm110, %v103, 920167782
    %v117 = vsel %vm109, %v100, %v116
    %v118 = vsel %vm108, %v115, %v117
    %v119 = vsel %vm107, %v97, %v100
    %v120 = vsel %vm110, %v106, 1326507024
    %v121 = vsel %vm109, %v103, %v120
    %v122 = vsel %vm108, %v119, %v121
    %v123 = vshll.u32 %v83, 8
    %v124 = vmul.u32.u64.compose %v123, %v122
    %v125 = vextract.low.u32 %v124
    %v126 = vextract.high.u32 %v124
    %v127 = vmul.u32.u64.compose %v123, %v118
    %v128 = vextract.low.u32 %v127
    %v129 = vextract.high.u32 %v127
    %v130 = vmul.u32 %v123, %v114
    %v131 = vadd.s32 %v126, %v128
    %vm132 = vc.u32 %v126, %v128
    %v133 = vadd.s32 %v129, 1
    %v134 = vsel %vm132, %v133, %v129
    %v135 = vadd.s32 %v130, %v134
    %v136 = vadd.s32 %v135, 536870912
    %v137 = vshrl.u32 %v136, 30
    %v138 = vshll.u32 %v137, 30
    %v139 = vsub.s32 %v135, %v138
    %vm140 = vcmp.lt.s32.totalorder %v139, 0
    %v141 = vsub.s32 0, %v139
    %v142 = vsel %vm140, %v141, %v139
    %v143 = vclz %v142
    %v144 = vsub.s32 %v143, 2
    %vm145 = vcmp.gt.s32.totalorder 0, %v144
    %v146 = vsel %vm145, 0, %v144
    %v147 = vsub.s32 32, %v146
    %v148 = vshll.u32 %v139, %v146
    %v149 = vshrl.u32 %v131, %v147
    %v150 = vor.u32 %v148, %v149
    %v151 = vsub.s32 4294967266, %v146
    %v152 = vadd.s32 %v151, 127
    %v153 = vshll.u32 %v152, 23
    %v154 = vor.u32 4788187, %v153
    %v155 = vand.u32 2147483647, %v154
    %v157 = vcvt.s32.f32 %v150
    %v158 = vmul.f32 %v157, %v155
    %v159 = vxor.u32 %v158, 2147483648
    %v160 = vsel %vm77, %v159, %v158
    %v161 = vsub.s32 4, %v137
    %v162 = vsel %vm77, %v161, %v137
    %v163 = vsel %vm76, %v72, %v160
    %v164 = vsel %vm76, 0, %v162
    %v165 = vcosq.f32.pop %v163
    %v166 = vsinq.f32.pop %v163
    %vm167 = vweird.f32 %v72
    %v168 = vadd.s32 %v164, 3
    %v169 = vand.u32 %v168, 3
    %vm170 = vcmp.lt.s32.totalorder %v169, 2
    %vm171 = vcmp.eq.s32.totalorder %v169, 0
    %v172 = vxor.u32 %v166, 2147483648
    %v173 = vsel %vm171, %v165, %v172
    %vm174 = vcmp.eq.s32.totalorder %v169, 2
    %v175 = vxor.u32 %v165, 2147483648
    %v176 = vsel %vm174, %v175, %v166
    %v177 = vsel %vm170, %v173, %v176
    %v178 = vsel %vm167, nan, %v177
    %v179 = vand.u32 2147483647, %v73
    %vm180 = vcmp.le.f32.partialorder %v179, 0.7853982
    %vm181 = vcmp.lt.s32.totalorder %v73, 0
    %v182 = vand.u32 %v73, 2139095040
    %v183 = vshrl.u32 %v182, 23
    %v184 = vsub.s32 %v183, 127
    %v185 = vand.u32 2147483647, %v73
    %v186 = vand.u32 %v185, 8388607
    %v187 = vor.u32 %v186, 8388608
    %v188 = vsub.s32 0, %v187
    %v189 = vadd.s32 %v184, 1
    %vm190 = vcmp.gt.s32.totalorder %v189, 0
    %v191 = vsel %vm190, %v189, 0
    %v192 = vshrl.u32 %v191, 5
    %v193 = vand.u32 %v191, 31
    %v194 = vsub.s32 32, %v193
    %v195 = vshrl.u32 683565275, %v194
    %v196 = vshll.u32 683565275, %v193
    %v197 = vshrl.u32 2475754826, %v194
    %v198 = vor.u32 %v196, %v197
    %v199 = vshll.u32 2475754826, %v193
    %v200 = vshrl.u32 2131351028, %v194
    %v201 = vor.u32 %v199, %v200
    %v202 = vshll.u32 2131351028, %v193
    %v203 = vshrl.u32 2102212464, %v194
    %v204 = vor.u32 %v202, %v203
    %v205 = vshll.u32 2102212464, %v193
    %v206 = vshrl.u32 920167782, %v194
    %v207 = vor.u32 %v205, %v206
    %v208 = vshll.u32 920167782, %v193
    %v209 = vshrl.u32 1326507024, %v194
    %v210 = vor.u32 %v208, %v209
    %vm211 = vcmp.lt.s32.totalorder %v192, 1
    %vm212 = vcmp.lt.s32.totalorder %v192, 2
    %vm213 = vcmp.lt.s32.totalorder %v192, 3
    %vm214 = vcmp.lt.s32.totalorder %v192, 4
    %v215 = vsel %vm211, %v195, %v198
    %v216 = vsel %vm214, %v204, 2102212464
    %v217 = vsel %vm213, %v201, %v216
    %v218 = vsel %vm212, %v215, %v217
    %v219 = vsel %vm211, %v198, %v201
    %v220 = vsel %vm214, %v207, 920167782
    %v221 = vsel %vm213, %v204, %v220
    %v222 = vsel %vm212, %v219, %v221
    %v223 = vsel %vm211, %v201, %v204
    %v224 = vsel %vm214, %v210, 1326507024
    %v225 = vsel %vm213, %v207, %v224
    %v226 = vsel %vm212, %v223, %v225
    %v227 = vshll.u32 %v187, 8
    %v228 = vmul.u32.u64.compose %v227, %v226
    %v229 = vextract.low.u32 %v228
    %v230 = vextract.high.u32 %v228
    %v231 = vmul.u32.u64.compose %v227, %v222
    %v232 = vextract.low.u32 %v231
    %v233 = vextract.high.u32 %v231
    %v234 = vmul.u32 %v227, %v218
    %v235 = vadd.s32 %v230, %v232
    %vm236 = vc.u32 %v230, %v232
    %v237 = vadd.s32 %v233, 1
    %v238 = vsel %vm236, %v237, %v233
    %v239 = vadd.s32 %v234, %v238
    %v240 = vadd.s32 %v239, 536870912
    %v241 = vshrl.u32 %v240, 30
    %v242 = vshll.u32 %v241, 30
    %v243 = vsub.s32 %v239, %v242
    %vm244 = vcmp.lt.s32.totalorder %v243, 0
    %v245 = vsub.s32 0, %v243
    %v246 = vsel %vm244, %v245, %v243
    %v247 = vclz %v246
    %v248 = vsub.s32 %v247, 2
    %vm249 = vcmp.gt.s32.totalorder 0, %v248
    %v250 = vsel %vm249, 0, %v248
    %v251 = vsub.s32 32, %v250
    %v252 = vshll.u32 %v243, %v250
    %v253 = vshrl.u32 %v235, %v251
    %v254 = vor.u32 %v252, %v253
    %v255 = vsub.s32 4294967266, %v250
    %v256 = vadd.s32 %v255, 127
    %v257 = vshll.u32 %v256, 23
    %v258 = vor.u32 4788187, %v257
    %v259 = vand.u32 2147483647, %v258
    %v261 = vcvt.s32.f32 %v254
    %v262 = vmul.f32 %v261, %v259
    %v263 = vxor.u32 %v262, 2147483648
    %v264 = vsel %vm181, %v263, %v262
    %v265 = vsub.s32 4, %v241
    %v266 = vsel %vm181, %v265, %v241
    %v267 = vsel %vm180, %v73, %v264
    %v268 = vsel %vm180, 0, %v266
    %v269 = vcosq.f32.pop %v267
    %v270 = vsinq.f32.pop %v267
    %vm271 = vweird.f32 %v73
    %v272 = vadd.s32 %v268, 3
    %v273 = vand.u32 %v272, 3
    %vm274 = vcmp.lt.s32.totalorder %v273, 2
    %vm275 = vcmp.eq.s32.totalorder %v273, 0
    %v276 = vxor.u32 %v270, 2147483648
    %v277 = vsel %vm275, %v269, %v276
    %vm278 = vcmp.eq.s32.totalorder %v273, 2
    %v279 = vxor.u32 %v269, 2147483648
    %v280 = vsel %vm278, %v279, %v270
    %v281 = vsel %vm274, %v277, %v280
    %v282 = vsel %vm271, nan, %v281
    %v283 = vlaneseq
    %v284 = vshrl.u32 %v283, 7
    %v285 = vsub.s32 0, %v284
    %v286 = vrot.slane %v74, %v285
    %v287 = vmul.f32 %v286, %v178
    %v288 = vmul.f32 %v286, %v282
    %vm289 = vcmask 523264
    %v291 = vsel %vm289, %v45, 0
    %v294 = vsel %vm289, %v46, 0
    %296 = vmatprep.subr.mxu0 0.0
    %297 = vmatpush1.msra.mxu0 %v47
    %298 = vmatprep.subr.mxu0 0.0
    %299 = vmatpush1.msra.mxu0 %v48
    %300 = vmatprep.subr.mxu0 0.0
    %301 = vmatpush1.msra.mxu0 %v49
    %302 = vmatprep.subr.mxu0 0.0
    %303 = vmatpush1.msra.mxu0 %v50
    %304 = vmatprep.subr.mxu0 0.0
    %305 = vmatpush1.msra.mxu0 %v51
    %306 = vmatprep.subr.mxu0 0.0
    %307 = vmatpush1.msra.mxu0 %v52
    %308 = vmatprep.subr.mxu0 0.0
    %309 = vmatpush1.msra.mxu0 %v53
    %310 = vmatprep.subr.mxu0 0.0
    %311 = vmatpush1.msra.mxu0 %v54
    %312 = vmatprep.subr.mxu0 0.0
    %313 = vmatpush1.msra.mxu0 0.0
    %314 = vmatprep.subr.mxu0 0.0
    %315 = vmatpush1.msra.mxu0 0.0
    %316 = vmatprep.subr.mxu0 0.0
    %317 = vmatpush1.msra.mxu0 0.0
    %318 = vmatprep.subr.mxu0 0.0
    %319 = vmatpush1.msra.mxu0 0.0
    %320 = vmatprep.subr.mxu0 0.0
    %321 = vmatpush1.msra.mxu0 0.0
    %322 = vmatprep.subr.mxu0 0.0
    %323 = vmatpush1.msra.mxu0 0.0
    %324 = vmatprep.subr.mxu0 0.0
    %325 = vmatpush1.msra.mxu0 0.0
    %326 = vmatprep.subr.mxu0 0.0
    %327 = vmatpush1.msra.mxu0 0.0
    %328 = vmatprep.subr.mxu0 0.0
    %329 = vmatpush1.msra.mxu0 0.0
    %330 = vmatprep.subr.mxu0 0.0
    %331 = vmatpush1.msra.mxu0 0.0
    %332 = vmatprep.subr.mxu0 0.0
    %333 = vmatpush1.msra.mxu0 0.0
    %334 = vmatprep.subr.mxu0 0.0
    %335 = vmatpush1.msra.mxu0 0.0
    %336 = vmatprep.subr.mxu0 0.0
    %337 = vmatpush1.msra.mxu0 0.0
    %338 = vmatprep.subr.mxu0 0.0
    %339 = vmatpush1.msra.mxu0 0.0
    %340 = vmatprep.subr.mxu0 0.0
    %341 = vmatpush1.msra.mxu0 0.0
    %342 = vmatprep.subr.mxu0 0.0
    %343 = vmatpush1.msra.mxu0 0.0
    %344 = vmatprep.subr.mxu0 0.0
    %345 = vmatpush1.msra.mxu0 0.0
    %346 = vmatprep.subr.mxu0 0.0
    %347 = vmatpush1.msra.mxu0 0.0
    %348 = vmatprep.subr.mxu0 0.0
    %349 = vmatpush1.msra.mxu0 0.0
    %350 = vmatprep.subr.mxu0 0.0
    %351 = vmatpush1.msra.mxu0 0.0
    %352 = vmatprep.subr.mxu0 0.0
    %353 = vmatpush1.msra.mxu0 0.0
    %354 = vmatprep.subr.mxu0 0.0
    %355 = vmatpush1.msra.mxu0 0.0
    %356 = vmatprep.subr.mxu0 0.0
    %357 = vmatpush1.msra.mxu0 0.0
    %358 = vmatprep.subr.mxu0 0.0
    %359 = vmatpush1.msra.mxu0 0.0
    %360 = vmatprep.mubr.f32.mxu0 0.0
    %361 = vmatmul.mubr.f32.gmra.mrb[0].mxu0 %v291
    %v362 = vpop.f32.mrb[0].mxu0
    %v363 = vadd.f32 %v287, %v362
    %v364 = vpop.f32.mrb[0].mxu0
    %365 = vmatprep.mubr.f32.mxu0 0.0
    %366 = vmatmul.mubr.f32.gmra.mrb[0].mxu0 %v294
    %v367 = vpop.f32.mrb[0].mxu0
    %v368 = vadd.f32 %v288, %v367
    %v369 = vpop.f32.mrb[0].mxu0
    %370 = vdwg.mxu0
    %v371 = vsub.f32 1.0, %v74
    %v372 = vand.u32 2147483647, %v72
    %vm373 = vcmp.le.f32.partialorder %v372, 0.7853982
    %vm374 = vcmp.lt.s32.totalorder %v72, 0
    %v375 = vand.u32 %v72, 2139095040
    %v376 = vshrl.u32 %v375, 23
    %v377 = vsub.s32 %v376, 127
    %v378 = vand.u32 2147483647, %v72
    %v379 = vand.u32 %v378, 8388607
    %v380 = vor.u32 %v379, 8388608
    %v381 = vsub.s32 0, %v380
    %v382 = vadd.s32 %v377, 1
    %vm383 = vcmp.gt.s32.totalorder %v382, 0
    %v384 = vsel %vm383, %v382, 0
    %v385 = vshrl.u32 %v384, 5
    %v386 = vand.u32 %v384, 31
    %v387 = vsub.s32 32, %v386
    %v388 = vshrl.u32 683565275, %v387
    %v389 = vshll.u32 683565275, %v386
    %v390 = vshrl.u32 2475754826, %v387
    %v391 = vor.u32 %v389, %v390
    %v392 = vshll.u32 2475754826, %v386
    %v393 = vshrl.u32 2131351028, %v387
    %v394 = vor.u32 %v392, %v393
    %v395 = vshll.u32 2131351028, %v386
    %v396 = vshrl.u32 2102212464, %v387
    %v397 = vor.u32 %v395, %v396
    %v398 = vshll.u32 2102212464, %v386
    %v399 = vshrl.u32 920167782, %v387
    %v400 = vor.u32 %v398, %v399
    %v401 = vshll.u32 920167782, %v386
    %v402 = vshrl.u32 1326507024, %v387
    %v403 = vor.u32 %v401, %v402
    %vm404 = vcmp.lt.s32.totalorder %v385, 1
    %vm405 = vcmp.lt.s32.totalorder %v385, 2
    %vm406 = vcmp.lt.s32.totalorder %v385, 3
    %vm407 = vcmp.lt.s32.totalorder %v385, 4
    %v408 = vsel %vm404, %v388, %v391
    %v409 = vsel %vm407, %v397, 2102212464
    %v410 = vsel %vm406, %v394, %v409
    %v411 = vsel %vm405, %v408, %v410
    %v412 = vsel %vm404, %v391, %v394
    %v413 = vsel %vm407, %v400, 920167782
    %v414 = vsel %vm406, %v397, %v413
    %v415 = vsel %vm405, %v412, %v414
    %v416 = vsel %vm404, %v394, %v397
    %v417 = vsel %vm407, %v403, 1326507024
    %v418 = vsel %vm406, %v400, %v417
    %v419 = vsel %vm405, %v416, %v418
    %v420 = vshll.u32 %v380, 8
    %v421 = vmul.u32.u64.compose %v420, %v419
    %v422 = vextract.low.u32 %v421
    %v423 = vextract.high.u32 %v421
    %v424 = vmul.u32.u64.compose %v420, %v415
    %v425 = vextract.low.u32 %v424
    %v426 = vextract.high.u32 %v424
    %v427 = vmul.u32 %v420, %v411
    %v428 = vadd.s32 %v423, %v425
    %vm429 = vc.u32 %v423, %v425
    %v430 = vadd.s32 %v426, 1
    %v431 = vsel %vm429, %v430, %v426
    %v432 = vadd.s32 %v427, %v431
    %v433 = vadd.s32 %v432, 536870912
    %v434 = vshrl.u32 %v433, 30
    %v435 = vshll.u32 %v434, 30
    %v436 = vsub.s32 %v432, %v435
    %vm437 = vcmp.lt.s32.totalorder %v436, 0
    %v438 = vsub.s32 0, %v436
    %v439 = vsel %vm437, %v438, %v436
    %v440 = vclz %v439
    %v441 = vsub.s32 %v440, 2
    %vm442 = vcmp.gt.s32.totalorder 0, %v441
    %v443 = vsel %vm442, 0, %v441
    %v444 = vsub.s32 32, %v443
    %v445 = vshll.u32 %v436, %v443
    %v446 = vshrl.u32 %v428, %v444
    %v447 = vor.u32 %v445, %v446
    %v448 = vsub.s32 4294967266, %v443
    %v449 = vadd.s32 %v448, 127
    %v450 = vshll.u32 %v449, 23
    %v451 = vor.u32 4788187, %v450
    %v452 = vand.u32 2147483647, %v451
    %v454 = vcvt.s32.f32 %v447
    %v455 = vmul.f32 %v454, %v452
    %v456 = vxor.u32 %v455, 2147483648
    %v457 = vsel %vm374, %v456, %v455
    %v458 = vsub.s32 4, %v434
    %v459 = vsel %vm374, %v458, %v434
    %v460 = vsel %vm373, %v72, %v457
    %v461 = vsel %vm373, 0, %v459
    %v462 = vcosq.f32.pop %v460
    %v463 = vsinq.f32.pop %v460
    %vm464 = vweird.f32 %v72
    %v465 = vand.u32 %v461, 3
    %vm466 = vcmp.lt.s32.totalorder %v465, 2
    %vm467 = vcmp.eq.s32.totalorder %v465, 0
    %v468 = vxor.u32 %v463, 2147483648
    %v469 = vsel %vm467, %v462, %v468
    %vm470 = vcmp.eq.s32.totalorder %v465, 2
    %v471 = vxor.u32 %v462, 2147483648
    %v472 = vsel %vm470, %v471, %v463
    %v473 = vsel %vm466, %v469, %v472
    %v474 = vsel %vm464, nan, %v473
    %v475 = vand.u32 2147483647, %v73
    %vm476 = vcmp.le.f32.partialorder %v475, 0.7853982
    %vm477 = vcmp.lt.s32.totalorder %v73, 0
    %v478 = vand.u32 %v73, 2139095040
    %v479 = vshrl.u32 %v478, 23
    %v480 = vsub.s32 %v479, 127
    %v481 = vand.u32 2147483647, %v73
    %v482 = vand.u32 %v481, 8388607
    %v483 = vor.u32 %v482, 8388608
    %v484 = vsub.s32 0, %v483
    %v485 = vadd.s32 %v480, 1
    %vm486 = vcmp.gt.s32.totalorder %v485, 0
    %v487 = vsel %vm486, %v485, 0
    %v488 = vshrl.u32 %v487, 5
    %v489 = vand.u32 %v487, 31
    %v490 = vsub.s32 32, %v489
    %v491 = vshrl.u32 683565275, %v490
    %v492 = vshll.u32 683565275, %v489
    %v493 = vshrl.u32 2475754826, %v490
    %v494 = vor.u32 %v492, %v493
    %v495 = vshll.u32 2475754826, %v489
    %v496 = vshrl.u32 2131351028, %v490
    %v497 = vor.u32 %v495, %v496
    %v498 = vshll.u32 2131351028, %v489
    %v499 = vshrl.u32 2102212464, %v490
    %v500 = vor.u32 %v498, %v499
    %v501 = vshll.u32 2102212464, %v489
    %v502 = vshrl.u32 920167782, %v490
    %v503 = vor.u32 %v501, %v502
    %v504 = vshll.u32 920167782, %v489
    %v505 = vshrl.u32 1326507024, %v490
    %v506 = vor.u32 %v504, %v505
    %vm507 = vcmp.lt.s32.totalorder %v488, 1
    %vm508 = vcmp.lt.s32.totalorder %v488, 2
    %vm509 = vcmp.lt.s32.totalorder %v488, 3
    %vm510 = vcmp.lt.s32.totalorder %v488, 4
    %v511 = vsel %vm507, %v491, %v494
    %v512 = vsel %vm510, %v500, 2102212464
    %v513 = vsel %vm509, %v497, %v512
    %v514 = vsel %vm508, %v511, %v513
    %v515 = vsel %vm507, %v494, %v497
    %v516 = vsel %vm510, %v503, 920167782
    %v517 = vsel %vm509, %v500, %v516
    %v518 = vsel %vm508, %v515, %v517
    %v519 = vsel %vm507, %v497, %v500
    %v520 = vsel %vm510, %v506, 1326507024
    %v521 = vsel %vm509, %v503, %v520
    %v522 = vsel %vm508, %v519, %v521
    %v523 = vshll.u32 %v483, 8
    %v524 = vmul.u32.u64.compose %v523, %v522
    %v525 = vextract.low.u32 %v524
    %v526 = vextract.high.u32 %v524
    %v527 = vmul.u32.u64.compose %v523, %v518
    %v528 = vextract.low.u32 %v527
    %v529 = vextract.high.u32 %v527
    %v530 = vmul.u32 %v523, %v514
    %v531 = vadd.s32 %v526, %v528
    %vm532 = vc.u32 %v526, %v528
    %v533 = vadd.s32 %v529, 1
    %v534 = vsel %vm532, %v533, %v529
    %v535 = vadd.s32 %v530, %v534
    %v536 = vadd.s32 %v535, 536870912
    %v537 = vshrl.u32 %v536, 30
    %v538 = vshll.u32 %v537, 30
    %v539 = vsub.s32 %v535, %v538
    %vm540 = vcmp.lt.s32.totalorder %v539, 0
    %v541 = vsub.s32 0, %v539
    %v542 = vsel %vm540, %v541, %v539
    %v543 = vclz %v542
    %v544 = vsub.s32 %v543, 2
    %vm545 = vcmp.gt.s32.totalorder 0, %v544
    %v546 = vsel %vm545, 0, %v544
    %v547 = vsub.s32 32, %v546
    %v548 = vshll.u32 %v539, %v546
    %v549 = vshrl.u32 %v531, %v547
    %v550 = vor.u32 %v548, %v549
    %v551 = vsub.s32 4294967266, %v546
    %v552 = vadd.s32 %v551, 127
    %v553 = vshll.u32 %v552, 23
    %v554 = vor.u32 4788187, %v553
    %v555 = vand.u32 2147483647, %v554
    %v557 = vcvt.s32.f32 %v550
    %v558 = vmul.f32 %v557, %v555
    %v559 = vxor.u32 %v558, 2147483648
    %v560 = vsel %vm477, %v559, %v558
    %v561 = vsub.s32 4, %v537
    %v562 = vsel %vm477, %v561, %v537
    %v563 = vsel %vm476, %v73, %v560
    %v564 = vsel %vm476, 0, %v562
    %v565 = vcosq.f32.pop %v563
    %v566 = vsinq.f32.pop %v563
    %vm567 = vweird.f32 %v73
    %v568 = vand.u32 %v564, 3
    %vm569 = vcmp.lt.s32.totalorder %v568, 2
    %vm570 = vcmp.eq.s32.totalorder %v568, 0
    %v571 = vxor.u32 %v566, 2147483648
    %v572 = vsel %vm570, %v565, %v571
    %vm573 = vcmp.eq.s32.totalorder %v568, 2
    %v574 = vxor.u32 %v565, 2147483648
    %v575 = vsel %vm573, %v574, %v566
    %v576 = vsel %vm569, %v572, %v575
    %v577 = vsel %vm567, nan, %v576
    %v578 = vlaneseq
    %v579 = vshrl.u32 %v578, 7
    %v580 = vsub.s32 0, %v579
    %v581 = vrot.slane %v371, %v580
    %v582 = vmul.f32 %v581, %v474
    %v583 = vmul.f32 %v581, %v577
    %v584 = vadd.f32 %v363, %v582
    %v585 = vadd.f32 %v368, %v583
    %v586 = vld [vmem:[%s2] sm:$0xff]
    %v587 = vld [vmem:[%s2 + $0x8] sm:$0xff]
    %v588 = vld [vmem:[#allocation2 + $0x50] sm:$0xff]
    %v589 = vld [vmem:[#allocation2 + $0x58] sm:$0xff]
    %vm590 = vcmask 130048
    %v592 = vsel %vm590, %v586, 0
    %v595 = vsel %vm590, %v587, 0
    %597 = vmatprep.subr.mxu0 0.0
    %598 = vmatpush1.msra.mxu0 %v588
    %599 = vmatprep.subr.mxu0 0.0
    %600 = vmatpush1.msra.mxu0 %v589
    %601 = vmatprep.subr.mxu0 0.0
    %602 = vmatpush1.msra.mxu0 0.0
    %603 = vmatprep.subr.mxu0 0.0
    %604 = vmatpush1.msra.mxu0 0.0
    %605 = vmatprep.subr.mxu0 0.0
    %606 = vmatpush1.msra.mxu0 0.0
    %607 = vmatprep.subr.mxu0 0.0
    %608 = vmatpush1.msra.mxu0 0.0
    %609 = vmatprep.subr.mxu0 0.0
    %610 = vmatpush1.msra.mxu0 0.0
    %611 = vmatprep.subr.mxu0 0.0
    %612 = vmatpush1.msra.mxu0 0.0
    %613 = vmatprep.subr.mxu0 0.0
    %614 = vmatpush1.msra.mxu0 0.0
    %615 = vmatprep.subr.mxu0 0.0
    %616 = vmatpush1.msra.mxu0 0.0
    %617 = vmatprep.subr.mxu0 0.0
    %618 = vmatpush1.msra.mxu0 0.0
    %619 = vmatprep.subr.mxu0 0.0
    %620 = vmatpush1.msra.mxu0 0.0
    %621 = vmatprep.subr.mxu0 0.0
    %622 = vmatpush1.msra.mxu0 0.0
    %623 = vmatprep.subr.mxu0 0.0
    %624 = vmatpush1.msra.mxu0 0.0
    %625 = vmatprep.subr.mxu0 0.0
    %626 = vmatpush1.msra.mxu0 0.0
    %627 = vmatprep.subr.mxu0 0.0
    %628 = vmatpush1.msra.mxu0 0.0
    %629 = vmatprep.subr.mxu0 0.0
    %630 = vmatpush1.msra.mxu0 0.0
    %631 = vmatprep.subr.mxu0 0.0
    %632 = vmatpush1.msra.mxu0 0.0
    %633 = vmatprep.subr.mxu0 0.0
    %634 = vmatpush1.msra.mxu0 0.0
    %635 = vmatprep.subr.mxu0 0.0
    %636 = vmatpush1.msra.mxu0 0.0
    %637 = vmatprep.subr.mxu0 0.0
    %638 = vmatpush1.msra.mxu0 0.0
    %639 = vmatprep.subr.mxu0 0.0
    %640 = vmatpush1.msra.mxu0 0.0
    %641 = vmatprep.subr.mxu0 0.0
    %642 = vmatpush1.msra.mxu0 0.0
    %643 = vmatprep.subr.mxu0 0.0
    %644 = vmatpush1.msra.mxu0 0.0
    %645 = vmatprep.subr.mxu0 0.0
    %646 = vmatpush1.msra.mxu0 0.0
    %647 = vmatprep.subr.mxu0 0.0
    %648 = vmatpush1.msra.mxu0 0.0
    %649 = vmatprep.subr.mxu0 0.0
    %650 = vmatpush1.msra.mxu0 0.0
    %651 = vmatprep.subr.mxu0 0.0
    %652 = vmatpush1.msra.mxu0 0.0
    %653 = vmatprep.subr.mxu0 0.0
    %654 = vmatpush1.msra.mxu0 0.0
    %655 = vmatprep.subr.mxu0 0.0
    %656 = vmatpush1.msra.mxu0 0.0
    %657 = vmatprep.subr.mxu0 0.0
    %658 = vmatpush1.msra.mxu0 0.0
    %659 = vmatprep.subr.mxu0 0.0
    %660 = vmatpush1.msra.mxu0 0.0
    %661 = vmatprep.mubr.f32.mxu0 0.0
    %662 = vmatmul.mubr.f32.gmra.mrb[0].mxu0 %v592
    %v663 = vpop.f32.mrb[0].mxu0
    %v664 = vadd.f32 0.0, %v663
    %v665 = vpop.f32.mrb[0].mxu0
    %666 = vmatprep.mubr.f32.mxu0 0.0
    %667 = vmatmul.mubr.f32.gmra.mrb[0].mxu0 %v595
    %v668 = vpop.f32.mrb[0].mxu0
    %v669 = vadd.f32 0.0, %v668
    %v670 = vpop.f32.mrb[0].mxu0
    %671 = vdwg.mxu0
    %v672 = vadd.f32 %v584, %v664
    %v673 = vadd.f32 %v585, %v669
    %v674 = vld [vmem:[#allocation2 + $0x60] sm:$0x1]
    %v675 = vlaneseq
    %v676 = vshrl.u32 %v675, 7
    %v677 = vsub.s32 0, %v676
    %v678 = vrot.slane %v674, %v677
    %v679 = vadd.f32 %v672, %v678
    %v680 = vadd.f32 %v673, %v678
    %v681 = vld [vmem:[#allocation2 + $0x68] sm:$0xff]
    %v682 = vld [vmem:[#allocation2 + $0x70] sm:$0xff]
    %v683 = vld [vmem:[#allocation2 + $0x78] sm:$0x1]
    %v684 = vld [vmem:[#allocation2 + $0x80] sm:$0x1]
    %vm685 = vcmask 261120
    %v686 = vsel %vm685, %v679, 0.0
    %687 = vadd.xlane.f32.xlu0 %v686
    %v688 = vpop.xlane.xlu0 %687
    %v689 = vsel %vm685, %v680, 0.0
    %690 = vadd.xlane.f32.xlu0 %v689
    %v691 = vpop.xlane.xlu0 %690
    %v692 = vrcp.pop 32.0
    %v693 = vmul.f32 %v688, %v692
    %v694 = vmul.f32 %v691, %v692
    %v695 = vsub.f32 %v679, %v693
    %v696 = vsub.f32 %v680, %v694
    %v697 = vmul.f32 %v695, %v695
    %v698 = vmul.f32 %v696, %v696
    %v699 = vsel %vm685, %v697, 0.0
    %700 = vadd.xlane.f32.xlu0 %v699
    %v701 = vpop.xlane.xlu0 %700
    %v702 = vsel %vm685, %v698, 0.0
    %703 = vadd.xlane.f32.xlu0 %v702
    %v704 = vpop.xlane.xlu0 %703
    %v705 = vmul.f32 %v701, %v692
    %v706 = vmul.f32 %v704, %v692
    %v707 = vadd.f32 %v705, 1e-05
    %v708 = vadd.f32 %v706, 1e-05
    %v709 = vrsqrt.pop %v707
    %v710 = vrsqrt.pop %v708
    %v711 = vmul.f32 %v695, %v709
    %v712 = vmul.f32 %v696, %v710
    %v713 = vlaneseq
    %v714 = vshrl.u32 %v713, 7
    %v715 = vsub.s32 0, %v714
    %v716 = vrot.slane %v683, %v715
    %v717 = vmul.f32 %v711, %v716
    %v718 = vmul.f32 %v712, %v716
    %v719 = vlaneseq
    %v720 = vshrl.u32 %v719, 7
    %v721 = vsub.s32 0, %v720
    %v722 = vrot.slane %v684, %v721
    %v723 = vadd.f32 %v717, %v722
    %v724 = vadd.f32 %v718, %v722
    %v725 = vld [vmem:[#allocation2 + $0x88] sm:$0xff]
    %v726 = vld [vmem:[#allocation2 + $0x90] sm:$0xff]
    %v727 = vld [vmem:[#allocation2 + $0x98] sm:$0xff]
    %v728 = vld [vmem:[#allocation2 + $0xa0] sm:$0xff]
    %v729 = vld [vmem:[#allocation2 + $0xa8] sm:$0x1]
    %v730 = vlaneseq
    %v731 = vshrl.u32 %v730, 7
    %v732 = vsub.s32 0, %v731
    %v733 = vrot.slane %v729, %v732
    %v735 = vsel %vm685, %v723, 0
    %v738 = vsel %vm685, %v724, 0
    %740 = vmatprep.subr.mxu0 0.0
    %741 = vmatpush1.msra.mxu0 %v725
    %742 = vmatprep.subr.mxu0 0.0
    %743 = vmatpush1.msra.mxu0 %v726
    %744 = vmatprep.subr.mxu0 0.0
    %745 = vmatpush1.msra.mxu0 %v727
    %746 = vmatprep.subr.mxu0 0.0
    %747 = vmatpush1.msra.mxu0 %v728
    %748 = vmatprep.subr.mxu0 0.0
    %749 = vmatpush1.msra.mxu0 0.0
    %750 = vmatprep.subr.mxu0 0.0
    %751 = vmatpush1.msra.mxu0 0.0
    %752 = vmatprep.subr.mxu0 0.0
    %753 = vmatpush1.msra.mxu0 0.0
    %754 = vmatprep.subr.mxu0 0.0
    %755 = vmatpush1.msra.mxu0 0.0
    %756 = vmatprep.subr.mxu0 0.0
    %757 = vmatpush1.msra.mxu0 0.0
    %758 = vmatprep.subr.mxu0 0.0
    %759 = vmatpush1.msra.mxu0 0.0
    %760 = vmatprep.subr.mxu0 0.0
    %761 = vmatpush1.msra.mxu0 0.0
    %762 = vmatprep.subr.mxu0 0.0
    %763 = vmatpush1.msra.mxu0 0.0
    %764 = vmatprep.subr.mxu0 0.0
    %765 = vmatpush1.msra.mxu0 0.0
    %766 = vmatprep.subr.mxu0 0.0
    %767 = vmatpush1.msra.mxu0 0.0
    %768 = vmatprep.subr.mxu0 0.0
    %769 = vmatpush1.msra.mxu0 0.0
    %770 = vmatprep.subr.mxu0 0.0
    %771 = vmatpush1.msra.mxu0 0.0
    %772 = vmatprep.subr.mxu0 0.0
    %773 = vmatpush1.msra.mxu0 0.0
    %774 = vmatprep.subr.mxu0 0.0
    %775 = vmatpush1.msra.mxu0 0.0
    %776 = vmatprep.subr.mxu0 0.0
    %777 = vmatpush1.msra.mxu0 0.0
    %778 = vmatprep.subr.mxu0 0.0
    %779 = vmatpush1.msra.mxu0 0.0
    %780 = vmatprep.subr.mxu0 0.0
    %781 = vmatpush1.msra.mxu0 0.0
    %782 = vmatprep.subr.mxu0 0.0
    %783 = vmatpush1.msra.mxu0 0.0
    %784 = vmatprep.subr.mxu0 0.0
    %785 = vmatpush1.msra.mxu0 0.0
    %786 = vmatprep.subr.mxu0 0.0
    %787 = vmatpush1.msra.mxu0 0.0
    %788 = vmatprep.subr.mxu0 0.0
    %789 = vmatpush1.msra.mxu0 0.0
    %790 = vmatprep.subr.mxu0 0.0
    %791 = vmatpush1.msra.mxu0 0.0
    %792 = vmatprep.subr.mxu0 0.0
    %793 = vmatpush1.msra.mxu0 0.0
    %794 = vmatprep.subr.mxu0 0.0
    %795 = vmatpush1.msra.mxu0 0.0
    %796 = vmatprep.subr.mxu0 0.0
    %797 = vmatpush1.msra.mxu0 0.0
    %798 = vmatprep.subr.mxu0 0.0
    %799 = vmatpush1.msra.mxu0 0.0
    %800 = vmatprep.subr.mxu0 0.0
    %801 = vmatpush1.msra.mxu0 0.0
    %802 = vmatprep.subr.mxu0 0.0
    %803 = vmatpush1.msra.mxu0 0.0
    %804 = vmatprep.mubr.f32.mxu0 0.0
    %805 = vmatmul.mubr.f32.gmra.mrb[0].mxu0 %v735
    %v806 = vpop.f32.mrb[0].mxu0
    %v807 = vadd.f32 %v733, %v806
    %v808 = vpop.f32.mrb[0].mxu0
    %809 = vmatprep.mubr.f32.mxu0 0.0
    %810 = vmatmul.mubr.f32.gmra.mrb[0].mxu0 %v738
    %v811 = vpop.f32.mrb[0].mxu0
    %v812 = vadd.f32 %v733, %v811
    %v813 = vpop.f32.mrb[0].mxu0
    %814 = vdwg.mxu0
    %v815 = vld [vmem:[#allocation2 + $0xb0] sm:$0xff]
    %v816 = vld [vmem:[#allocation2 + $0xb8] sm:$0xff]
    %v817 = vld [vmem:[#allocation2 + $0xc0] sm:$0xff]
    %v818 = vld [vmem:[#allocation2 + $0xc8] sm:$0xff]
    %821 = vrot.lane.b32.xlu0 %v807, 96
    %v822 = vpop.permute.xlu0 %821
    %823 = vrot.lane.b32.xlu0 %v812, 96
    %v824 = vpop.permute.xlu0 %823
    %vm825 = vcmask 64512
    %v826 = vsel %vm825, %v807, 0
    %v828 = vsel %vm825, %v812, 0
    %v830 = vsel %vm825, %v822, 0
    %v832 = vsel %vm825, %v824, 0
    %834 = vmatprep.subr.mxu0 0.0
    %835 = vmatpush1.xpose.msra.mxu0 %v830
    %836 = vmatprep.subr.mxu0 0.0
    %837 = vmatpush1.xpose.msra.mxu0 %v832
    %838 = vmatprep.subr.mxu0 0.0
    %839 = vmatpush1.xpose.msra.mxu0 0.0
    %840 = vmatprep.subr.mxu0 0.0
    %841 = vmatpush1.xpose.msra.mxu0 0.0
    %842 = vmatprep.subr.mxu0 0.0
    %843 = vmatpush1.xpose.msra.mxu0 0.0
    %844 = vmatprep.subr.mxu0 0.0
    %845 = vmatpush1.xpose.msra.mxu0 0.0
    %846 = vmatprep.subr.mxu0 0.0
    %847 = vmatpush1.xpose.msra.mxu0 0.0
    %848 = vmatprep.subr.mxu0 0.0
    %849 = vmatpush1.xpose.msra.mxu0 0.0
    %850 = vmatprep.subr.mxu0 0.0
    %851 = vmatpush1.xpose.msra.mxu0 0.0
    %852 = vmatprep.subr.mxu0 0.0
    %853 = vmatpush1.xpose.msra.mxu0 0.0
    %854 = vmatprep.subr.mxu0 0.0
    %855 = vmatpush1.xpose.msra.mxu0 0.0
    %856 = vmatprep.subr.mxu0 0.0
    %857 = vmatpush1.xpose.msra.mxu0 0.0
    %858 = vmatprep.subr.mxu0 0.0
    %859 = vmatpush1.xpose.msra.mxu0 0.0
    %860 = vmatprep.subr.mxu0 0.0
    %861 = vmatpush1.xpose.msra.mxu0 0.0
    %862 = vmatprep.subr.mxu0 0.0
    %863 = vmatpush1.xpose.msra.mxu0 0.0
    %864 = vmatprep.subr.mxu0 0.0
    %865 = vmatpush1.xpose.msra.mxu0 0.0
    %866 = vmatprep.subr.mxu0 0.0
    %867 = vmatpush1.xpose.msra.mxu0 0.0
    %868 = vmatprep.subr.mxu0 0.0
    %869 = vmatpush1.xpose.msra.mxu0 0.0
    %870 = vmatprep.subr.mxu0 0.0
    %871 = vmatpush1.xpose.msra.mxu0 0.0
    %872 = vmatprep.subr.mxu0 0.0
    %873 = vmatpush1.xpose.msra.mxu0 0.0
    %874 = vmatprep.subr.mxu0 0.0
    %875 = vmatpush1.xpose.msra.mxu0 0.0
    %876 = vmatprep.subr.mxu0 0.0
    %877 = vmatpush1.xpose.msra.mxu0 0.0
    %878 = vmatprep.subr.mxu0 0.0
    %879 = vmatpush1.xpose.msra.mxu0 0.0
    %880 = vmatprep.subr.mxu0 0.0
    %881 = vmatpush1.xpose.msra.mxu0 0.0
    %882 = vmatprep.subr.mxu0 0.0
    %883 = vmatpush1.xpose.msra.mxu0 0.0
    %884 = vmatprep.subr.mxu0 0.0
    %885 = vmatpush1.xpose.msra.mxu0 0.0
    %886 = vmatprep.subr.mxu0 0.0
    %887 = vmatpush1.xpose.msra.mxu0 0.0
    %888 = vmatprep.subr.mxu0 0.0
    %889 = vmatpush1.xpose.msra.mxu0 0.0
    %890 = vmatprep.subr.mxu0 0.0
    %891 = vmatpush1.xpose.msra.mxu0 0.0
    %892 = vmatprep.subr.mxu0 0.0
    %893 = vmatpush1.xpose.msra.mxu0 0.0
    %894 = vmatprep.subr.mxu0 0.0
    %895 = vmatpush1.xpose.msra.mxu0 0.0
    %896 = vmatprep.subr.mxu0 0.0
    %897 = vmatpush1.xpose.msra.mxu0 0.0
    %898 = vmatprep.mubr.f32.mxu0 0.0
    %899 = vmatmul.mubr.f32.gmra.mrb[0].mxu0 %v826
    %v900 = vpop.f32.mrb[0].mxu0
    %v901 = vadd.f32 %v681, %v900
    %v902 = vpop.f32.mrb[0].mxu0
    %903 = vmatprep.mubr.f32.mxu0 0.0
    %904 = vmatmul.mubr.f32.gmra.mrb[0].mxu0 %v828
    %v905 = vpop.f32.mrb[0].mxu0
    %v906 = vadd.f32 %v682, %v905
    %v907 = vpop.f32.mrb[0].mxu0
    %908 = vdwg.mxu0
    %v909 = vsel %vm590, %v901, -inf
    %910 = vmax.xlane.f32.xlu0 %v909
    %v911 = vpop.xlane.xlu0 %910
    %v912 = vsel %vm590, %v906, -inf
    %913 = vmax.xlane.f32.xlu0 %v912
    %v914 = vpop.xlane.xlu0 %913
    %v915 = vsub.f32 %v901, %v911
    %v916 = vsub.f32 %v906, %v914
    %v917 = vmul.f32 %v915, 1.442695
    %v918 = vpow.pop %v917
    %v919 = vmul.f32 %v916, 1.442695
    %v920 = vpow.pop %v919
    %v921 = vsel %vm590, %v918, 0.0
    %922 = vadd.xlane.f32.xlu0 %v921
    %v923 = vpop.xlane.xlu0 %922
    %v924 = vsel %vm590, %v920, 0.0
    %925 = vadd.xlane.f32.xlu0 %v924
    %v926 = vpop.xlane.xlu0 %925
    %v927 = vrcp.pop %v923
    %v928 = vrcp.pop %v926
    %v929 = vmul.f32 %v918, %v927
    %v930 = vmul.f32 %v920, %v928
    %931 = vrot.lane.b32.xlu0 %v807, 64
    %v932 = vpop.permute.xlu0 %931
    %933 = vrot.lane.b32.xlu0 %v812, 64
    %v934 = vpop.permute.xlu0 %933
    %v938 = vsel %vm590, %v929, 0
    %v941 = vsel %vm590, %v930, 0
    %943 = vmatprep.subr.mxu0 0.0
    %944 = vmatpush1.msra.mxu0 %v932
    %945 = vmatprep.subr.mxu0 0.0
    %946 = vmatpush1.msra.mxu0 %v934
    %947 = vmatprep.subr.mxu0 0.0
    %948 = vmatpush1.msra.mxu0 0.0
    %949 = vmatprep.subr.mxu0 0.0
    %950 = vmatpush1.msra.mxu0 0.0
    %951 = vmatprep.subr.mxu0 0.0
    %952 = vmatpush1.msra.mxu0 0.0
    %953 = vmatprep.subr.mxu0 0.0
    %954 = vmatpush1.msra.mxu0 0.0
    %955 = vmatprep.subr.mxu0 0.0
    %956 = vmatpush1.msra.mxu0 0.0
    %957 = vmatprep.subr.mxu0 0.0
    %958 = vmatpush1.msra.mxu0 0.0
    %959 = vmatprep.subr.mxu0 0.0
    %960 = vmatpush1.msra.mxu0 0.0
    %961 = vmatprep.subr.mxu0 0.0
    %962 = vmatpush1.msra.mxu0 0.0
    %963 = vmatprep.subr.mxu0 0.0
    %964 = vmatpush1.msra.mxu0 0.0
    %965 = vmatprep.subr.mxu0 0.0
    %966 = vmatpush1.msra.mxu0 0.0
    %967 = vmatprep.subr.mxu0 0.0
    %968 = vmatpush1.msra.mxu0 0.0
    %969 = vmatprep.subr.mxu0 0.0
    %970 = vmatpush1.msra.mxu0 0.0
    %971 = vmatprep.subr.mxu0 0.0
    %972 = vmatpush1.msra.mxu0 0.0
    %973 = vmatprep.subr.mxu0 0.0
    %974 = vmatpush1.msra.mxu0 0.0
    %975 = vmatprep.subr.mxu0 0.0
    %976 = vmatpush1.msra.mxu0 0.0
    %977 = vmatprep.subr.mxu0 0.0
    %978 = vmatpush1.msra.mxu0 0.0
    %979 = vmatprep.subr.mxu0 0.0
    %980 = vmatpush1.msra.mxu0 0.0
    %981 = vmatprep.subr.mxu0 0.0
    %982 = vmatpush1.msra.mxu0 0.0
    %983 = vmatprep.subr.mxu0 0.0
    %984 = vmatpush1.msra.mxu0 0.0
    %985 = vmatprep.subr.mxu0 0.0
    %986 = vmatpush1.msra.mxu0 0.0
    %987 = vmatprep.subr.mxu0 0.0
    %988 = vmatpush1.msra.mxu0 0.0
    %989 = vmatprep.subr.mxu0 0.0
    %990 = vmatpush1.msra.mxu0 0.0
    %991 = vmatprep.subr.mxu0 0.0
    %992 = vmatpush1.msra.mxu0 0.0
    %993 = vmatprep.subr.mxu0 0.0
    %994 = vmatpush1.msra.mxu0 0.0
    %995 = vmatprep.subr.mxu0 0.0
    %996 = vmatpush1.msra.mxu0 0.0
    %997 = vmatprep.subr.mxu0 0.0
    %998 = vmatpush1.msra.mxu0 0.0
    %999 = vmatprep.subr.mxu0 0.0
    %1000 = vmatpush1.msra.mxu0 0.0
    %1001 = vmatprep.subr.mxu0 0.0
    %1002 = vmatpush1.msra.mxu0 0.0
    %1003 = vmatprep.subr.mxu0 0.0
    %1004 = vmatpush1.msra.mxu0 0.0
    %1005 = vmatprep.subr.mxu0 0.0
    %1006 = vmatpush1.msra.mxu0 0.0
    %1007 = vmatprep.mubr.f32.mxu0 0.0
    %1008 = vmatmul.mubr.f32.gmra.mrb[0].mxu0 %v938
    %v1009 = vpop.f32.mrb[0].mxu0
    %v1010 = vadd.f32 0.0, %v1009
    %v1011 = vpop.f32.mrb[0].mxu0
    %1012 = vmatprep.mubr.f32.mxu0 0.0
    %1013 = vmatmul.mubr.f32.gmra.mrb[0].mxu0 %v941
    %v1014 = vpop.f32.mrb[0].mxu0
    %v1015 = vadd.f32 0.0, %v1014
    %v1016 = vpop.f32.mrb[0].mxu0
    %1017 = vdwg.mxu0
    %1018 = vrot.lane.b32.xlu0 %v807, 120
    %v1019 = vpop.permute.xlu0 %1018
    %1020 = vrot.lane.b32.xlu0 %v812, 120
    %v1021 = vpop.permute.xlu0 %1020
    %1022 = vrot.lane.b32.xlu0 %v807, 88
    %v1023 = vpop.permute.xlu0 %1022
    %1024 = vrot.lane.b32.xlu0 %v812, 88
    %v1025 = vpop.permute.xlu0 %1024
    %v1026 = vsel %vm825, %v1019, 0
    %v1028 = vsel %vm825, %v1021, 0
    %v1030 = vsel %vm825, %v1023, 0
    %v1032 = vsel %vm825, %v1025, 0
    %1034 = vmatprep.subr.mxu0 0.0
    %1035 = vmatpush1.xpose.msra.mxu0 %v1030
    %1036 = vmatprep.subr.mxu0 0.0
    %1037 = vmatpush1.xpose.msra.mxu0 %v1032
    %1038 = vmatprep.subr.mxu0 0.0
    %1039 = vmatpush1.xpose.msra.mxu0 0.0
    %1040 = vmatprep.subr.mxu0 0.0
    %1041 = vmatpush1.xpose.msra.mxu0 0.0
    %1042 = vmatprep.subr.mxu0 0.0
    %1043 = vmatpush1.xpose.msra.mxu0 0.0
    %1044 = vmatprep.subr.mxu0 0.0
    %1045 = vmatpush1.xpose.msra.mxu0 0.0
    %1046 = vmatprep.subr.mxu0 0.0
    %1047 = vmatpush1.xpose.msra.mxu0 0.0
    %1048 = vmatprep.subr.mxu0 0.0
    %1049 = vmatpush1.xpose.msra.mxu0 0.0
    %1050 = vmatprep.subr.mxu0 0.0
    %1051 = vmatpush1.xpose.msra.mxu0 0.0
    %1052 = vmatprep.subr.mxu0 0.0
    %1053 = vmatpush1.xpose.msra.mxu0 0.0
    %1054 = vmatprep.subr.mxu0 0.0
    %1055 = vmatpush1.xpose.msra.mxu0 0.0
    %1056 = vmatprep.subr.mxu0 0.0
    %1057 = vmatpush1.xpose.msra.mxu0 0.0
    %1058 = vmatprep.subr.mxu0 0.0
    %1059 = vmatpush1.xpose.msra.mxu0 0.0
    %1060 = vmatprep.subr.mxu0 0.0
    %1061 = vmatpush1.xpose.msra.mxu0 0.0
    %1062 = vmatprep.subr.mxu0 0.0
    %1063 = vmatpush1.xpose.msra.mxu0 0.0
    %1064 = vmatprep.subr.mxu0 0.0
    %1065 = vmatpush1.xpose.msra.mxu0 0.0
    %1066 = vmatprep.subr.mxu0 0.0
    %1067 = vmatpush1.xpose.msra.mxu0 0.0
    %1068 = vmatprep.subr.mxu0 0.0
    %1069 = vmatpush1.xpose.msra.mxu0 0.0
    %1070 = vmatprep.subr.mxu0 0.0
    %1071 = vmatpush1.xpose.msra.mxu0 0.0
    %1072 = vmatprep.subr.mxu0 0.0
    %1073 = vmatpush1.xpose.msra.mxu0 0.0
    %1074 = vmatprep.subr.mxu0 0.0
    %1075 = vmatpush1.xpose.msra.mxu0 0.0
    %1076 = vmatprep.subr.mxu0 0.0
    %1077 = vmatpush1.xpose.msra.mxu0 0.0
    %1078 = vmatprep.subr.mxu0 0.0
    %1079 = vmatpush1.xpose.msra.mxu0 0.0
    %1080 = vmatprep.subr.mxu0 0.0
    %1081 = vmatpush1.xpose.msra.mxu0 0.0
    %1082 = vmatprep.subr.mxu0 0.0
    %1083 = vmatpush1.xpose.msra.mxu0 0.0
    %1084 = vmatprep.subr.mxu0 0.0
    %1085 = vmatpush1.xpose.msra.mxu0 0.0
    %1086 = vmatprep.subr.mxu0 0.0
    %1087 = vmatpush1.xpose.msra.mxu0 0.0
    %1088 = vmatprep.subr.mxu0 0.0
    %1089 = vmatpush1.xpose.msra.mxu0 0.0
    %1090 = vmatprep.subr.mxu0 0.0
    %1091 = vmatpush1.xpose.msra.mxu0 0.0
    %1092 = vmatprep.subr.mxu0 0.0
    %1093 = vmatpush1.xpose.msra.mxu0 0.0
    %1094 = vmatprep.subr.mxu0 0.0
    %1095 = vmatpush1.xpose.msra.mxu0 0.0
    %1096 = vmatprep.subr.mxu0 0.0
    %1097 = vmatpush1.xpose.msra.mxu0 0.0
    %1098 = vmatprep.mubr.f32.mxu0 0.0
    %1099 = vmatmul.mubr.f32.gmra.mrb[0].mxu0 %v1026
    %v1100 = vpop.f32.mrb[0].mxu0
    %v1101 = vadd.f32 %v681, %v1100
    %v1102 = vpop.f32.mrb[0].mxu0
    %1103 = vmatprep.mubr.f32.mxu0 0.0
    %1104 = vmatmul.mubr.f32.gmra.mrb[0].mxu0 %v1028
    %v1105 = vpop.f32.mrb[0].mxu0
    %v1106 = vadd.f32 %v682, %v1105
    %v1107 = vpop.f32.mrb[0].mxu0
    %1108 = vdwg.mxu0
    %v1109 = vsel %vm590, %v1101, -inf
    %1110 = vmax.xlane.f32.xlu0 %v1109
    %v1111 = vpop.xlane.xlu0 %1110
    %v1112 = vsel %vm590, %v1106, -inf
    %1113 = vmax.xlane.f32.xlu0 %v1112
    %v1114 = vpop.xlane.xlu0 %1113
    %v1115 = vsub.f32 %v1101, %v1111
    %v1116 = vsub.f32 %v1106, %v1114
    %v1117 = vmul.f32 %v1115, 1.442695
    %v1118 = vpow.pop %v1117
    %v1119 = vmul.f32 %v1116, 1.442695
    %v1120 = vpow.pop %v1119
    %v1121 = vsel %vm590, %v1118, 0.0
    %1122 = vadd.xlane.f32.xlu0 %v1121
    %v1123 = vpop.xlane.xlu0 %1122
    %v1124 = vsel %vm590, %v1120, 0.0
    %1125 = vadd.xlane.f32.xlu0 %v1124
    %v1126 = vpop.xlane.xlu0 %1125
    %v1127 = vrcp.pop %v1123
    %v1128 = vrcp.pop %v1126
    %v1129 = vmul.f32 %v1118, %v1127
    %v1130 = vmul.f32 %v1120, %v1128
    %1131 = vrot.lane.b32.xlu0 %v807, 56
    %v1132 = vpop.permute.xlu0 %1131
    %1133 = vrot.lane.b32.xlu0 %v812, 56
    %v1134 = vpop.permute.xlu0 %1133
    %v1138 = vsel %vm590, %v1129, 0
    %v1141 = vsel %vm590, %v1130, 0
    %1143 = vmatprep.subr.mxu0 0.0
    %1144 = vmatpush1.msra.mxu0 %v1132
    %1145 = vmatprep.subr.mxu0 0.0
    %1146 = vmatpush1.msra.mxu0 %v1134
    %1147 = vmatprep.subr.mxu0 0.0
    %1148 = vmatpush1.msra.mxu0 0.0
    %1149 = vmatprep.subr.mxu0 0.0
    %1150 = vmatpush1.msra.mxu0 0.0
    %1151 = vmatprep.subr.mxu0 0.0
    %1152 = vmatpush1.msra.mxu0 0.0
    %1153 = vmatprep.subr.mxu0 0.0
    %1154 = vmatpush1.msra.mxu0 0.0
    %1155 = vmatprep.subr.mxu0 0.0
    %1156 = vmatpush1.msra.mxu0 0.0
    %1157 = vmatprep.subr.mxu0 0.0
    %1158 = vmatpush1.msra.mxu0 0.0
    %1159 = vmatprep.subr.mxu0 0.0
    %1160 = vmatpush1.msra.mxu0 0.0
    %1161 = vmatprep.subr.mxu0 0.0
    %1162 = vmatpush1.msra.mxu0 0.0
    %1163 = vmatprep.subr.mxu0 0.0
    %1164 = vmatpush1.msra.mxu0 0.0
    %1165 = vmatprep.subr.mxu0 0.0
    %1166 = vmatpush1.msra.mxu0 0.0
    %1167 = vmatprep.subr.mxu0 0.0
    %1168 = vmatpush1.msra.mxu0 0.0
    %1169 = vmatprep.subr.mxu0 0.0
    %1170 = vmatpush1.msra.mxu0 0.0
    %1171 = vmatprep.subr.mxu0 0.0
    %1172 = vmatpush1.msra.mxu0 0.0
    %1173 = vmatprep.subr.mxu0 0.0
    %1174 = vmatpush1.msra.mxu0 0.0
    %1175 = vmatprep.subr.mxu0 0.0
    %1176 = vmatpush1.msra.mxu0 0.0
    %1177 = vmatprep.subr.mxu0 0.0
    %1178 = vmatpush1.msra.mxu0 0.0
    %1179 = vmatprep.subr.mxu0 0.0
    %1180 = vmatpush1.msra.mxu0 0.0
    %1181 = vmatprep.subr.mxu0 0.0
    %1182 = vmatpush1.msra.mxu0 0.0
    %1183 = vmatprep.subr.mxu0 0.0
    %1184 = vmatpush1.msra.mxu0 0.0
    %1185 = vmatprep.subr.mxu0 0.0
    %1186 = vmatpush1.msra.mxu0 0.0
    %1187 = vmatprep.subr.mxu0 0.0
    %1188 = vmatpush1.msra.mxu0 0.0
    %1189 = vmatprep.subr.mxu0 0.0
    %1190 = vmatpush1.msra.mxu0 0.0
    %1191 = vmatprep.subr.mxu0 0.0
    %1192 = vmatpush1.msra.mxu0 0.0
    %1193 = vmatprep.subr.mxu0 0.0
    %1194 = vmatpush1.msra.mxu0 0.0
    %1195 = vmatprep.subr.mxu0 0.0
    %1196 = vmatpush1.msra.mxu0 0.0
    %1197 = vmatprep.subr.mxu0 0.0
    %1198 = vmatpush1.msra.mxu0 0.0
    %1199 = vmatprep.subr.mxu0 0.0
    %1200 = vmatpush1.msra.mxu0 0.0
    %1201 = vmatprep.subr.mxu0 0.0
    %1202 = vmatpush1.msra.mxu0 0.0
    %1203 = vmatprep.subr.mxu0 0.0
    %1204 = vmatpush1.msra.mxu0 0.0
    %1205 = vmatprep.subr.mxu0 0.0
    %1206 = vmatpush1.msra.mxu0 0.0
    %1207 = vmatprep.mubr.f32.mxu0 0.0
    %1208 = vmatmul.mubr.f32.gmra.mrb[0].mxu0 %v1138
    %v1209 = vpop.f32.mrb[0].mxu0
    %v1210 = vadd.f32 0.0, %v1209
    %v1211 = vpop.f32.mrb[0].mxu0
    %1212 = vmatprep.mubr.f32.mxu0 0.0
    %1213 = vmatmul.mubr.f32.gmra.mrb[0].mxu0 %v1141
    %v1214 = vpop.f32.mrb[0].mxu0
    %v1215 = vadd.f32 0.0, %v1214
    %v1216 = vpop.f32.mrb[0].mxu0
    %1217 = vdwg.mxu0
    %v1219 = vsel %vm825, %v1210, 0
    %v1222 = vsel %vm825, %v1215, 0
    %1224 = vmatprep.subr.mxu0 0.0
    %1225 = vmatpush1.msra.mxu0 %v816
    %1226 = vmatprep.subr.mxu0 0.0
    %1227 = vmatpush1.msra.mxu0 0.0
    %1228 = vmatprep.subr.mxu0 0.0
    %1229 = vmatpush1.msra.mxu0 0.0
    %1230 = vmatprep.subr.mxu0 0.0
    %1231 = vmatpush1.msra.mxu0 0.0
    %1232 = vmatprep.subr.mxu0 0.0
    %1233 = vmatpush1.msra.mxu0 0.0
    %1234 = vmatprep.subr.mxu0 0.0
    %1235 = vmatpush1.msra.mxu0 0.0
    %1236 = vmatprep.subr.mxu0 0.0
    %1237 = vmatpush1.msra.mxu0 0.0
    %1238 = vmatprep.subr.mxu0 0.0
    %1239 = vmatpush1.msra.mxu0 0.0
    %1240 = vmatprep.subr.mxu0 0.0
    %1241 = vmatpush1.msra.mxu0 0.0
    %1242 = vmatprep.subr.mxu0 0.0
    %1243 = vmatpush1.msra.mxu0 0.0
    %1244 = vmatprep.subr.mxu0 0.0
    %1245 = vmatpush1.msra.mxu0 0.0
    %1246 = vmatprep.subr.mxu0 0.0
    %1247 = vmatpush1.msra.mxu0 0.0
    %1248 = vmatprep.subr.mxu0 0.0
    %1249 = vmatpush1.msra.mxu0 0.0
    %1250 = vmatprep.subr.mxu0 0.0
    %1251 = vmatpush1.msra.mxu0 0.0
    %1252 = vmatprep.subr.mxu0 0.0
    %1253 = vmatpush1.msra.mxu0 0.0
    %1254 = vmatprep.subr.mxu0 0.0
    %1255 = vmatpush1.msra.mxu0 0.0
    %1256 = vmatprep.subr.mxu0 0.0
    %1257 = vmatpush1.msra.mxu0 0.0
    %1258 = vmatprep.subr.mxu0 0.0
    %1259 = vmatpush1.msra.mxu0 0.0
    %1260 = vmatprep.subr.mxu0 0.0
    %1261 = vmatpush1.msra.mxu0 0.0
    %1262 = vmatprep.subr.mxu0 0.0
    %1263 = vmatpush1.msra.mxu0 0.0
    %1264 = vmatprep.subr.mxu0 0.0
    %1265 = vmatpush1.msra.mxu0 0.0
    %1266 = vmatprep.subr.mxu0 0.0
    %1267 = vmatpush1.msra.mxu0 0.0
    %1268 = vmatprep.subr.mxu0 0.0
    %1269 = vmatpush1.msra.mxu0 0.0
    %1270 = vmatprep.subr.mxu0 0.0
    %1271 = vmatpush1.msra.mxu0 0.0
    %1272 = vmatprep.subr.mxu0 0.0
    %1273 = vmatpush1.msra.mxu0 0.0
    %1274 = vmatprep.subr.mxu0 0.0
    %1275 = vmatpush1.msra.mxu0 0.0
    %1276 = vmatprep.subr.mxu0 0.0
    %1277 = vmatpush1.msra.mxu0 0.0
    %1278 = vmatprep.subr.mxu0 0.0
    %1279 = vmatpush1.msra.mxu0 0.0
    %1280 = vmatprep.subr.mxu0 0.0
    %1281 = vmatpush1.msra.mxu0 0.0
    %1282 = vmatprep.subr.mxu0 0.0
    %1283 = vmatpush1.msra.mxu0 0.0
    %1284 = vmatprep.subr.mxu0 0.0
    %1285 = vmatpush1.msra.mxu0 0.0
    %1286 = vmatprep.subr.mxu0 0.0
    %1287 = vmatpush1.msra.mxu0 0.0
    %1288 = vmatprep.mubr.f32.mxu0 0.0
    %1289 = vmatmul.mubr.f32.gmra.mrb[0].mxu0 %v1219
    %v1290 = vpop.f32.mrb[0].mxu0
    %v1291 = vadd.f32 0.0, %v1290
    %v1292 = vpop.f32.mrb[0].mxu0
    %1293 = vmatprep.mubr.f32.mxu0 0.0
    %1294 = vmatmul.mubr.f32.gmra.mrb[0].mxu0 %v1222
    %v1295 = vpop.f32.mrb[0].mxu0
    %v1296 = vadd.f32 0.0, %v1295
    %v1297 = vpop.f32.mrb[0].mxu0
    %1298 = vdwg.mxu0
    %v1300 = vsel %vm825, %v1010, 0
    %v1303 = vsel %vm825, %v1015, 0
    %1305 = vmatprep.subr.mxu0 0.0
    %1306 = vmatpush1.msra.mxu0 %v815
    %1307 = vmatprep.subr.mxu0 0.0
    %1308 = vmatpush1.msra.mxu0 0.0
    %1309 = vmatprep.subr.mxu0 0.0
    %1310 = vmatpush1.msra.mxu0 0.0
    %1311 = vmatprep.subr.mxu0 0.0
    %1312 = vmatpush1.msra.mxu0 0.0
    %1313 = vmatprep.subr.mxu0 0.0
    %1314 = vmatpush1.msra.mxu0 0.0
    %1315 = vmatprep.subr.mxu0 0.0
    %1316 = vmatpush1.msra.mxu0 0.0
    %1317 = vmatprep.subr.mxu0 0.0
    %1318 = vmatpush1.msra.mxu0 0.0
    %1319 = vmatprep.subr.mxu0 0.0
    %1320 = vmatpush1.msra.mxu0 0.0
    %1321 = vmatprep.subr.mxu0 0.0
    %1322 = vmatpush1.msra.mxu0 0.0
    %1323 = vmatprep.subr.mxu0 0.0
    %1324 = vmatpush1.msra.mxu0 0.0
    %1325 = vmatprep.subr.mxu0 0.0
    %1326 = vmatpush1.msra.mxu0 0.0
    %1327 = vmatprep.subr.mxu0 0.0
    %1328 = vmatpush1.msra.mxu0 0.0
    %1329 = vmatprep.subr.mxu0 0.0
    %1330 = vmatpush1.msra.mxu0 0.0
    %1331 = vmatprep.subr.mxu0 0.0
    %1332 = vmatpush1.msra.mxu0 0.0
    %1333 = vmatprep.subr.mxu0 0.0
    %1334 = vmatpush1.msra.mxu0 0.0
    %1335 = vmatprep.subr.mxu0 0.0
    %1336 = vmatpush1.msra.mxu0 0.0
    %1337 = vmatprep.subr.mxu0 0.0
    %1338 = vmatpush1.msra.mxu0 0.0
    %1339 = vmatprep.subr.mxu0 0.0
    %1340 = vmatpush1.msra.mxu0 0.0
    %1341 = vmatprep.subr.mxu0 0.0
    %1342 = vmatpush1.msra.mxu0 0.0
    %1343 = vmatprep.subr.mxu0 0.0
    %1344 = vmatpush1.msra.mxu0 0.0
    %1345 = vmatprep.subr.mxu0 0.0
    %1346 = vmatpush1.msra.mxu0 0.0
    %1347 = vmatprep.subr.mxu0 0.0
    %1348 = vmatpush1.msra.mxu0 0.0
    %1349 = vmatprep.subr.mxu0 0.0
    %1350 = vmatpush1.msra.mxu0 0.0
    %1351 = vmatprep.subr.mxu0 0.0
    %1352 = vmatpush1.msra.mxu0 0.0
    %1353 = vmatprep.subr.mxu0 0.0
    %1354 = vmatpush1.msra.mxu0 0.0
    %1355 = vmatprep.subr.mxu0 0.0
    %1356 = vmatpush1.msra.mxu0 0.0
    %1357 = vmatprep.subr.mxu0 0.0
    %1358 = vmatpush1.msra.mxu0 0.0
    %1359 = vmatprep.subr.mxu0 0.0
    %1360 = vmatpush1.msra.mxu0 0.0
    %1361 = vmatprep.subr.mxu0 0.0
    %1362 = vmatpush1.msra.mxu0 0.0
    %1363 = vmatprep.subr.mxu0 0.0
    %1364 = vmatpush1.msra.mxu0 0.0
    %1365 = vmatprep.subr.mxu0 0.0
    %1366 = vmatpush1.msra.mxu0 0.0
    %1367 = vmatprep.subr.mxu0 0.0
    %1368 = vmatpush1.msra.mxu0 0.0
    %1369 = vmatprep.mubr.f32.mxu0 0.0
    %1370 = vmatmul.mubr.f32.gmra.mrb[0].mxu0 %v1300
    %v1371 = vpop.f32.mrb[0].mxu0
    %v1372 = vadd.f32 %v1291, %v1371
    %v1373 = vpop.f32.mrb[0].mxu0
    %1374 = vmatprep.mubr.f32.mxu0 0.0
    %1375 = vmatmul.mubr.f32.gmra.mrb[0].mxu0 %v1303
    %v1376 = vpop.f32.mrb[0].mxu0
    %v1377 = vadd.f32 %v1296, %v1376
    %v1378 = vpop.f32.mrb[0].mxu0
    %1379 = vdwg.mxu0
    %1380 = vrot.lane.b32.xlu0 %v807, 112
    %v1381 = vpop.permute.xlu0 %1380
    %1382 = vrot.lane.b32.xlu0 %v812, 112
    %v1383 = vpop.permute.xlu0 %1382
    %1384 = vrot.lane.b32.xlu0 %v807, 80
    %v1385 = vpop.permute.xlu0 %1384
    %1386 = vrot.lane.b32.xlu0 %v812, 80
    %v1387 = vpop.permute.xlu0 %1386
    %v1388 = vsel %vm825, %v1381, 0
    %v1390 = vsel %vm825, %v1383, 0
    %v1392 = vsel %vm825, %v1385, 0
    %v1394 = vsel %vm825, %v1387, 0
    %1396 = vmatprep.subr.mxu0 0.0
    %1397 = vmatpush1.xpose.msra.mxu0 %v1392
    %1398 = vmatprep.subr.mxu0 0.0
    %1399 = vmatpush1.xpose.msra.mxu0 %v1394
    %1400 = vmatprep.subr.mxu0 0.0
    %1401 = vmatpush1.xpose.msra.mxu0 0.0
    %1402 = vmatprep.subr.mxu0 0.0
    %1403 = vmatpush1.xpose.msra.mxu0 0.0
    %1404 = vmatprep.subr.mxu0 0.0
    %1405 = vmatpush1.xpose.msra.mxu0 0.0
    %1406 = vmatprep.subr.mxu0 0.0
    %1407 = vmatpush1.xpose.msra.mxu0 0.0
    %1408 = vmatprep.subr.mxu0 0.0
    %1409 = vmatpush1.xpose.msra.mxu0 0.0
    %1410 = vmatprep.subr.mxu0 0.0
    %1411 = vmatpush1.xpose.msra.mxu0 0.0
    %1412 = vmatprep.subr.mxu0 0.0
    %1413 = vmatpush1.xpose.msra.mxu0 0.0
    %1414 = vmatprep.subr.mxu0 0.0
    %1415 = vmatpush1.xpose.msra.mxu0 0.0
    %1416 = vmatprep.subr.mxu0 0.0
    %1417 = vmatpush1.xpose.msra.mxu0 0.0
    %1418 = vmatprep.subr.mxu0 0.0
    %1419 = vmatpush1.xpose.msra.mxu0 0.0
    %1420 = vmatprep.subr.mxu0 0.0
    %1421 = vmatpush1.xpose.msra.mxu0 0.0
    %1422 = vmatprep.subr.mxu0 0.0
    %1423 = vmatpush1.xpose.msra.mxu0 0.0
    %1424 = vmatprep.subr.mxu0 0.0
    %1425 = vmatpush1.xpose.msra.mxu0 0.0
    %1426 = vmatprep.subr.mxu0 0.0
    %1427 = vmatpush1.xpose.msra.mxu0 0.0
    %1428 = vmatprep.subr.mxu0 0.0
    %1429 = vmatpush1.xpose.msra.mxu0 0.0
    %1430 = vmatprep.subr.mxu0 0.0
    %1431 = vmatpush1.xpose.msra.mxu0 0.0
    %1432 = vmatprep.subr.mxu0 0.0
    %1433 = vmatpush1.xpose.msra.mxu0 0.0
    %1434 = vmatprep.subr.mxu0 0.0
    %1435 = vmatpush1.xpose.msra.mxu0 0.0
    %1436 = vmatprep.subr.mxu0 0.0
    %1437 = vmatpush1.xpose.msra.mxu0 0.0
    %1438 = vmatprep.subr.mxu0 0.0
    %1439 = vmatpush1.xpose.msra.mxu0 0.0
    %1440 = vmatprep.subr.mxu0 0.0
    %1441 = vmatpush1.xpose.msra.mxu0 0.0
    %1442 = vmatprep.subr.mxu0 0.0
    %1443 = vmatpush1.xpose.msra.mxu0 0.0
    %1444 = vmatprep.subr.mxu0 0.0
    %1445 = vmatpush1.xpose.msra.mxu0 0.0
    %1446 = vmatprep.subr.mxu0 0.0
    %1447 = vmatpush1.xpose.msra.mxu0 0.0
    %1448 = vmatprep.subr.mxu0 0.0
    %1449 = vmatpush1.xpose.msra.mxu0 0.0
    %1450 = vmatprep.subr.mxu0 0.0
    %1451 = vmatpush1.xpose.msra.mxu0 0.0
    %1452 = vmatprep.subr.mxu0 0.0
    %1453 = vmatpush1.xpose.msra.mxu0 0.0
    %1454 = vmatprep.subr.mxu0 0.0
    %1455 = vmatpush1.xpose.msra.mxu0 0.0
    %1456 = vmatprep.subr.mxu0 0.0
    %1457 = vmatpush1.xpose.msra.mxu0 0.0
    %1458 = vmatprep.subr.mxu0 0.0
    %1459 = vmatpush1.xpose.msra.mxu0 0.0
    %1460 = vmatprep.mubr.f32.mxu0 0.0
    %1461 = vmatmul.mubr.f32.gmra.mrb[0].mxu0 %v1388
    %v1462 = vpop.f32.mrb[0].mxu0
    %v1463 = vadd.f32 %v681, %v1462
    %v1464 = vpop.f32.mrb[0].mxu0
    %1465 = vmatprep.mubr.f32.mxu0 0.0
    %1466 = vmatmul.mubr.f32.gmra.mrb[0].mxu0 %v1390
    %v1467 = vpop.f32.mrb[0].mxu0
    %v1468 = vadd.f32 %v682, %v1467
    %v1469 = vpop.f32.mrb[0].mxu0
    %1470 = vdwg.mxu0
    %v1471 = vsel %vm590, %v1463, -inf
    %1472 = vmax.xlane.f32.xlu0 %v1471
    %v1473 = vpop.xlane.xlu0 %1472
    %v1474 = vsel %vm590, %v1468, -inf
    %1475 = vmax.xlane.f32.xlu0 %v1474
    %v1476 = vpop.xlane.xlu0 %1475
    %v1477 = vsub.f32 %v1463, %v1473
    %v1478 = vsub.f32 %v1468, %v1476
    %v1479 = vmul.f32 %v1477, 1.442695
    %v1480 = vpow.pop %v1479
    %v1481 = vmul.f32 %v1478, 1.442695
    %v1482 = vpow.pop %v1481
    %v1483 = vsel %vm590, %v1480, 0.0
    %1484 = vadd.xlane.f32.xlu0 %v1483
    %v1485 = vpop.xlane.xlu0 %1484
    %v1486 = vsel %vm590, %v1482, 0.0
    %1487 = vadd.xlane.f32.xlu0 %v1486
    %v1488 = vpop.xlane.xlu0 %1487
    %v1489 = vrcp.pop %v1485
    %v1490 = vrcp.pop %v1488
    %v1491 = vmul.f32 %v1480, %v1489
    %v1492 = vmul.f32 %v1482, %v1490
    %1493 = vrot.lane.b32.xlu0 %v807, 48
    %v1494 = vpop.permute.xlu0 %1493
    %1495 = vrot.lane.b32.xlu0 %v812, 48
    %v1496 = vpop.permute.xlu0 %1495
    %v1500 = vsel %vm590, %v1491, 0
    %v1503 = vsel %vm590, %v1492, 0
    %1505 = vmatprep.subr.mxu0 0.0
    %1506 = vmatpush1.msra.mxu0 %v1494
    %1507 = vmatprep.subr.mxu0 0.0
    %1508 = vmatpush1.msra.mxu0 %v1496
    %1509 = vmatprep.subr.mxu0 0.0
    %1510 = vmatpush1.msra.mxu0 0.0
    %1511 = vmatprep.subr.mxu0 0.0
    %1512 = vmatpush1.msra.mxu0 0.0
    %1513 = vmatprep.subr.mxu0 0.0
    %1514 = vmatpush1.msra.mxu0 0.0
    %1515 = vmatprep.subr.mxu0 0.0
    %1516 = vmatpush1.msra.mxu0 0.0
    %1517 = vmatprep.subr.mxu0 0.0
    %1518 = vmatpush1.msra.mxu0 0.0
    %1519 = vmatprep.subr.mxu0 0.0
    %1520 = vmatpush1.msra.mxu0 0.0
    %1521 = vmatprep.subr.mxu0 0.0
    %1522 = vmatpush1.msra.mxu0 0.0
    %1523 = vmatprep.subr.mxu0 0.0
    %1524 = vmatpush1.msra.mxu0 0.0
    %1525 = vmatprep.subr.mxu0 0.0
    %1526 = vmatpush1.msra.mxu0 0.0
    %1527 = vmatprep.subr.mxu0 0.0
    %1528 = vmatpush1.msra.mxu0 0.0
    %1529 = vmatprep.subr.mxu0 0.0
    %1530 = vmatpush1.msra.mxu0 0.0
    %1531 = vmatprep.subr.mxu0 0.0
    %1532 = vmatpush1.msra.mxu0 0.0
    %1533 = vmatprep.subr.mxu0 0.0
    %1534 = vmatpush1.msra.mxu0 0.0
    %1535 = vmatprep.subr.mxu0 0.0
    %1536 = vmatpush1.msra.mxu0 0.0
    %1537 = vmatprep.subr.mxu0 0.0
    %1538 = vmatpush1.msra.mxu0 0.0
    %1539 = vmatprep.subr.mxu0 0.0
    %1540 = vmatpush1.msra.mxu0 0.0
    %1541 = vmatprep.subr.mxu0 0.0
    %1542 = vmatpush1.msra.mxu0 0.0
    %1543 = vmatprep.subr.mxu0 0.0
    %1544 = vmatpush1.msra.mxu0 0.0
    %1545 = vmatprep.subr.mxu0 0.0
    %1546 = vmatpush1.msra.mxu0 0.0
    %1547 = vmatprep.subr.mxu0 0.0
    %1548 = vmatpush1.msra.mxu0 0.0
    %1549 = vmatprep.subr.mxu0 0.0
    %1550 = vmatpush1.msra.mxu0 0.0
    %1551 = vmatprep.subr.mxu0 0.0
    %1552 = vmatpush1.msra.mxu0 0.0
    %1553 = vmatprep.subr.mxu0 0.0
    %1554 = vmatpush1.msra.mxu0 0.0
    %1555 = vmatprep.subr.mxu0 0.0
    %1556 = vmatpush1.msra.mxu0 0.0
    %1557 = vmatprep.subr.mxu0 0.0
    %1558 = vmatpush1.msra.mxu0 0.0
    %1559 = vmatprep.subr.mxu0 0.0
    %1560 = vmatpush1.msra.mxu0 0.0
    %1561 = vmatprep.subr.mxu0 0.0
    %1562 = vmatpush1.msra.mxu0 0.0
    %1563 = vmatprep.subr.mxu0 0.0
    %1564 = vmatpush1.msra.mxu0 0.0
    %1565 = vmatprep.subr.mxu0 0.0
    %1566 = vmatpush1.msra.mxu0 0.0
    %1567 = vmatprep.subr.mxu0 0.0
    %1568 = vmatpush1.msra.mxu0 0.0
    %1569 = vmatprep.mubr.f32.mxu0 0.0
    %1570 = vmatmul.mubr.f32.gmra.mrb[0].mxu0 %v1500
    %v1571 = vpop.f32.mrb[0].mxu0
    %v1572 = vadd.f32 0.0, %v1571
    %v1573 = vpop.f32.mrb[0].mxu0
    %1574 = vmatprep.mubr.f32.mxu0 0.0
    %1575 = vmatmul.mubr.f32.gmra.mrb[0].mxu0 %v1503
    %v1576 = vpop.f32.mrb[0].mxu0
    %v1577 = vadd.f32 0.0, %v1576
    %v1578 = vpop.f32.mrb[0].mxu0
    %1579 = vdwg.mxu0
    %v1581 = vsel %vm825, %v1572, 0
    %v1584 = vsel %vm825, %v1577, 0
    %1586 = vmatprep.subr.mxu0 0.0
    %1587 = vmatpush1.msra.mxu0 %v817
    %1588 = vmatprep.subr.mxu0 0.0
    %1589 = vmatpush1.msra.mxu0 0.0
    %1590 = vmatprep.subr.mxu0 0.0
    %1591 = vmatpush1.msra.mxu0 0.0
    %1592 = vmatprep.subr.mxu0 0.0
    %1593 = vmatpush1.msra.mxu0 0.0
    %1594 = vmatprep.subr.mxu0 0.0
    %1595 = vmatpush1.msra.mxu0 0.0
    %1596 = vmatprep.subr.mxu0 0.0
    %1597 = vmatpush1.msra.mxu0 0.0
    %1598 = vmatprep.subr.mxu0 0.0
    %1599 = vmatpush1.msra.mxu0 0.0
    %1600 = vmatprep.subr.mxu0 0.0
    %1601 = vmatpush1.msra.mxu0 0.0
    %1602 = vmatprep.subr.mxu0 0.0
    %1603 = vmatpush1.msra.mxu0 0.0
    %1604 = vmatprep.subr.mxu0 0.0
    %1605 = vmatpush1.msra.mxu0 0.0
    %1606 = vmatprep.subr.mxu0 0.0
    %1607 = vmatpush1.msra.mxu0 0.0
    %1608 = vmatprep.subr.mxu0 0.0
    %1609 = vmatpush1.msra.mxu0 0.0
    %1610 = vmatprep.subr.mxu0 0.0
    %1611 = vmatpush1.msra.mxu0 0.0
    %1612 = vmatprep.subr.mxu0 0.0
    %1613 = vmatpush1.msra.mxu0 0.0
    %1614 = vmatprep.subr.mxu0 0.0
    %1615 = vmatpush1.msra.mxu0 0.0
    %1616 = vmatprep.subr.mxu0 0.0
    %1617 = vmatpush1.msra.mxu0 0.0
    %1618 = vmatprep.subr.mxu0 0.0
    %1619 = vmatpush1.msra.mxu0 0.0
    %1620 = vmatprep.subr.mxu0 0.0
    %1621 = vmatpush1.msra.mxu0 0.0
    %1622 = vmatprep.subr.mxu0 0.0
    %1623 = vmatpush1.msra.mxu0 0.0
    %1624 = vmatprep.subr.mxu0 0.0
    %1625 = vmatpush1.msra.mxu0 0.0
    %1626 = vmatprep.subr.mxu0 0.0
    %1627 = vmatpush1.msra.mxu0 0.0
    %1628 = vmatprep.subr.mxu0 0.0
    %1629 = vmatpush1.msra.mxu0 0.0
    %1630 = vmatprep.subr.mxu0 0.0
    %1631 = vmatpush1.msra.mxu0 0.0
    %1632 = vmatprep.subr.mxu0 0.0
    %1633 = vmatpush1.msra.mxu0 0.0
    %1634 = vmatprep.subr.mxu0 0.0
    %1635 = vmatpush1.msra.mxu0 0.0
    %1636 = vmatprep.subr.mxu0 0.0
    %1637 = vmatpush1.msra.mxu0 0.0
    %1638 = vmatprep.subr.mxu0 0.0
    %1639 = vmatpush1.msra.mxu0 0.0
    %1640 = vmatprep.subr.mxu0 0.0
    %1641 = vmatpush1.msra.mxu0 0.0
    %1642 = vmatprep.subr.mxu0 0.0
    %1643 = vmatpush1.msra.mxu0 0.0
    %1644 = vmatprep.subr.mxu0 0.0
    %1645 = vmatpush1.msra.mxu0 0.0
    %1646 = vmatprep.subr.mxu0 0.0
    %1647 = vmatpush1.msra.mxu0 0.0
    %1648 = vmatprep.subr.mxu0 0.0
    %1649 = vmatpush1.msra.mxu0 0.0
    %1650 = vmatprep.mubr.f32.mxu0 0.0
    %1651 = vmatmul.mubr.f32.gmra.mrb[0].mxu0 %v1581
    %v1652 = vpop.f32.mrb[0].mxu0
    %v1653 = vadd.f32 0.0, %v1652
    %v1654 = vpop.f32.mrb[0].mxu0
    %1655 = vmatprep.mubr.f32.mxu0 0.0
    %1656 = vmatmul.mubr.f32.gmra.mrb[0].mxu0 %v1584
    %v1657 = vpop.f32.mrb[0].mxu0
    %v1658 = vadd.f32 0.0, %v1657
    %v1659 = vpop.f32.mrb[0].mxu0
    %1660 = vdwg.mxu0
    %v1661 = vadd.f32 %v1372, %v1653
    %v1662 = vadd.f32 %v1377, %v1658
    %1663 = vrot.lane.b32.xlu0 %v807, 104
    %v1664 = vpop.permute.xlu0 %1663
    %1665 = vrot.lane.b32.xlu0 %v812, 104
    %v1666 = vpop.permute.xlu0 %1665
    %1667 = vrot.lane.b32.xlu0 %v807, 72
    %v1668 = vpop.permute.xlu0 %1667
    %1669 = vrot.lane.b32.xlu0 %v812, 72
    %v1670 = vpop.permute.xlu0 %1669
    %v1671 = vsel %vm825, %v1664, 0
    %v1673 = vsel %vm825, %v1666, 0
    %v1675 = vsel %vm825, %v1668, 0
    %v1677 = vsel %vm825, %v1670, 0
    %1679 = vmatprep.subr.mxu0 0.0
    %1680 = vmatpush1.xpose.msra.mxu0 %v1675
    %1681 = vmatprep.subr.mxu0 0.0
    %1682 = vmatpush1.xpose.msra.mxu0 %v1677
    %1683 = vmatprep.subr.mxu0 0.0
    %1684 = vmatpush1.xpose.msra.mxu0 0.0
    %1685 = vmatprep.subr.mxu0 0.0
    %1686 = vmatpush1.xpose.msra.mxu0 0.0
    %1687 = vmatprep.subr.mxu0 0.0
    %1688 = vmatpush1.xpose.msra.mxu0 0.0
    %1689 = vmatprep.subr.mxu0 0.0
    %1690 = vmatpush1.xpose.msra.mxu0 0.0
    %1691 = vmatprep.subr.mxu0 0.0
    %1692 = vmatpush1.xpose.msra.mxu0 0.0
    %1693 = vmatprep.subr.mxu0 0.0
    %1694 = vmatpush1.xpose.msra.mxu0 0.0
    %1695 = vmatprep.subr.mxu0 0.0
    %1696 = vmatpush1.xpose.msra.mxu0 0.0
    %1697 = vmatprep.subr.mxu0 0.0
    %1698 = vmatpush1.xpose.msra.mxu0 0.0
    %1699 = vmatprep.subr.mxu0 0.0
    %1700 = vmatpush1.xpose.msra.mxu0 0.0
    %1701 = vmatprep.subr.mxu0 0.0
    %1702 = vmatpush1.xpose.msra.mxu0 0.0
    %1703 = vmatprep.subr.mxu0 0.0
    %1704 = vmatpush1.xpose.msra.mxu0 0.0
    %1705 = vmatprep.subr.mxu0 0.0
    %1706 = vmatpush1.xpose.msra.mxu0 0.0
    %1707 = vmatprep.subr.mxu0 0.0
    %1708 = vmatpush1.xpose.msra.mxu0 0.0
    %1709 = vmatprep.subr.mxu0 0.0
    %1710 = vmatpush1.xpose.msra.mxu0 0.0
    %1711 = vmatprep.subr.mxu0 0.0
    %1712 = vmatpush1.xpose.msra.mxu0 0.0
    %1713 = vmatprep.subr.mxu0 0.0
    %1714 = vmatpush1.xpose.msra.mxu0 0.0
    %1715 = vmatprep.subr.mxu0 0.0
    %1716 = vmatpush1.xpose.msra.mxu0 0.0
    %1717 = vmatprep.subr.mxu0 0.0
    %1718 = vmatpush1.xpose.msra.mxu0 0.0
    %1719 = vmatprep.subr.mxu0 0.0
    %1720 = vmatpush1.xpose.msra.mxu0 0.0
    %1721 = vmatprep.subr.mxu0 0.0
    %1722 = vmatpush1.xpose.msra.mxu0 0.0
    %1723 = vmatprep.subr.mxu0 0.0
    %1724 = vmatpush1.xpose.msra.mxu0 0.0
    %1725 = vmatprep.subr.mxu0 0.0
    %1726 = vmatpush1.xpose.msra.mxu0 0.0
    %1727 = vmatprep.subr.mxu0 0.0
    %1728 = vmatpush1.xpose.msra.mxu0 0.0
    %1729 = vmatprep.subr.mxu0 0.0
    %1730 = vmatpush1.xpose.msra.mxu0 0.0
    %1731 = vmatprep.subr.mxu0 0.0
    %1732 = vmatpush1.xpose.msra.mxu0 0.0
    %1733 = vmatprep.subr.mxu0 0.0
    %1734 = vmatpush1.xpose.msra.mxu0 0.0
    %1735 = vmatprep.subr.mxu0 0.0
    %1736 = vmatpush1.xpose.msra.mxu0 0.0
    %1737 = vmatprep.subr.mxu0 0.0
    %1738 = vmatpush1.xpose.msra.mxu0 0.0
    %1739 = vmatprep.subr.mxu0 0.0
    %1740 = vmatpush1.xpose.msra.mxu0 0.0
    %1741 = vmatprep.subr.mxu0 0.0
    %1742 = vmatpush1.xpose.msra.mxu0 0.0
    %1743 = vmatprep.mubr.f32.mxu0 0.0
    %1744 = vmatmul.mubr.f32.gmra.mrb[0].mxu0 %v1671
    %v1745 = vpop.f32.mrb[0].mxu0
    %v1746 = vadd.f32 %v681, %v1745
    %v1747 = vpop.f32.mrb[0].mxu0
    %1748 = vmatprep.mubr.f32.mxu0 0.0
    %1749 = vmatmul.mubr.f32.gmra.mrb[0].mxu0 %v1673
    %v1750 = vpop.f32.mrb[0].mxu0
    %v1751 = vadd.f32 %v682, %v1750
    %v1752 = vpop.f32.mrb[0].mxu0
    %1753 = vdwg.mxu0
    %v1754 = vsel %vm590, %v1746, -inf
    %1755 = vmax.xlane.f32.xlu0 %v1754
    %v1756 = vpop.xlane.xlu0 %1755
    %v1757 = vsel %vm590, %v1751, -inf
    %1758 = vmax.xlane.f32.xlu0 %v1757
    %v1759 = vpop.xlane.xlu0 %1758
    %v1760 = vsub.f32 %v1746, %v1756
    %v1761 = vsub.f32 %v1751, %v1759
    %v1762 = vmul.f32 %v1760, 1.442695
    %v1763 = vpow.pop %v1762
    %v1764 = vmul.f32 %v1761, 1.442695
    %v1765 = vpow.pop %v1764
    %v1766 = vsel %vm590, %v1763, 0.0
    %1767 = vadd.xlane.f32.xlu0 %v1766
    %v1768 = vpop.xlane.xlu0 %1767
    %v1769 = vsel %vm590, %v1765, 0.0
    %1770 = vadd.xlane.f32.xlu0 %v1769
    %v1771 = vpop.xlane.xlu0 %1770
    %v1772 = vrcp.pop %v1768
    %v1773 = vrcp.pop %v1771
    %v1774 = vmul.f32 %v1763, %v1772
    %v1775 = vmul.f32 %v1765, %v1773
    %1776 = vrot.lane.b32.xlu0 %v807, 40
    %v1777 = vpop.permute.xlu0 %1776
    %1778 = vrot.lane.b32.xlu0 %v812, 40
    %v1779 = vpop.permute.xlu0 %1778
    %v1783 = vsel %vm590, %v1774, 0
    %v1786 = vsel %vm590, %v1775, 0
    %1788 = vmatprep.subr.mxu0 0.0
    %1789 = vmatpush1.msra.mxu0 %v1777
    %1790 = vmatprep.subr.mxu0 0.0
    %1791 = vmatpush1.msra.mxu0 %v1779
    %1792 = vmatprep.subr.mxu0 0.0
    %1793 = vmatpush1.msra.mxu0 0.0
    %1794 = vmatprep.subr.mxu0 0.0
    %1795 = vmatpush1.msra.mxu0 0.0
    %1796 = vmatprep.subr.mxu0 0.0
    %1797 = vmatpush1.msra.mxu0 0.0
    %1798 = vmatprep.subr.mxu0 0.0
    %1799 = vmatpush1.msra.mxu0 0.0
    %1800 = vmatprep.subr.mxu0 0.0
    %1801 = vmatpush1.msra.mxu0 0.0
    %1802 = vmatprep.subr.mxu0 0.0
    %1803 = vmatpush1.msra.mxu0 0.0
    %1804 = vmatprep.subr.mxu0 0.0
    %1805 = vmatpush1.msra.mxu0 0.0
    %1806 = vmatprep.subr.mxu0 0.0
    %1807 = vmatpush1.msra.mxu0 0.0
    %1808 = vmatprep.subr.mxu0 0.0
    %1809 = vmatpush1.msra.mxu0 0.0
    %1810 = vmatprep.subr.mxu0 0.0
    %1811 = vmatpush1.msra.mxu0 0.0
    %1812 = vmatprep.subr.mxu0 0.0
    %1813 = vmatpush1.msra.mxu0 0.0
    %1814 = vmatprep.subr.mxu0 0.0
    %1815 = vmatpush1.msra.mxu0 0.0
    %1816 = vmatprep.subr.mxu0 0.0
    %1817 = vmatpush1.msra.mxu0 0.0
    %1818 = vmatprep.subr.mxu0 0.0
    %1819 = vmatpush1.msra.mxu0 0.0
    %1820 = vmatprep.subr.mxu0 0.0
    %1821 = vmatpush1.msra.mxu0 0.0
    %1822 = vmatprep.subr.mxu0 0.0
    %1823 = vmatpush1.msra.mxu0 0.0
    %1824 = vmatprep.subr.mxu0 0.0
    %1825 = vmatpush1.msra.mxu0 0.0
    %1826 = vmatprep.subr.mxu0 0.0
    %1827 = vmatpush1.msra.mxu0 0.0
    %1828 = vmatprep.subr.mxu0 0.0
    %1829 = vmatpush1.msra.mxu0 0.0
    %1830 = vmatprep.subr.mxu0 0.0
    %1831 = vmatpush1.msra.mxu0 0.0
    %1832 = vmatprep.subr.mxu0 0.0
    %1833 = vmatpush1.msra.mxu0 0.0
    %1834 = vmatprep.subr.mxu0 0.0
    %1835 = vmatpush1.msra.mxu0 0.0
    %1836 = vmatprep.subr.mxu0 0.0
    %1837 = vmatpush1.msra.mxu0 0.0
    %1838 = vmatprep.subr.mxu0 0.0
    %1839 = vmatpush1.msra.mxu0 0.0
    %1840 = vmatprep.subr.mxu0 0.0
    %1841 = vmatpush1.msra.mxu0 0.0
    %1842 = vmatprep.subr.mxu0 0.0
    %1843 = vmatpush1.msra.mxu0 0.0
    %1844 = vmatprep.subr.mxu0 0.0
    %1845 = vmatpush1.msra.mxu0 0.0
    %1846 = vmatprep.subr.mxu0 0.0
    %1847 = vmatpush1.msra.mxu0 0.0
    %1848 = vmatprep.subr.mxu0 0.0
    %1849 = vmatpush1.msra.mxu0 0.0
    %1850 = vmatprep.subr.mxu0 0.0
    %1851 = vmatpush1.msra.mxu0 0.0
    %1852 = vmatprep.mubr.f32.mxu0 0.0
    %1853 = vmatmul.mubr.f32.gmra.mrb[0].mxu0 %v1783
    %v1854 = vpop.f32.mrb[0].mxu0
    %v1855 = vadd.f32 0.0, %v1854
    %v1856 = vpop.f32.mrb[0].mxu0
    %1857 = vmatprep.mubr.f32.mxu0 0.0
    %1858 = vmatmul.mubr.f32.gmra.mrb[0].mxu0 %v1786
    %v1859 = vpop.f32.mrb[0].mxu0
    %v1860 = vadd.f32 0.0, %v1859
    %v1861 = vpop.f32.mrb[0].mxu0
    %1862 = vdwg.mxu0
    %v1864 = vsel %vm825, %v1855, 0
    %v1867 = vsel %vm825, %v1860, 0
    %1869 = vmatprep.subr.mxu0 0.0
    %1870 = vmatpush1.msra.mxu0 %v818
    %1871 = vmatprep.subr.mxu0 0.0
    %1872 = vmatpush1.msra.mxu0 0.0
    %1873 = vmatprep.subr.mxu0 0.0
    %1874 = vmatpush1.msra.mxu0 0.0
    %1875 = vmatprep.subr.mxu0 0.0
    %1876 = vmatpush1.msra.mxu0 0.0
    %1877 = vmatprep.subr.mxu0 0.0
    %1878 = vmatpush1.msra.mxu0 0.0
    %1879 = vmatprep.subr.mxu0 0.0
    %1880 = vmatpush1.msra.mxu0 0.0
    %1881 = vmatprep.subr.mxu0 0.0
    %1882 = vmatpush1.msra.mxu0 0.0
    %1883 = vmatprep.subr.mxu0 0.0
    %1884 = vmatpush1.msra.mxu0 0.0
    %1885 = vmatprep.subr.mxu0 0.0
    %1886 = vmatpush1.msra.mxu0 0.0
    %1887 = vmatprep.subr.mxu0 0.0
    %1888 = vmatpush1.msra.mxu0 0.0
    %1889 = vmatprep.subr.mxu0 0.0
    %1890 = vmatpush1.msra.mxu0 0.0
    %1891 = vmatprep.subr.mxu0 0.0
    %1892 = vmatpush1.msra.mxu0 0.0
    %1893 = vmatprep.subr.mxu0 0.0
    %1894 = vmatpush1.msra.mxu0 0.0
    %1895 = vmatprep.subr.mxu0 0.0
    %1896 = vmatpush1.msra.mxu0 0.0
    %1897 = vmatprep.subr.mxu0 0.0
    %1898 = vmatpush1.msra.mxu0 0.0
    %1899 = vmatprep.subr.mxu0 0.0
    %1900 = vmatpush1.msra.mxu0 0.0
    %1901 = vmatprep.subr.mxu0 0.0
    %1902 = vmatpush1.msra.mxu0 0.0
    %1903 = vmatprep.subr.mxu0 0.0
    %1904 = vmatpush1.msra.mxu0 0.0
    %1905 = vmatprep.subr.mxu0 0.0
    %1906 = vmatpush1.msra.mxu0 0.0
    %1907 = vmatprep.subr.mxu0 0.0
    %1908 = vmatpush1.msra.mxu0 0.0
    %1909 = vmatprep.subr.mxu0 0.0
    %1910 = vmatpush1.msra.mxu0 0.0
    %1911 = vmatprep.subr.mxu0 0.0
    %1912 = vmatpush1.msra.mxu0 0.0
    %1913 = vmatprep.subr.mxu0 0.0
    %1914 = vmatpush1.msra.mxu0 0.0
    %1915 = vmatprep.subr.mxu0 0.0
    %1916 = vmatpush1.msra.mxu0 0.0
    %1917 = vmatprep.subr.mxu0 0.0
    %1918 = vmatpush1.msra.mxu0 0.0
    %1919 = vmatprep.subr.mxu0 0.0
    %1920 = vmatpush1.msra.mxu0 0.0
    %1921 = vmatprep.subr.mxu0 0.0
    %1922 = vmatpush1.msra.mxu0 0.0
    %1923 = vmatprep.subr.mxu0 0.0
    %1924 = vmatpush1.msra.mxu0 0.0
    %1925 = vmatprep.subr.mxu0 0.0
    %1926 = vmatpush1.msra.mxu0 0.0
    %1927 = vmatprep.subr.mxu0 0.0
    %1928 = vmatpush1.msra.mxu0 0.0
    %1929 = vmatprep.subr.mxu0 0.0
    %1930 = vmatpush1.msra.mxu0 0.0
    %1931 = vmatprep.subr.mxu0 0.0
    %1932 = vmatpush1.msra.mxu0 0.0
    %1933 = vmatprep.mubr.f32.mxu0 0.0
    %1934 = vmatmul.mubr.f32.gmra.mrb[0].mxu0 %v1864
    %v1935 = vpop.f32.mrb[0].mxu0
    %v1936 = vadd.f32 0.0, %v1935
    %v1937 = vpop.f32.mrb[0].mxu0
    %1938 = vmatprep.mubr.f32.mxu0 0.0
    %1939 = vmatmul.mubr.f32.gmra.mrb[0].mxu0 %v1867
    %v1940 = vpop.f32.mrb[0].mxu0
    %v1941 = vadd.f32 0.0, %v1940
    %v1942 = vpop.f32.mrb[0].mxu0
    %1943 = vdwg.mxu0
    %v1944 = vadd.f32 %v1661, %v1936
    %v1945 = vadd.f32 %v1662, %v1941
    %v1946 = vadd.f32 %v679, %v1944
    %v1947 = vadd.f32 %v680, %v1945
    %v1948 = vld [vmem:[#allocation2 + $0xd0] sm:$0x1]
    %v1949 = vlaneseq
    %v1950 = vshrl.u32 %v1949, 7
    %v1951 = vsub.s32 0, %v1950
    %v1952 = vrot.slane %v1948, %v1951
    %v1953 = vadd.f32 %v1946, %v1952
    %v1954 = vadd.f32 %v1947, %v1952
    %v1955 = vld [vmem:[#allocation2 + $0xd8] sm:$0x1]
    %v1956 = vld [vmem:[#allocation2 + $0xe0] sm:$0x1]
    %v1957 = vsel %vm685, %v1953, 0.0
    %1958 = vadd.xlane.f32.xlu0 %v1957
    %v1959 = vpop.xlane.xlu0 %1958
    %v1960 = vsel %vm685, %v1954, 0.0
    %1961 = vadd.xlane.f32.xlu0 %v1960
    %v1962 = vpop.xlane.xlu0 %1961
    %v1963 = vmul.f32 %v1959, %v692
    %v1964 = vmul.f32 %v1962, %v692
    %v1965 = vsub.f32 %v1953, %v1963
    %v1966 = vsub.f32 %v1954, %v1964
    %v1967 = vmul.f32 %v1965, %v1965
    %v1968 = vmul.f32 %v1966, %v1966
    %v1969 = vsel %vm685, %v1967, 0.0
    %1970 = vadd.xlane.f32.xlu0 %v1969
    %v1971 = vpop.xlane.xlu0 %1970
    %v1972 = vsel %vm685, %v1968, 0.0
    %1973 = vadd.xlane.f32.xlu0 %v1972
    %v1974 = vpop.xlane.xlu0 %1973
    %v1975 = vmul.f32 %v1971, %v692
    %v1976 = vmul.f32 %v1974, %v692
    %v1977 = vadd.f32 %v1975, 1e-05
    %v1978 = vadd.f32 %v1976, 1e-05
    %v1979 = vrsqrt.pop %v1977
    %v1980 = vrsqrt.pop %v1978
    %v1981 = vmul.f32 %v1965, %v1979
    %v1982 = vmul.f32 %v1966, %v1980
    %v1983 = vlaneseq
    %v1984 = vshrl.u32 %v1983, 7
    %v1985 = vsub.s32 0, %v1984
    %v1986 = vrot.slane %v1955, %v1985
    %v1987 = vmul.f32 %v1981, %v1986
    %v1988 = vmul.f32 %v1982, %v1986
    %v1989 = vlaneseq
    %v1990 = vshrl.u32 %v1989, 7
    %v1991 = vsub.s32 0, %v1990
    %v1992 = vrot.slane %v1956, %v1991
    %v1993 = vadd.f32 %v1987, %v1992
    %v1994 = vadd.f32 %v1988, %v1992
    %v1995 = vld [vmem:[#allocation2 + $0xe8] sm:$0xff]
    %v1996 = vld [vmem:[#allocation2 + $0xf0] sm:$0xff]
    %v1997 = vld [vmem:[#allocation2 + $0xf8] sm:$0xff]
    %v1998 = vld [vmem:[#allocation2 + $0x100] sm:$0xff]
    %v1999 = vld [vmem:[#allocation2 + $0x108] sm:$0x1]
    %v2000 = vlaneseq
    %v2001 = vshrl.u32 %v2000, 7
    %v2002 = vsub.s32 0, %v2001
    %v2003 = vrot.slane %v1999, %v2002
    %v2005 = vsel %vm685, %v1993, 0
    %v2008 = vsel %vm685, %v1994, 0
    %2010 = vmatprep.subr.mxu0 0.0
    %2011 = vmatpush1.msra.mxu0 %v1995
    %2012 = vmatprep.subr.mxu0 0.0
    %2013 = vmatpush1.msra.mxu0 %v1996
    %2014 = vmatprep.subr.mxu0 0.0
    %2015 = vmatpush1.msra.mxu0 %v1997
    %2016 = vmatprep.subr.mxu0 0.0
    %2017 = vmatpush1.msra.mxu0 %v1998
    %2018 = vmatprep.subr.mxu0 0.0
    %2019 = vmatpush1.msra.mxu0 0.0
    %2020 = vmatprep.subr.mxu0 0.0
    %2021 = vmatpush1.msra.mxu0 0.0
    %2022 = vmatprep.subr.mxu0 0.0
    %2023 = vmatpush1.msra.mxu0 0.0
    %2024 = vmatprep.subr.mxu0 0.0
    %2025 = vmatpush1.msra.mxu0 0.0
    %2026 = vmatprep.subr.mxu0 0.0
    %2027 = vmatpush1.msra.mxu0 0.0
    %2028 = vmatprep.subr.mxu0 0.0
    %2029 = vmatpush1.msra.mxu0 0.0
    %2030 = vmatprep.subr.mxu0 0.0
    %2031 = vmatpush1.msra.mxu0 0.0
    %2032 = vmatprep.subr.mxu0 0.0
    %2033 = vmatpush1.msra.mxu0 0.0
    %2034 = vmatprep.subr.mxu0 0.0
    %2035 = vmatpush1.msra.mxu0 0.0
    %2036 = vmatprep.subr.mxu0 0.0
    %2037 = vmatpush1.msra.mxu0 0.0
    %2038 = vmatprep.subr.mxu0 0.0
    %2039 = vmatpush1.msra.mxu0 0.0
    %2040 = vmatprep.subr.mxu0 0.0
    %2041 = vmatpush1.msra.mxu0 0.0
    %2042 = vmatprep.subr.mxu0 0.0
    %2043 = vmatpush1.msra.mxu0 0.0
    %2044 = vmatprep.subr.mxu0 0.0
    %2045 = vmatpush1.msra.mxu0 0.0
    %2046 = vmatprep.subr.mxu0 0.0
    %2047 = vmatpush1.msra.mxu0 0.0
    %2048 = vmatprep.subr.mxu0 0.0
    %2049 = vmatpush1.msra.mxu0 0.0
    %2050 = vmatprep.subr.mxu0 0.0
    %2051 = vmatpush1.msra.mxu0 0.0
    %2052 = vmatprep.subr.mxu0 0.0
    %2053 = vmatpush1.msra.mxu0 0.0
    %2054 = vmatprep.subr.mxu0 0.0
    %2055 = vmatpush1.msra.mxu0 0.0
    %2056 = vmatprep.subr.mxu0 0.0
    %2057 = vmatpush1.msra.mxu0 0.0
    %2058 = vmatprep.subr.mxu0 0.0
    %2059 = vmatpush1.msra.mxu0 0.0
    %2060 = vmatprep.subr.mxu0 0.0
    %2061 = vmatpush1.msra.mxu0 0.0
    %2062 = vmatprep.subr.mxu0 0.0
    %2063 = vmatpush1.msra.mxu0 0.0
    %2064 = vmatprep.subr.mxu0 0.0
    %2065 = vmatpush1.msra.mxu0 0.0
    %2066 = vmatprep.subr.mxu0 0.0
    %2067 = vmatpush1.msra.mxu0 0.0
    %2068 = vmatprep.subr.mxu0 0.0
    %2069 = vmatpush1.msra.mxu0 0.0
    %2070 = vmatprep.subr.mxu0 0.0
    %2071 = vmatpush1.msra.mxu0 0.0
    %2072 = vmatprep.subr.mxu0 0.0
    %2073 = vmatpush1.msra.mxu0 0.0
    %2074 = vmatprep.mubr.f32.mxu0 0.0
    %2075 = vmatmul.mubr.f32.gmra.mrb[0].mxu0 %v2005
    %v2076 = vpop.f32.mrb[0].mxu0
    %v2077 = vadd.f32 %v2003, %v2076
    %v2078 = vpop.f32.mrb[0].mxu0
    %2079 = vmatprep.mubr.f32.mxu0 0.0
    %2080 = vmatmul.mubr.f32.gmra.mrb[0].mxu0 %v2008
    %v2081 = vpop.f32.mrb[0].mxu0
    %v2082 = vadd.f32 %v2003, %v2081
    %v2083 = vpop.f32.mrb[0].mxu0
    %2084 = vdwg.mxu0
    %v2085 = vmul.f32 %v2077, %v2077
    %v2086 = vmul.f32 %v2082, %v2082
    %v2087 = vmul.f32 %v2077, %v2085
    %v2088 = vmul.f32 %v2082, %v2086
    %v2089 = vmul.f32 %v2087, 0.044715
    %v2090 = vmul.f32 %v2088, 0.044715
    %v2091 = vadd.f32 %v2077, %v2089
    %v2092 = vadd.f32 %v2082, %v2090
    %v2093 = vmul.f32 %v2091, 0.7978846
    %v2094 = vmul.f32 %v2092, 0.7978846
    %v2095 = vtanh.pop %v2093
    %v2096 = vtanh.pop %v2094
    %v2097 = vadd.f32 %v2095, 1.0
    %v2098 = vadd.f32 %v2096, 1.0
    %v2099 = vmul.f32 %v2097, 0.5
    %v2100 = vmul.f32 %v2098, 0.5
    %v2101 = vmul.f32 %v2077, %v2099
    %v2102 = vmul.f32 %v2082, %v2100
    %v2103 = vld [vmem:[#allocation2 + $0x110] sm:$0xff]
    %v2104 = vld [vmem:[#allocation2 + $0x118] sm:$0xff]
    %v2105 = vld [vmem:[#allocation2 + $0x120] sm:$0xff]
    %v2106 = vld [vmem:[#allocation2 + $0x128] sm:$0xff]
    %v2107 = vld [vmem:[#allocation2 + $0x130] sm:$0xff]
    %v2108 = vld [vmem:[#allocation2 + $0x138] sm:$0xff]
    %v2109 = vld [vmem:[#allocation2 + $0x140] sm:$0xff]
    %v2110 = vld [vmem:[#allocation2 + $0x148] sm:$0xff]
    %v2112 = vsel %vm289, %v2101, 0
    %v2115 = vsel %vm289, %v2102, 0
    %2117 = vmatprep.subr.mxu0 0.0
    %2118 = vmatpush1.msra.mxu0 %v2103
    %2119 = vmatprep.subr.mxu0 0.0
    %2120 = vmatpush1.msra.mxu0 %v2104
    %2121 = vmatprep.subr.mxu0 0.0
    %2122 = vmatpush1.msra.mxu0 %v2105
    %2123 = vmatprep.subr.mxu0 0.0
    %2124 = vmatpush1.msra.mxu0 %v2106
    %2125 = vmatprep.subr.mxu0 0.0
    %2126 = vmatpush1.msra.mxu0 %v2107
    %2127 = vmatprep.subr.mxu0 0.0
    %2128 = vmatpush1.msra.mxu0 %v2108
    %2129 = vmatprep.subr.mxu0 0.0
    %2130 = vmatpush1.msra.mxu0 %v2109
    %2131 = vmatprep.subr.mxu0 0.0
    %2132 = vmatpush1.msra.mxu0 %v2110
    %2133 = vmatprep.subr.mxu0 0.0
    %2134 = vmatpush1.msra.mxu0 0.0
    %2135 = vmatprep.subr.mxu0 0.0
    %2136 = vmatpush1.msra.mxu0 0.0
    %2137 = vmatprep.subr.mxu0 0.0
    %2138 = vmatpush1.msra.mxu0 0.0
    %2139 = vmatprep.subr.mxu0 0.0
    %2140 = vmatpush1.msra.mxu0 0.0
    %2141 = vmatprep.subr.mxu0 0.0
    %2142 = vmatpush1.msra.mxu0 0.0
    %2143 = vmatprep.subr.mxu0 0.0
    %2144 = vmatpush1.msra.mxu0 0.0
    %2145 = vmatprep.subr.mxu0 0.0
    %2146 = vmatpush1.msra.mxu0 0.0
    %2147 = vmatprep.subr.mxu0 0.0
    %2148 = vmatpush1.msra.mxu0 0.0
    %2149 = vmatprep.subr.mxu0 0.0
    %2150 = vmatpush1.msra.mxu0 0.0
    %2151 = vmatprep.subr.mxu0 0.0
    %2152 = vmatpush1.msra.mxu0 0.0
    %2153 = vmatprep.subr.mxu0 0.0
    %2154 = vmatpush1.msra.mxu0 0.0
    %2155 = vmatprep.subr.mxu0 0.0
    %2156 = vmatpush1.msra.mxu0 0.0
    %2157 = vmatprep.subr.mxu0 0.0
    %2158 = vmatpush1.msra.mxu0 0.0
    %2159 = vmatprep.subr.mxu0 0.0
    %2160 = vmatpush1.msra.mxu0 0.0
    %2161 = vmatprep.subr.mxu0 0.0
    %2162 = vmatpush1.msra.mxu0 0.0
    %2163 = vmatprep.subr.mxu0 0.0
    %2164 = vmatpush1.msra.mxu0 0.0
    %2165 = vmatprep.subr.mxu0 0.0
    %2166 = vmatpush1.msra.mxu0 0.0
    %2167 = vmatprep.subr.mxu0 0.0
    %2168 = vmatpush1.msra.mxu0 0.0
    %2169 = vmatprep.subr.mxu0 0.0
    %2170 = vmatpush1.msra.mxu0 0.0
    %2171 = vmatprep.subr.mxu0 0.0
    %2172 = vmatpush1.msra.mxu0 0.0
    %2173 = vmatprep.subr.mxu0 0.0
    %2174 = vmatpush1.msra.mxu0 0.0
    %2175 = vmatprep.subr.mxu0 0.0
    %2176 = vmatpush1.msra.mxu0 0.0
    %2177 = vmatprep.subr.mxu0 0.0
    %2178 = vmatpush1.msra.mxu0 0.0
    %2179 = vmatprep.subr.mxu0 0.0
    %2180 = vmatpush1.msra.mxu0 0.0
    %2181 = vmatprep.mubr.f32.mxu0 0.0
    %2182 = vmatmul.mubr.f32.gmra.mrb[0].mxu0 %v2112
    %v2183 = vpop.f32.mrb[0].mxu0
    %v2184 = vadd.f32 0.0, %v2183
    %v2185 = vpop.f32.mrb[0].mxu0
    %2186 = vmatprep.mubr.f32.mxu0 0.0
    %2187 = vmatmul.mubr.f32.gmra.mrb[0].mxu0 %v2115
    %v2188 = vpop.f32.mrb[0].mxu0
    %v2189 = vadd.f32 0.0, %v2188
    %v2190 = vpop.f32.mrb[0].mxu0
    %2191 = vdwg.mxu0
    %v2192 = vadd.f32 %v1953, %v2184
    %v2193 = vadd.f32 %v1954, %v2189
    %v2194 = vld [vmem:[#allocation2 + $0x150] sm:$0x1]
    %v2195 = vlaneseq
    %v2196 = vshrl.u32 %v2195, 7
    %v2197 = vsub.s32 0, %v2196
    %v2198 = vrot.slane %v2194, %v2197
    %v2199 = vadd.f32 %v2192, %v2198
    %v2200 = vadd.f32 %v2193, %v2198
    %v2201 = vld [vmem:[#allocation2 + $0x158] sm:$0x1]
    %v2202 = vld [vmem:[#allocation2 + $0x160] sm:$0x1]
    %v2203 = vsel %vm685, %v2199, 0.0
    %2204 = vadd.xlane.f32.xlu0 %v2203
    %v2205 = vpop.xlane.xlu0 %2204
    %v2206 = vsel %vm685, %v2200, 0.0
    %2207 = vadd.xlane.f32.xlu0 %v2206
    %v2208 = vpop.xlane.xlu0 %2207
    %v2209 = vmul.f32 %v2205, %v692
    %v2210 = vmul.f32 %v2208, %v692
    %v2211 = vsub.f32 %v2199, %v2209
    %v2212 = vsub.f32 %v2200, %v2210
    %v2213 = vmul.f32 %v2211, %v2211
    %v2214 = vmul.f32 %v2212, %v2212
    %v2215 = vsel %vm685, %v2213, 0.0
    %2216 = vadd.xlane.f32.xlu0 %v2215
    %v2217 = vpop.xlane.xlu0 %2216
    %v2218 = vsel %vm685, %v2214, 0.0
    %2219 = vadd.xlane.f32.xlu0 %v2218
    %v2220 = vpop.xlane.xlu0 %2219
    %v2221 = vmul.f32 %v2217, %v692
    %v2222 = vmul.f32 %v2220, %v692
    %v2223 = vadd.f32 %v2221, 1e-05
    %v2224 = vadd.f32 %v2222, 1e-05
    %v2225 = vrsqrt.pop %v2223
    %v2226 = vrsqrt.pop %v2224
    %v2227 = vmul.f32 %v2211, %v2225
    %v2228 = vmul.f32 %v2212, %v2226
    %v2229 = vlaneseq
    %v2230 = vshrl.u32 %v2229, 7
    %v2231 = vsub.s32 0, %v2230
    %v2232 = vrot.slane %v2201, %v2231
    %v2233 = vmul.f32 %v2227, %v2232
    %v2234 = vmul.f32 %v2228, %v2232
    %v2235 = vlaneseq
    %v2236 = vshrl.u32 %v2235, 7
    %v2237 = vsub.s32 0, %v2236
    %v2238 = vrot.slane %v2202, %v2237
    %v2239 = vadd.f32 %v2233, %v2238
    %v2240 = vadd.f32 %v2234, %v2238
    %v2241 = vld [vmem:[#allocation2 + $0x168] sm:$0xff]
    %v2242 = vld [vmem:[#allocation2 + $0x170] sm:$0xff]
    %v2243 = vld [vmem:[#allocation2 + $0x178] sm:$0xff]
    %v2244 = vld [vmem:[#allocation2 + $0x180] sm:$0xff]
    %v2245 = vld [vmem:[#allocation2 + $0x188] sm:$0x1]
    %v2246 = vlaneseq
    %v2247 = vshrl.u32 %v2246, 7
    %v2248 = vsub.s32 0, %v2247
    %v2249 = vrot.slane %v2245, %v2248
    %v2251 = vsel %vm685, %v2239, 0
    %v2254 = vsel %vm685, %v2240, 0
    %2256 = vmatprep.subr.mxu0 0.0
    %2257 = vmatpush1.msra.mxu0 %v2241
    %2258 = vmatprep.subr.mxu0 0.0
    %2259 = vmatpush1.msra.mxu0 %v2242
    %2260 = vmatprep.subr.mxu0 0.0
    %2261 = vmatpush1.msra.mxu0 %v2243
    %2262 = vmatprep.subr.mxu0 0.0
    %2263 = vmatpush1.msra.mxu0 %v2244
    %2264 = vmatprep.subr.mxu0 0.0
    %2265 = vmatpush1.msra.mxu0 0.0
    %2266 = vmatprep.subr.mxu0 0.0
    %2267 = vmatpush1.msra.mxu0 0.0
    %2268 = vmatprep.subr.mxu0 0.0
    %2269 = vmatpush1.msra.mxu0 0.0
    %2270 = vmatprep.subr.mxu0 0.0
    %2271 = vmatpush1.msra.mxu0 0.0
    %2272 = vmatprep.subr.mxu0 0.0
    %2273 = vmatpush1.msra.mxu0 0.0
    %2274 = vmatprep.subr.mxu0 0.0
    %2275 = vmatpush1.msra.mxu0 0.0
    %2276 = vmatprep.subr.mxu0 0.0
    %2277 = vmatpush1.msra.mxu0 0.0
    %2278 = vmatprep.subr.mxu0 0.0
    %2279 = vmatpush1.msra.mxu0 0.0
    %2280 = vmatprep.subr.mxu0 0.0
    %2281 = vmatpush1.msra.mxu0 0.0
    %2282 = vmatprep.subr.mxu0 0.0
    %2283 = vmatpush1.msra.mxu0 0.0
    %2284 = vmatprep.subr.mxu0 0.0
    %2285 = vmatpush1.msra.mxu0 0.0
    %2286 = vmatprep.subr.mxu0 0.0
    %2287 = vmatpush1.msra.mxu0 0.0
    %2288 = vmatprep.subr.mxu0 0.0
    %2289 = vmatpush1.msra.mxu0 0.0
    %2290 = vmatprep.subr.mxu0 0.0
    %2291 = vmatpush1.msra.mxu0 0.0
    %2292 = vmatprep.subr.mxu0 0.0
    %2293 = vmatpush1.msra.mxu0 0.0
    %2294 = vmatprep.subr.mxu0 0.0
    %2295 = vmatpush1.msra.mxu0 0.0
    %2296 = vmatprep.subr.mxu0 0.0
    %2297 = vmatpush1.msra.mxu0 0.0
    %2298 = vmatprep.subr.mxu0 0.0
    %2299 = vmatpush1.msra.mxu0 0.0
    %2300 = vmatprep.subr.mxu0 0.0
    %2301 = vmatpush1.msra.mxu0 0.0
    %2302 = vmatprep.subr.mxu0 0.0
    %2303 = vmatpush1.msra.mxu0 0.0
    %2304 = vmatprep.subr.mxu0 0.0
    %2305 = vmatpush1.msra.mxu0 0.0
    %2306 = vmatprep.subr.mxu0 0.0
    %2307 = vmatpush1.msra.mxu0 0.0
    %2308 = vmatprep.subr.mxu0 0.0
    %2309 = vmatpush1.msra.mxu0 0.0
    %2310 = vmatprep.subr.mxu0 0.0
    %2311 = vmatpush1.msra.mxu0 0.0
    %2312 = vmatprep.subr.mxu0 0.0
    %2313 = vmatpush1.msra.mxu0 0.0
    %2314 = vmatprep.subr.mxu0 0.0
    %2315 = vmatpush1.msra.mxu0 0.0
    %2316 = vmatprep.subr.mxu0 0.0
    %2317 = vmatpush1.msra.mxu0 0.0
    %2318 = vmatprep.subr.mxu0 0.0
    %2319 = vmatpush1.msra.mxu0 0.0
    %2320 = vmatprep.mubr.f32.mxu0 0.0
    %2321 = vmatmul.mubr.f32.gmra.mrb[0].mxu0 %v2251
    %v2322 = vpop.f32.mrb[0].mxu0
    %v2323 = vadd.f32 %v2249, %v2322
    %v2324 = vpop.f32.mrb[0].mxu0
    %2325 = vmatprep.mubr.f32.mxu0 0.0
    %2326 = vmatmul.mubr.f32.gmra.mrb[0].mxu0 %v2254
    %v2327 = vpop.f32.mrb[0].mxu0
    %v2328 = vadd.f32 %v2249, %v2327
    %v2329 = vpop.f32.mrb[0].mxu0
    %2330 = vdwg.mxu0
    %v2331 = vld [vmem:[#allocation2 + $0x190] sm:$0xff]
    %v2332 = vld [vmem:[#allocation2 + $0x198] sm:$0xff]
    %v2333 = vld [vmem:[#allocation2 + $0x1a0] sm:$0xff]
    %v2334 = vld [vmem:[#allocation2 + $0x1a8] sm:$0xff]
    %2337 = vrot.lane.b32.xlu0 %v2323, 96
    %v2338 = vpop.permute.xlu0 %2337
    %2339 = vrot.lane.b32.xlu0 %v2328, 96
    %v2340 = vpop.permute.xlu0 %2339
    %v2341 = vsel %vm825, %v2323, 0
    %v2343 = vsel %vm825, %v2328, 0
    %v2345 = vsel %vm825, %v2338, 0
    %v2347 = vsel %vm825, %v2340, 0
    %2349 = vmatprep.subr.mxu0 0.0
    %2350 = vmatpush1.xpose.msra.mxu0 %v2345
    %2351 = vmatprep.subr.mxu0 0.0
    %2352 = vmatpush1.xpose.msra.mxu0 %v2347
    %2353 = vmatprep.subr.mxu0 0.0
    %2354 = vmatpush1.xpose.msra.mxu0 0.0
    %2355 = vmatprep.subr.mxu0 0.0
    %2356 = vmatpush1.xpose.msra.mxu0 0.0
    %2357 = vmatprep.subr.mxu0 0.0
    %2358 = vmatpush1.xpose.msra.mxu0 0.0
    %2359 = vmatprep.subr.mxu0 0.0
    %2360 = vmatpush1.xpose.msra.mxu0 0.0
    %2361 = vmatprep.subr.mxu0 0.0
    %2362 = vmatpush1.xpose.msra.mxu0 0.0
    %2363 = vmatprep.subr.mxu0 0.0
    %2364 = vmatpush1.xpose.msra.mxu0 0.0
    %2365 = vmatprep.subr.mxu0 0.0
    %2366 = vmatpush1.xpose.msra.mxu0 0.0
    %2367 = vmatprep.subr.mxu0 0.0
    %2368 = vmatpush1.xpose.msra.mxu0 0.0
    %2369 = vmatprep.subr.mxu0 0.0
    %2370 = vmatpush1.xpose.msra.mxu0 0.0
    %2371 = vmatprep.subr.mxu0 0.0
    %2372 = vmatpush1.xpose.msra.mxu0 0.0
    %2373 = vmatprep.subr.mxu0 0.0
    %2374 = vmatpush1.xpose.msra.mxu0 0.0
    %2375 = vmatprep.subr.mxu0 0.0
    %2376 = vmatpush1.xpose.msra.mxu0 0.0
    %2377 = vmatprep.subr.mxu0 0.0
    %2378 = vmatpush1.xpose.msra.mxu0 0.0
    %2379 = vmatprep.subr.mxu0 0.0
    %2380 = vmatpush1.xpose.msra.mxu0 0.0
    %2381 = vmatprep.subr.mxu0 0.0
    %2382 = vmatpush1.xpose.msra.mxu0 0.0
    %2383 = vmatprep.subr.mxu0 0.0
    %2384 = vmatpush1.xpose.msra.mxu0 0.0
    %2385 = vmatprep.subr.mxu0 0.0
    %2386 = vmatpush1.xpose.msra.mxu0 0.0
    %2387 = vmatprep.subr.mxu0 0.0
    %2388 = vmatpush1.xpose.msra.mxu0 0.0
    %2389 = vmatprep.subr.mxu0 0.0
    %2390 = vmatpush1.xpose.msra.mxu0 0.0
    %2391 = vmatprep.subr.mxu0 0.0
    %2392 = vmatpush1.xpose.msra.mxu0 0.0
    %2393 = vmatprep.subr.mxu0 0.0
    %2394 = vmatpush1.xpose.msra.mxu0 0.0
    %2395 = vmatprep.subr.mxu0 0.0
    %2396 = vmatpush1.xpose.msra.mxu0 0.0
    %2397 = vmatprep.subr.mxu0 0.0
    %2398 = vmatpush1.xpose.msra.mxu0 0.0
    %2399 = vmatprep.subr.mxu0 0.0
    %2400 = vmatpush1.xpose.msra.mxu0 0.0
    %2401 = vmatprep.subr.mxu0 0.0
    %2402 = vmatpush1.xpose.msra.mxu0 0.0
    %2403 = vmatprep.subr.mxu0 0.0
    %2404 = vmatpush1.xpose.msra.mxu0 0.0
    %2405 = vmatprep.subr.mxu0 0.0
    %2406 = vmatpush1.xpose.msra.mxu0 0.0
    %2407 = vmatprep.subr.mxu0 0.0
    %2408 = vmatpush1.xpose.msra.mxu0 0.0
    %2409 = vmatprep.subr.mxu0 0.0
    %2410 = vmatpush1.xpose.msra.mxu0 0.0
    %2411 = vmatprep.subr.mxu0 0.0
    %2412 = vmatpush1.xpose.msra.mxu0 0.0
    %2413 = vmatprep.mubr.f32.mxu0 0.0
    %2414 = vmatmul.mubr.f32.gmra.mrb[0].mxu0 %v2341
    %v2415 = vpop.f32.mrb[0].mxu0
    %v2416 = vadd.f32 %v681, %v2415
    %v2417 = vpop.f32.mrb[0].mxu0
    %2418 = vmatprep.mubr.f32.mxu0 0.0
    %2419 = vmatmul.mubr.f32.gmra.mrb[0].mxu0 %v2343
    %v2420 = vpop.f32.mrb[0].mxu0
    %v2421 = vadd.f32 %v682, %v2420
    %v2422 = vpop.f32.mrb[0].mxu0
    %2423 = vdwg.mxu0
    %v2424 = vsel %vm590, %v2416, -inf
    %2425 = vmax.xlane.f32.xlu0 %v2424
    %v2426 = vpop.xlane.xlu0 %2425
    %v2427 = vsel %vm590, %v2421, -inf
    %2428 = vmax.xlane.f32.xlu0 %v2427
    %v2429 = vpop.xlane.xlu0 %2428
    %v2430 = vsub.f32 %v2416, %v2426
    %v2431 = vsub.f32 %v2421, %v2429
    %v2432 = vmul.f32 %v2430, 1.442695
    %v2433 = vpow.pop %v2432
    %v2434 = vmul.f32 %v2431, 1.442695
    %v2435 = vpow.pop %v2434
    %v2436 = vsel %vm590, %v2433, 0.0
    %2437 = vadd.xlane.f32.xlu0 %v2436
    %v2438 = vpop.xlane.xlu0 %2437
    %v2439 = vsel %vm590, %v2435, 0.0
    %2440 = vadd.xlane.f32.xlu0 %v2439
    %v2441 = vpop.xlane.xlu0 %2440
    %v2442 = vrcp.pop %v2438
    %v2443 = vrcp.pop %v2441
    %v2444 = vmul.f32 %v2433, %v2442
    %v2445 = vmul.f32 %v2435, %v2443
    %2446 = vrot.lane.b32.xlu0 %v2323, 64
    %v2447 = vpop.permute.xlu0 %2446
    %2448 = vrot.lane.b32.xlu0 %v2328, 64
    %v2449 = vpop.permute.xlu0 %2448
    %v2453 = vsel %vm590, %v2444, 0
    %v2456 = vsel %vm590, %v2445, 0
    %2458 = vmatprep.subr.mxu0 0.0
    %2459 = vmatpush1.msra.mxu0 %v2447
    %2460 = vmatprep.subr.mxu0 0.0
    %2461 = vmatpush1.msra.mxu0 %v2449
    %2462 = vmatprep.subr.mxu0 0.0
    %2463 = vmatpush1.msra.mxu0 0.0
    %2464 = vmatprep.subr.mxu0 0.0
    %2465 = vmatpush1.msra.mxu0 0.0
    %2466 = vmatprep.subr.mxu0 0.0
    %2467 = vmatpush1.msra.mxu0 0.0
    %2468 = vmatprep.subr.mxu0 0.0
    %2469 = vmatpush1.msra.mxu0 0.0
    %2470 = vmatprep.subr.mxu0 0.0
    %2471 = vmatpush1.msra.mxu0 0.0
    %2472 = vmatprep.subr.mxu0 0.0
    %2473 = vmatpush1.msra.mxu0 0.0
    %2474 = vmatprep.subr.mxu0 0.0
    %2475 = vmatpush1.msra.mxu0 0.0
    %2476 = vmatprep.subr.mxu0 0.0
    %2477 = vmatpush1.msra.mxu0 0.0
    %2478 = vmatprep.subr.mxu0 0.0
    %2479 = vmatpush1.msra.mxu0 0.0
    %2480 = vmatprep.subr.mxu0 0.0
    %2481 = vmatpush1.msra.mxu0 0.0
    %2482 = vmatprep.subr.mxu0 0.0
    %2483 = vmatpush1.msra.mxu0 0.0
    %2484 = vmatprep.subr.mxu0 0.0
    %2485 = vmatpush1.msra.mxu0 0.0
    %2486 = vmatprep.subr.mxu0 0.0
    %2487 = vmatpush1.msra.mxu0 0.0
    %2488 = vmatprep.subr.mxu0 0.0
    %2489 = vmatpush1.msra.mxu0 0.0
    %2490 = vmatprep.subr.mxu0 0.0
    %2491 = vmatpush1.msra.mxu0 0.0
    %2492 = vmatprep.subr.mxu0 0.0
    %2493 = vmatpush1.msra.mxu0 0.0
    %2494 = vmatprep.subr.mxu0 0.0
    %2495 = vmatpush1.msra.mxu0 0.0
    %2496 = vmatprep.subr.mxu0 0.0
    %2497 = vmatpush1.msra.mxu0 0.0
    %2498 = vmatprep.subr.mxu0 0.0
    %2499 = vmatpush1.msra.mxu0 0.0
    %2500 = vmatprep.subr.mxu0 0.0
    %2501 = vmatpush1.msra.mxu0 0.0
    %2502 = vmatprep.subr.mxu0 0.0
    %2503 = vmatpush1.msra.mxu0 0.0
    %2504 = vmatprep.subr.mxu0 0.0
    %2505 = vmatpush1.msra.mxu0 0.0
    %2506 = vmatprep.subr.mxu0 0.0
    %2507 = vmatpush1.msra.mxu0 0.0
    %2508 = vmatprep.subr.mxu0 0.0
    %2509 = vmatpush1.msra.mxu0 0.0
    %2510 = vmatprep.subr.mxu0 0.0
    %2511 = vmatpush1.msra.mxu0 0.0
    %2512 = vmatprep.subr.mxu0 0.0
    %2513 = vmatpush1.msra.mxu0 0.0
    %2514 = vmatprep.subr.mxu0 0.0
    %2515 = vmatpush1.msra.mxu0 0.0
    %2516 = vmatprep.subr.mxu0 0.0
    %2517 = vmatpush1.msra.mxu0 0.0
    %2518 = vmatprep.subr.mxu0 0.0
    %2519 = vmatpush1.msra.mxu0 0.0
    %2520 = vmatprep.subr.mxu0 0.0
    %2521 = vmatpush1.msra.mxu0 0.0
    %2522 = vmatprep.mubr.f32.mxu0 0.0
    %2523 = vmatmul.mubr.f32.gmra.mrb[0].mxu0 %v2453
    %v2524 = vpop.f32.mrb[0].mxu0
    %v2525 = vadd.f32 0.0, %v2524
    %v2526 = vpop.f32.mrb[0].mxu0
    %2527 = vmatprep.mubr.f32.mxu0 0.0
    %2528 = vmatmul.mubr.f32.gmra.mrb[0].mxu0 %v2456
    %v2529 = vpop.f32.mrb[0].mxu0
    %v2530 = vadd.f32 0.0, %v2529
    %v2531 = vpop.f32.mrb[0].mxu0
    %2532 = vdwg.mxu0
    %2533 = vrot.lane.b32.xlu0 %v2323, 120
    %v2534 = vpop.permute.xlu0 %2533
    %2535 = vrot.lane.b32.xlu0 %v2328, 120
    %v2536 = vpop.permute.xlu0 %2535
    %2537 = vrot.lane.b32.xlu0 %v2323, 88
    %v2538 = vpop.permute.xlu0 %2537
    %2539 = vrot.lane.b32.xlu0 %v2328, 88
    %v2540 = vpop.permute.xlu0 %2539
    %v2541 = vsel %vm825, %v2534, 0
    %v2543 = vsel %vm825, %v2536, 0
    %v2545 = vsel %vm825, %v2538, 0
    %v2547 = vsel %vm825, %v2540, 0
    %2549 = vmatprep.subr.mxu0 0.0
    %2550 = vmatpush1.xpose.msra.mxu0 %v2545
    %2551 = vmatprep.subr.mxu0 0.0
    %2552 = vmatpush1.xpose.msra.mxu0 %v2547
    %2553 = vmatprep.subr.mxu0 0.0
    %2554 = vmatpush1.xpose.msra.mxu0 0.0
    %2555 = vmatprep.subr.mxu0 0.0
    %2556 = vmatpush1.xpose.msra.mxu0 0.0
    %2557 = vmatprep.subr.mxu0 0.0
    %2558 = vmatpush1.xpose.msra.mxu0 0.0
    %2559 = vmatprep.subr.mxu0 0.0
    %2560 = vmatpush1.xpose.msra.mxu0 0.0
    %2561 = vmatprep.subr.mxu0 0.0
    %2562 = vmatpush1.xpose.msra.mxu0 0.0
    %2563 = vmatprep.subr.mxu0 0.0
    %2564 = vmatpush1.xpose.msra.mxu0 0.0
    %2565 = vmatprep.subr.mxu0 0.0
    %2566 = vmatpush1.xpose.msra.mxu0 0.0
    %2567 = vmatprep.subr.mxu0 0.0
    %2568 = vmatpush1.xpose.msra.mxu0 0.0
    %2569 = vmatprep.subr.mxu0 0.0
    %2570 = vmatpush1.xpose.msra.mxu0 0.0
    %2571 = vmatprep.subr.mxu0 0.0
    %2572 = vmatpush1.xpose.msra.mxu0 0.0
    %2573 = vmatprep.subr.mxu0 0.0
    %2574 = vmatpush1.xpose.msra.mxu0 0.0
    %2575 = vmatprep.subr.mxu0 0.0
    %2576 = vmatpush1.xpose.msra.mxu0 0.0
    %2577 = vmatprep.subr.mxu0 0.0
    %2578 = vmatpush1.xpose.msra.mxu0 0.0
    %2579 = vmatprep.subr.mxu0 0.0
    %2580 = vmatpush1.xpose.msra.mxu0 0.0
    %2581 = vmatprep.subr.mxu0 0.0
    %2582 = vmatpush1.xpose.msra.mxu0 0.0
    %2583 = vmatprep.subr.mxu0 0.0
    %2584 = vmatpush1.xpose.msra.mxu0 0.0
    %2585 = vmatprep.subr.mxu0 0.0
    %2586 = vmatpush1.xpose.msra.mxu0 0.0
    %2587 = vmatprep.subr.mxu0 0.0
    %2588 = vmatpush1.xpose.msra.mxu0 0.0
    %2589 = vmatprep.subr.mxu0 0.0
    %2590 = vmatpush1.xpose.msra.mxu0 0.0
    %2591 = vmatprep.subr.mxu0 0.0
    %2592 = vmatpush1.xpose.msra.mxu0 0.0
    %2593 = vmatprep.subr.mxu0 0.0
    %2594 = vmatpush1.xpose.msra.mxu0 0.0
    %2595 = vmatprep.subr.mxu0 0.0
    %2596 = vmatpush1.xpose.msra.mxu0 0.0
    %2597 = vmatprep.subr.mxu0 0.0
    %2598 = vmatpush1.xpose.msra.mxu0 0.0
    %2599 = vmatprep.subr.mxu0 0.0
    %2600 = vmatpush1.xpose.msra.mxu0 0.0
    %2601 = vmatprep.subr.mxu0 0.0
    %2602 = vmatpush1.xpose.msra.mxu0 0.0
    %2603 = vmatprep.subr.mxu0 0.0
    %2604 = vmatpush1.xpose.msra.mxu0 0.0
    %2605 = vmatprep.subr.mxu0 0.0
    %2606 = vmatpush1.xpose.msra.mxu0 0.0
    %2607 = vmatprep.subr.mxu0 0.0
    %2608 = vmatpush1.xpose.msra.mxu0 0.0
    %2609 = vmatprep.subr.mxu0 0.0
    %2610 = vmatpush1.xpose.msra.mxu0 0.0
    %2611 = vmatprep.subr.mxu0 0.0
    %2612 = vmatpush1.xpose.msra.mxu0 0.0
    %2613 = vmatprep.mubr.f32.mxu0 0.0
    %2614 = vmatmul.mubr.f32.gmra.mrb[0].mxu0 %v2541
    %v2615 = vpop.f32.mrb[0].mxu0
    %v2616 = vadd.f32 %v681, %v2615
    %v2617 = vpop.f32.mrb[0].mxu0
    %2618 = vmatprep.mubr.f32.mxu0 0.0
    %2619 = vmatmul.mubr.f32.gmra.mrb[0].mxu0 %v2543
    %v2620 = vpop.f32.mrb[0].mxu0
    %v2621 = vadd.f32 %v682, %v2620
    %v2622 = vpop.f32.mrb[0].mxu0
    %2623 = vdwg.mxu0
    %v2624 = vsel %vm590, %v2616, -inf
    %2625 = vmax.xlane.f32.xlu0 %v2624
    %v2626 = vpop.xlane.xlu0 %2625
    %v2627 = vsel %vm590, %v2621, -inf
    %2628 = vmax.xlane.f32.xlu0 %v2627
    %v2629 = vpop.xlane.xlu0 %2628
    %v2630 = vsub.f32 %v2616, %v2626
    %v2631 = vsub.f32 %v2621, %v2629
    %v2632 = vmul.f32 %v2630, 1.442695
    %v2633 = vpow.pop %v2632
    %v2634 = vmul.f32 %v2631, 1.442695
    %v2635 = vpow.pop %v2634
    %v2636 = vsel %vm590, %v2633, 0.0
    %2637 = vadd.xlane.f32.xlu0 %v2636
    %v2638 = vpop.xlane.xlu0 %2637
    %v2639 = vsel %vm590, %v2635, 0.0
    %2640 = vadd.xlane.f32.xlu0 %v2639
    %v2641 = vpop.xlane.xlu0 %2640
    %v2642 = vrcp.pop %v2638
    %v2643 = vrcp.pop %v2641
    %v2644 = vmul.f32 %v2633, %v2642
    %v2645 = vmul.f32 %v2635, %v2643
    %2646 = vrot.lane.b32.xlu0 %v2323, 56
    %v2647 = vpop.permute.xlu0 %2646
    %2648 = vrot.lane.b32.xlu0 %v2328, 56
    %v2649 = vpop.permute.xlu0 %2648
    %v2653 = vsel %vm590, %v2644, 0
    %v2656 = vsel %vm590, %v2645, 0
    %2658 = vmatprep.subr.mxu0 0.0
    %2659 = vmatpush1.msra.mxu0 %v2647
    %2660 = vmatprep.subr.mxu0 0.0
    %2661 = vmatpush1.msra.mxu0 %v2649
    %2662 = vmatprep.subr.mxu0 0.0
    %2663 = vmatpush1.msra.mxu0 0.0
    %2664 = vmatprep.subr.mxu0 0.0
    %2665 = vmatpush1.msra.mxu0 0.0
    %2666 = vmatprep.subr.mxu0 0.0
    %2667 = vmatpush1.msra.mxu0 0.0
    %2668 = vmatprep.subr.mxu0 0.0
    %2669 = vmatpush1.msra.mxu0 0.0
    %2670 = vmatprep.subr.mxu0 0.0
    %2671 = vmatpush1.msra.mxu0 0.0
    %2672 = vmatprep.subr.mxu0 0.0
    %2673 = vmatpush1.msra.mxu0 0.0
    %2674 = vmatprep.subr.mxu0 0.0
    %2675 = vmatpush1.msra.mxu0 0.0
    %2676 = vmatprep.subr.mxu0 0.0
    %2677 = vmatpush1.msra.mxu0 0.0
    %2678 = vmatprep.subr.mxu0 0.0
    %2679 = vmatpush1.msra.mxu0 0.0
    %2680 = vmatprep.subr.mxu0 0.0
    %2681 = vmatpush1.msra.mxu0 0.0
    %2682 = vmatprep.subr.mxu0 0.0
    %2683 = vmatpush1.msra.mxu0 0.0
    %2684 = vmatprep.subr.mxu0 0.0
    %2685 = vmatpush1.msra.mxu0 0.0
    %2686 = vmatprep.subr.mxu0 0.0
    %2687 = vmatpush1.msra.mxu0 0.0
    %2688 = vmatprep.subr.mxu0 0.0
    %2689 = vmatpush1.msra.mxu0 0.0
    %2690 = vmatprep.subr.mxu0 0.0
    %2691 = vmatpush1.msra.mxu0 0.0
    %2692 = vmatprep.subr.mxu0 0.0
    %2693 = vmatpush1.msra.mxu0 0.0
    %2694 = vmatprep.subr.mxu0 0.0
    %2695 = vmatpush1.msra.mxu0 0.0
    %2696 = vmatprep.subr.mxu0 0.0
    %2697 = vmatpush1.msra.mxu0 0.0
    %2698 = vmatprep.subr.mxu0 0.0
    %2699 = vmatpush1.msra.mxu0 0.0
    %2700 = vmatprep.subr.mxu0 0.0
    %2701 = vmatpush1.msra.mxu0 0.0
    %2702 = vmatprep.subr.mxu0 0.0
    %2703 = vmatpush1.msra.mxu0 0.0
    %2704 = vmatprep.subr.mxu0 0.0
    %2705 = vmatpush1.msra.mxu0 0.0
    %2706 = vmatprep.subr.mxu0 0.0
    %2707 = vmatpush1.msra.mxu0 0.0
    %2708 = vmatprep.subr.mxu0 0.0
    %2709 = vmatpush1.msra.mxu0 0.0
    %2710 = vmatprep.subr.mxu0 0.0
    %2711 = vmatpush1.msra.mxu0 0.0
    %2712 = vmatprep.subr.mxu0 0.0
    %2713 = vmatpush1.msra.mxu0 0.0
    %2714 = vmatprep.subr.mxu0 0.0
    %2715 = vmatpush1.msra.mxu0 0.0
    %2716 = vmatprep.subr.mxu0 0.0
    %2717 = vmatpush1.msra.mxu0 0.0
    %2718 = vmatprep.subr.mxu0 0.0
    %2719 = vmatpush1.msra.mxu0 0.0
    %2720 = vmatprep.subr.mxu0 0.0
    %2721 = vmatpush1.msra.mxu0 0.0
    %2722 = vmatprep.mubr.f32.mxu0 0.0
    %2723 = vmatmul.mubr.f32.gmra.mrb[0].mxu0 %v2653
    %v2724 = vpop.f32.mrb[0].mxu0
    %v2725 = vadd.f32 0.0, %v2724
    %v2726 = vpop.f32.mrb[0].mxu0
    %2727 = vmatprep.mubr.f32.mxu0 0.0
    %2728 = vmatmul.mubr.f32.gmra.mrb[0].mxu0 %v2656
    %v2729 = vpop.f32.mrb[0].mxu0
    %v2730 = vadd.f32 0.0, %v2729
    %v2731 = vpop.f32.mrb[0].mxu0
    %2732 = vdwg.mxu0
    %v2734 = vsel %vm825, %v2725, 0
    %v2737 = vsel %vm825, %v2730, 0
    %2739 = vmatprep.subr.mxu0 0.0
    %2740 = vmatpush1.msra.mxu0 %v2332
    %2741 = vmatprep.subr.mxu0 0.0
    %2742 = vmatpush1.msra.mxu0 0.0
    %2743 = vmatprep.subr.mxu0 0.0
    %2744 = vmatpush1.msra.mxu0 0.0
    %2745 = vmatprep.subr.mxu0 0.0
    %2746 = vmatpush1.msra.mxu0 0.0
    %2747 = vmatprep.subr.mxu0 0.0
    %2748 = vmatpush1.msra.mxu0 0.0
    %2749 = vmatprep.subr.mxu0 0.0
    %2750 = vmatpush1.msra.mxu0 0.0
    %2751 = vmatprep.subr.mxu0 0.0
    %2752 = vmatpush1.msra.mxu0 0.0
    %2753 = vmatprep.subr.mxu0 0.0
    %2754 = vmatpush1.msra.mxu0 0.0
    %2755 = vmatprep.subr.mxu0 0.0
    %2756 = vmatpush1.msra.mxu0 0.0
    %2757 = vmatprep.subr.mxu0 0.0
    %2758 = vmatpush1.msra.mxu0 0.0
    %2759 = vmatprep.subr.mxu0 0.0
    %2760 = vmatpush1.msra.mxu0 0.0
    %2761 = vmatprep.subr.mxu0 0.0
    %2762 = vmatpush1.msra.mxu0 0.0
    %2763 = vmatprep.subr.mxu0 0.0
    %2764 = vmatpush1.msra.mxu0 0.0
    %2765 = vmatprep.subr.mxu0 0.0
    %2766 = vmatpush1.msra.mxu0 0.0
    %2767 = vmatprep.subr.mxu0 0.0
    %2768 = vmatpush1.msra.mxu0 0.0
    %2769 = vmatprep.subr.mxu0 0.0
    %2770 = vmatpush1.msra.mxu0 0.0
    %2771 = vmatprep.subr.mxu0 0.0
    %2772 = vmatpush1.msra.mxu0 0.0
    %2773 = vmatprep.subr.mxu0 0.0
    %2774 = vmatpush1.msra.mxu0 0.0
    %2775 = vmatprep.subr.mxu0 0.0
    %2776 = vmatpush1.msra.mxu0 0.0
    %2777 = vmatprep.subr.mxu0 0.0
    %2778 = vmatpush1.msra.mxu0 0.0
    %2779 = vmatprep.subr.mxu0 0.0
    %2780 = vmatpush1.msra.mxu0 0.0
    %2781 = vmatprep.subr.mxu0 0.0
    %2782 = vmatpush1.msra.mxu0 0.0
    %2783 = vmatprep.subr.mxu0 0.0
    %2784 = vmatpush1.msra.mxu0 0.0
    %2785 = vmatprep.subr.mxu0 0.0
    %2786 = vmatpush1.msra.mxu0 0.0
    %2787 = vmatprep.subr.mxu0 0.0
    %2788 = vmatpush1.msra.mxu0 0.0
    %2789 = vmatprep.subr.mxu0 0.0
    %2790 = vmatpush1.msra.mxu0 0.0
    %2791 = vmatprep.subr.mxu0 0.0
    %2792 = vmatpush1.msra.mxu0 0.0
    %2793 = vmatprep.subr.mxu0 0.0
    %2794 = vmatpush1.msra.mxu0 0.0
    %2795 = vmatprep.subr.mxu0 0.0
    %2796 = vmatpush1.msra.mxu0 0.0
    %2797 = vmatprep.subr.mxu0 0.0
    %2798 = vmatpush1.msra.mxu0 0.0
    %2799 = vmatprep.subr.mxu0 0.0
    %2800 = vmatpush1.msra.mxu0 0.0
    %2801 = vmatprep.subr.mxu0 0.0
    %2802 = vmatpush1.msra.mxu0 0.0
    %2803 = vmatprep.mubr.f32.mxu0 0.0
    %2804 = vmatmul.mubr.f32.gmra.mrb[0].mxu0 %v2734
    %v2805 = vpop.f32.mrb[0].mxu0
    %v2806 = vadd.f32 0.0, %v2805
    %v2807 = vpop.f32.mrb[0].mxu0
    %2808 = vmatprep.mubr.f32.mxu0 0.0
    %2809 = vmatmul.mubr.f32.gmra.mrb[0].mxu0 %v2737
    %v2810 = vpop.f32.mrb[0].mxu0
    %v2811 = vadd.f32 0.0, %v2810
    %v2812 = vpop.f32.mrb[0].mxu0
    %2813 = vdwg.mxu0
    %v2815 = vsel %vm825, %v2525, 0
    %v2818 = vsel %vm825, %v2530, 0
    %2820 = vmatprep.subr.mxu0 0.0
    %2821 = vmatpush1.msra.mxu0 %v2331
    %2822 = vmatprep.subr.mxu0 0.0
    %2823 = vmatpush1.msra.mxu0 0.0
    %2824 = vmatprep.subr.mxu0 0.0
    %2825 = vmatpush1.msra.mxu0 0.0
    %2826 = vmatprep.subr.mxu0 0.0
    %2827 = vmatpush1.msra.mxu0 0.0
    %2828 = vmatprep.subr.mxu0 0.0
    %2829 = vmatpush1.msra.mxu0 0.0
    %2830 = vmatprep.subr.mxu0 0.0
    %2831 = vmatpush1.msra.mxu0 0.0
    %2832 = vmatprep.subr.mxu0 0.0
    %2833 = vmatpush1.msra.mxu0 0.0
    %2834 = vmatprep.subr.mxu0 0.0
    %2835 = vmatpush1.msra.mxu0 0.0
    %2836 = vmatprep.subr.mxu0 0.0
    %2837 = vmatpush1.msra.mxu0 0.0
    %2838 = vmatprep.subr.mxu0 0.0
    %2839 = vmatpush1.msra.mxu0 0.0
    %2840 = vmatprep.subr.mxu0 0.0
    %2841 = vmatpush1.msra.mxu0 0.0
    %2842 = vmatprep.subr.mxu0 0.0
    %2843 = vmatpush1.msra.mxu0 0.0
    %2844 = vmatprep.subr.mxu0 0.0
    %2845 = vmatpush1.msra.mxu0 0.0
    %2846 = vmatprep.subr.mxu0 0.0
    %2847 = vmatpush1.msra.mxu0 0.0
    %2848 = vmatprep.subr.mxu0 0.0
    %2849 = vmatpush1.msra.mxu0 0.0
    %2850 = vmatprep.subr.mxu0 0.0
    %2851 = vmatpush1.msra.mxu0 0.0
    %2852 = vmatprep.subr.mxu0 0.0
    %2853 = vmatpush1.msra.mxu0 0.0
    %2854 = vmatprep.subr.mxu0 0.0
    %2855 = vmatpush1.msra.mxu0 0.0
    %2856 = vmatprep.subr.mxu0 0.0
    %2857 = vmatpush1.msra.mxu0 0.0
    %2858 = vmatprep.subr.mxu0 0.0
    %2859 = vmatpush1.msra.mxu0 0.0
    %2860 = vmatprep.subr.mxu0 0.0
    %2861 = vmatpush1.msra.mxu0 0.0
    %2862 = vmatprep.subr.mxu0 0.0
    %2863 = vmatpush1.msra.mxu0 0.0
    %2864 = vmatprep.subr.mxu0 0.0
    %2865 = vmatpush1.msra.mxu0 0.0
    %2866 = vmatprep.subr.mxu0 0.0
    %2867 = vmatpush1.msra.mxu0 0.0
    %2868 = vmatprep.subr.mxu0 0.0
    %2869 = vmatpush1.msra.mxu0 0.0
    %2870 = vmatprep.subr.mxu0 0.0
    %2871 = vmatpush1.msra.mxu0 0.0
    %2872 = vmatprep.subr.mxu0 0.0
    %2873 = vmatpush1.msra.mxu0 0.0
    %2874 = vmatprep.subr.mxu0 0.0
    %2875 = vmatpush1.msra.mxu0 0.0
    %2876 = vmatprep.subr.mxu0 0.0
    %2877 = vmatpush1.msra.mxu0 0.0
    %2878 = vmatprep.subr.mxu0 0.0
    %2879 = vmatpush1.msra.mxu0 0.0
    %2880 = vmatprep.subr.mxu0 0.0
    %2881 = vmatpush1.msra.mxu0 0.0
    %2882 = vmatprep.subr.mxu0 0.0
    %2883 = vmatpush1.msra.mxu0 0.0
    %2884 = vmatprep.mubr.f32.mxu0 0.0
    %2885 = vmatmul.mubr.f32.gmra.mrb[0].mxu0 %v2815
    %v2886 = vpop.f32.mrb[0].mxu0
    %v2887 = vadd.f32 %v2806, %v2886
    %v2888 = vpop.f32.mrb[0].mxu0
    %2889 = vmatprep.mubr.f32.mxu0 0.0
    %2890 = vmatmul.mubr.f32.gmra.mrb[0].mxu0 %v2818
    %v2891 = vpop.f32.mrb[0].mxu0
    %v2892 = vadd.f32 %v2811, %v2891
    %v2893 = vpop.f32.mrb[0].mxu0
    %2894 = vdwg.mxu0
    %2895 = vrot.lane.b32.xlu0 %v2323, 112
    %v2896 = vpop.permute.xlu0 %2895
    %2897 = vrot.lane.b32.xlu0 %v2328, 112
    %v2898 = vpop.permute.xlu0 %2897
    %2899 = vrot.lane.b32.xlu0 %v2323, 80
    %v2900 = vpop.permute.xlu0 %2899
    %2901 = vrot.lane.b32.xlu0 %v2328, 80
    %v2902 = vpop.permute.xlu0 %2901
    %v2903 = vsel %vm825, %v2896, 0
    %v2905 = vsel %vm825, %v2898, 0
    %v2907 = vsel %vm825, %v2900, 0
    %v2909 = vsel %vm825, %v2902, 0
    %2911 = vmatprep.subr.mxu0 0.0
    %2912 = vmatpush1.xpose.msra.mxu0 %v2907
    %2913 = vmatprep.subr.mxu0 0.0
    %2914 = vmatpush1.xpose.msra.mxu0 %v2909
    %2915 = vmatprep.subr.mxu0 0.0
    %2916 = vmatpush1.xpose.msra.mxu0 0.0
    %2917 = vmatprep.subr.mxu0 0.0
    %2918 = vmatpush1.xpose.msra.mxu0 0.0
    %2919 = vmatprep.subr.mxu0 0.0
    %2920 = vmatpush1.xpose.msra.mxu0 0.0
    %2921 = vmatprep.subr.mxu0 0.0
    %2922 = vmatpush1.xpose.msra.mxu0 0.0
    %2923 = vmatprep.subr.mxu0 0.0
    %2924 = vmatpush1.xpose.msra.mxu0 0.0
    %2925 = vmatprep.subr.mxu0 0.0
    %2926 = vmatpush1.xpose.msra.mxu0 0.0
    %2927 = vmatprep.subr.mxu0 0.0
    %2928 = vmatpush1.xpose.msra.mxu0 0.0
    %2929 = vmatprep.subr.mxu0 0.0
    %2930 = vmatpush1.xpose.msra.mxu0 0.0
    %2931 = vmatprep.subr.mxu0 0.0
    %2932 = vmatpush1.xpose.msra.mxu0 0.0
    %2933 = vmatprep.subr.mxu0 0.0
    %2934 = vmatpush1.xpose.msra.mxu0 0.0
    %2935 = vmatprep.subr.mxu0 0.0
    %2936 = vmatpush1.xpose.msra.mxu0 0.0
    %2937 = vmatprep.subr.mxu0 0.0
    %2938 = vmatpush1.xpose.msra.mxu0 0.0
    %2939 = vmatprep.subr.mxu0 0.0
    %2940 = vmatpush1.xpose.msra.mxu0 0.0
    %2941 = vmatprep.subr.mxu0 0.0
    %2942 = vmatpush1.xpose.msra.mxu0 0.0
    %2943 = vmatprep.subr.mxu0 0.0
    %2944 = vmatpush1.xpose.msra.mxu0 0.0
    %2945 = vmatprep.subr.mxu0 0.0
    %2946 = vmatpush1.xpose.msra.mxu0 0.0
    %2947 = vmatprep.subr.mxu0 0.0
    %2948 = vmatpush1.xpose.msra.mxu0 0.0
    %2949 = vmatprep.subr.mxu0 0.0
    %2950 = vmatpush1.xpose.msra.mxu0 0.0
    %2951 = vmatprep.subr.mxu0 0.0
    %2952 = vmatpush1.xpose.msra.mxu0 0.0
    %2953 = vmatprep.subr.mxu0 0.0
    %2954 = vmatpush1.xpose.msra.mxu0 0.0
    %2955 = vmatprep.subr.mxu0 0.0
    %2956 = vmatpush1.xpose.msra.mxu0 0.0
    %2957 = vmatprep.subr.mxu0 0.0
    %2958 = vmatpush1.xpose.msra.mxu0 0.0
    %2959 = vmatprep.subr.mxu0 0.0
    %2960 = vmatpush1.xpose.msra.mxu0 0.0
    %2961 = vmatprep.subr.mxu0 0.0
    %2962 = vmatpush1.xpose.msra.mxu0 0.0
    %2963 = vmatprep.subr.mxu0 0.0
    %2964 = vmatpush1.xpose.msra.mxu0 0.0
    %2965 = vmatprep.subr.mxu0 0.0
    %2966 = vmatpush1.xpose.msra.mxu0 0.0
    %2967 = vmatprep.subr.mxu0 0.0
    %2968 = vmatpush1.xpose.msra.mxu0 0.0
    %2969 = vmatprep.subr.mxu0 0.0
    %2970 = vmatpush1.xpose.msra.mxu0 0.0
    %2971 = vmatprep.subr.mxu0 0.0
    %2972 = vmatpush1.xpose.msra.mxu0 0.0
    %2973 = vmatprep.subr.mxu0 0.0
    %2974 = vmatpush1.xpose.msra.mxu0 0.0
    %2975 = vmatprep.mubr.f32.mxu0 0.0
    %2976 = vmatmul.mubr.f32.gmra.mrb[0].mxu0 %v2903
    %v2977 = vpop.f32.mrb[0].mxu0
    %v2978 = vadd.f32 %v681, %v2977
    %v2979 = vpop.f32.mrb[0].mxu0
    %2980 = vmatprep.mubr.f32.mxu0 0.0
    %2981 = vmatmul.mubr.f32.gmra.mrb[0].mxu0 %v2905
    %v2982 = vpop.f32.mrb[0].mxu0
    %v2983 = vadd.f32 %v682, %v2982
    %v2984 = vpop.f32.mrb[0].mxu0
    %2985 = vdwg.mxu0
    %v2986 = vsel %vm590, %v2978, -inf
    %2987 = vmax.xlane.f32.xlu0 %v2986
    %v2988 = vpop.xlane.xlu0 %2987
    %v2989 = vsel %vm590, %v2983, -inf
    %2990 = vmax.xlane.f32.xlu0 %v2989
    %v2991 = vpop.xlane.xlu0 %2990
    %v2992 = vsub.f32 %v2978, %v2988
    %v2993 = vsub.f32 %v2983, %v2991
    %v2994 = vmul.f32 %v2992, 1.442695
    %v2995 = vpow.pop %v2994
    %v2996 = vmul.f32 %v2993, 1.442695
    %v2997 = vpow.pop %v2996
    %v2998 = vsel %vm590, %v2995, 0.0
    %2999 = vadd.xlane.f32.xlu0 %v2998
    %v3000 = vpop.xlane.xlu0 %2999
    %v3001 = vsel %vm590, %v2997, 0.0
    %3002 = vadd.xlane.f32.xlu0 %v3001
    %v3003 = vpop.xlane.xlu0 %3002
    %v3004 = vrcp.pop %v3000
    %v3005 = vrcp.pop %v3003
    %v3006 = vmul.f32 %v2995, %v3004
    %v3007 = vmul.f32 %v2997, %v3005
    %3008 = vrot.lane.b32.xlu0 %v2323, 48
    %v3009 = vpop.permute.xlu0 %3008
    %3010 = vrot.lane.b32.xlu0 %v2328, 48
    %v3011 = vpop.permute.xlu0 %3010
    %v3015 = vsel %vm590, %v3006, 0
    %v3018 = vsel %vm590, %v3007, 0
    %3020 = vmatprep.subr.mxu0 0.0
    %3021 = vmatpush1.msra.mxu0 %v3009
    %3022 = vmatprep.subr.mxu0 0.0
    %3023 = vmatpush1.msra.mxu0 %v3011
    %3024 = vmatprep.subr.mxu0 0.0
    %3025 = vmatpush1.msra.mxu0 0.0
    %3026 = vmatprep.subr.mxu0 0.0
    %3027 = vmatpush1.msra.mxu0 0.0
    %3028 = vmatprep.subr.mxu0 0.0
    %3029 = vmatpush1.msra.mxu0 0.0
    %3030 = vmatprep.subr.mxu0 0.0
    %3031 = vmatpush1.msra.mxu0 0.0
    %3032 = vmatprep.subr.mxu0 0.0
    %3033 = vmatpush1.msra.mxu0 0.0
    %3034 = vmatprep.subr.mxu0 0.0
    %3035 = vmatpush1.msra.mxu0 0.0
    %3036 = vmatprep.subr.mxu0 0.0
    %3037 = vmatpush1.msra.mxu0 0.0
    %3038 = vmatprep.subr.mxu0 0.0
    %3039 = vmatpush1.msra.mxu0 0.0
    %3040 = vmatprep.subr.mxu0 0.0
    %3041 = vmatpush1.msra.mxu0 0.0
    %3042 = vmatprep.subr.mxu0 0.0
    %3043 = vmatpush1.msra.mxu0 0.0
    %3044 = vmatprep.subr.mxu0 0.0
    %3045 = vmatpush1.msra.mxu0 0.0
    %3046 = vmatprep.subr.mxu0 0.0
    %3047 = vmatpush1.msra.mxu0 0.0
    %3048 = vmatprep.subr.mxu0 0.0
    %3049 = vmatpush1.msra.mxu0 0.0
    %3050 = vmatprep.subr.mxu0 0.0
    %3051 = vmatpush1.msra.mxu0 0.0
    %3052 = vmatprep.subr.mxu0 0.0
    %3053 = vmatpush1.msra.mxu0 0.0
    %3054 = vmatprep.subr.mxu0 0.0
    %3055 = vmatpush1.msra.mxu0 0.0
    %3056 = vmatprep.subr.mxu0 0.0
    %3057 = vmatpush1.msra.mxu0 0.0
    %3058 = vmatprep.subr.mxu0 0.0
    %3059 = vmatpush1.msra.mxu0 0.0
    %3060 = vmatprep.subr.mxu0 0.0
    %3061 = vmatpush1.msra.mxu0 0.0
    %3062 = vmatprep.subr.mxu0 0.0
    %3063 = vmatpush1.msra.mxu0 0.0
    %3064 = vmatprep.subr.mxu0 0.0
    %3065 = vmatpush1.msra.mxu0 0.0
    %3066 = vmatprep.subr.mxu0 0.0
    %3067 = vmatpush1.msra.mxu0 0.0
    %3068 = vmatprep.subr.mxu0 0.0
    %3069 = vmatpush1.msra.mxu0 0.0
    %3070 = vmatprep.subr.mxu0 0.0
    %3071 = vmatpush1.msra.mxu0 0.0
    %3072 = vmatprep.subr.mxu0 0.0
    %3073 = vmatpush1.msra.mxu0 0.0
    %3074 = vmatprep.subr.mxu0 0.0
    %3075 = vmatpush1.msra.mxu0 0.0
    %3076 = vmatprep.subr.mxu0 0.0
    %3077 = vmatpush1.msra.mxu0 0.0
    %3078 = vmatprep.subr.mxu0 0.0
    %3079 = vmatpush1.msra.mxu0 0.0
    %3080 = vmatprep.subr.mxu0 0.0
    %3081 = vmatpush1.msra.mxu0 0.0
    %3082 = vmatprep.subr.mxu0 0.0
    %3083 = vmatpush1.msra.mxu0 0.0
    %3084 = vmatprep.mubr.f32.mxu0 0.0
    %3085 = vmatmul.mubr.f32.gmra.mrb[0].mxu0 %v3015
    %v3086 = vpop.f32.mrb[0].mxu0
    %v3087 = vadd.f32 0.0, %v3086
    %v3088 = vpop.f32.mrb[0].mxu0
    %3089 = vmatprep.mubr.f32.mxu0 0.0
    %3090 = vmatmul.mubr.f32.gmra.mrb[0].mxu0 %v3018
    %v3091 = vpop.f32.mrb[0].mxu0
    %v3092 = vadd.f32 0.0, %v3091
    %v3093 = vpop.f32.mrb[0].mxu0
    %3094 = vdwg.mxu0
    %v3096 = vsel %vm825, %v3087, 0
    %v3099 = vsel %vm825, %v3092, 0
    %3101 = vmatprep.subr.mxu0 0.0
    %3102 = vmatpush1.msra.mxu0 %v2333
    %3103 = vmatprep.subr.mxu0 0.0
    %3104 = vmatpush1.msra.mxu0 0.0
    %3105 = vmatprep.subr.mxu0 0.0
    %3106 = vmatpush1.msra.mxu0 0.0
    %3107 = vmatprep.subr.mxu0 0.0
    %3108 = vmatpush1.msra.mxu0 0.0
    %3109 = vmatprep.subr.mxu0 0.0
    %3110 = vmatpush1.msra.mxu0 0.0
    %3111 = vmatprep.subr.mxu0 0.0
    %3112 = vmatpush1.msra.mxu0 0.0
    %3113 = vmatprep.subr.mxu0 0.0
    %3114 = vmatpush1.msra.mxu0 0.0
    %3115 = vmatprep.subr.mxu0 0.0
    %3116 = vmatpush1.msra.mxu0 0.0
    %3117 = vmatprep.subr.mxu0 0.0
    %3118 = vmatpush1.msra.mxu0 0.0
    %3119 = vmatprep.subr.mxu0 0.0
    %3120 = vmatpush1.msra.mxu0 0.0
    %3121 = vmatprep.subr.mxu0 0.0
    %3122 = vmatpush1.msra.mxu0 0.0
    %3123 = vmatprep.subr.mxu0 0.0
    %3124 = vmatpush1.msra.mxu0 0.0
    %3125 = vmatprep.subr.mxu0 0.0
    %3126 = vmatpush1.msra.mxu0 0.0
    %3127 = vmatprep.subr.mxu0 0.0
    %3128 = vmatpush1.msra.mxu0 0.0
    %3129 = vmatprep.subr.mxu0 0.0
    %3130 = vmatpush1.msra.mxu0 0.0
    %3131 = vmatprep.subr.mxu0 0.0
    %3132 = vmatpush1.msra.mxu0 0.0
    %3133 = vmatprep.subr.mxu0 0.0
    %3134 = vmatpush1.msra.mxu0 0.0
    %3135 = vmatprep.subr.mxu0 0.0
    %3136 = vmatpush1.msra.mxu0 0.0
    %3137 = vmatprep.subr.mxu0 0.0
    %3138 = vmatpush1.msra.mxu0 0.0
    %3139 = vmatprep.subr.mxu0 0.0
    %3140 = vmatpush1.msra.mxu0 0.0
    %3141 = vmatprep.subr.mxu0 0.0
    %3142 = vmatpush1.msra.mxu0 0.0
    %3143 = vmatprep.subr.mxu0 0.0
    %3144 = vmatpush1.msra.mxu0 0.0
    %3145 = vmatprep.subr.mxu0 0.0
    %3146 = vmatpush1.msra.mxu0 0.0
    %3147 = vmatprep.subr.mxu0 0.0
    %3148 = vmatpush1.msra.mxu0 0.0
    %3149 = vmatprep.subr.mxu0 0.0
    %3150 = vmatpush1.msra.mxu0 0.0
    %3151 = vmatprep.subr.mxu0 0.0
    %3152 = vmatpush1.msra.mxu0 0.0
    %3153 = vmatprep.subr.mxu0 0.0
    %3154 = vmatpush1.msra.mxu0 0.0
    %3155 = vmatprep.subr.mxu0 0.0
    %3156 = vmatpush1.msra.mxu0 0.0
    %3157 = vmatprep.subr.mxu0 0.0
    %3158 = vmatpush1.msra.mxu0 0.0
    %3159 = vmatprep.subr.mxu0 0.0
    %3160 = vmatpush1.msra.mxu0 0.0
    %3161 = vmatprep.subr.mxu0 0.0
    %3162 = vmatpush1.msra.mxu0 0.0
    %3163 = vmatprep.subr.mxu0 0.0
    %3164 = vmatpush1.msra.mxu0 0.0
    %3165 = vmatprep.mubr.f32.mxu0 0.0
    %3166 = vmatmul.mubr.f32.gmra.mrb[0].mxu0 %v3096
    %v3167 = vpop.f32.mrb[0].mxu0
    %v3168 = vadd.f32 0.0, %v3167
    %v3169 = vpop.f32.mrb[0].mxu0
    %3170 = vmatprep.mubr.f32.mxu0 0.0
    %3171 = vmatmul.mubr.f32.gmra.mrb[0].mxu0 %v3099
    %v3172 = vpop.f32.mrb[0].mxu0
    %v3173 = vadd.f32 0.0, %v3172
    %v3174 = vpop.f32.mrb[0].mxu0
    %3175 = vdwg.mxu0
    %v3176 = vadd.f32 %v2887, %v3168
    %v3177 = vadd.f32 %v2892, %v3173
    %3178 = vrot.lane.b32.xlu0 %v2323, 104
    %v3179 = vpop.permute.xlu0 %3178
    %3180 = vrot.lane.b32.xlu0 %v2328, 104
    %v3181 = vpop.permute.xlu0 %3180
    %3182 = vrot.lane.b32.xlu0 %v2323, 72
    %v3183 = vpop.permute.xlu0 %3182
    %3184 = vrot.lane.b32.xlu0 %v2328, 72
    %v3185 = vpop.permute.xlu0 %3184
    %v3186 = vsel %vm825, %v3179, 0
    %v3188 = vsel %vm825, %v3181, 0
    %v3190 = vsel %vm825, %v3183, 0
    %v3192 = vsel %vm825, %v3185, 0
    %3194 = vmatprep.subr.mxu0 0.0
    %3195 = vmatpush1.xpose.msra.mxu0 %v3190
    %3196 = vmatprep.subr.mxu0 0.0
    %3197 = vmatpush1.xpose.msra.mxu0 %v3192
    %3198 = vmatprep.subr.mxu0 0.0
    %3199 = vmatpush1.xpose.msra.mxu0 0.0
    %3200 = vmatprep.subr.mxu0 0.0
    %3201 = vmatpush1.xpose.msra.mxu0 0.0
    %3202 = vmatprep.subr.mxu0 0.0
    %3203 = vmatpush1.xpose.msra.mxu0 0.0
    %3204 = vmatprep.subr.mxu0 0.0
    %3205 = vmatpush1.xpose.msra.mxu0 0.0
    %3206 = vmatprep.subr.mxu0 0.0
    %3207 = vmatpush1.xpose.msra.mxu0 0.0
    %3208 = vmatprep.subr.mxu0 0.0
    %3209 = vmatpush1.xpose.msra.mxu0 0.0
    %3210 = vmatprep.subr.mxu0 0.0
    %3211 = vmatpush1.xpose.msra.mxu0 0.0
    %3212 = vmatprep.subr.mxu0 0.0
    %3213 = vmatpush1.xpose.msra.mxu0 0.0
    %3214 = vmatprep.subr.mxu0 0.0
    %3215 = vmatpush1.xpose.msra.mxu0 0.0
    %3216 = vmatprep.subr.mxu0 0.0
    %3217 = vmatpush1.xpose.msra.mxu0 0.0
    %3218 = vmatprep.subr.mxu0 0.0
    %3219 = vmatpush1.xpose.msra.mxu0 0.0
    %3220 = vmatprep.subr.mxu0 0.0
    %3221 = vmatpush1.xpose.msra.mxu0 0.0
    %3222 = vmatprep.subr.mxu0 0.0
    %3223 = vmatpush1.xpose.msra.mxu0 0.0
    %3224 = vmatprep.subr.mxu0 0.0
    %3225 = vmatpush1.xpose.msra.mxu0 0.0
    %3226 = vmatprep.subr.mxu0 0.0
    %3227 = vmatpush1.xpose.msra.mxu0 0.0
    %3228 = vmatprep.subr.mxu0 0.0
    %3229 = vmatpush1.xpose.msra.mxu0 0.0
    %3230 = vmatprep.subr.mxu0 0.0
    %3231 = vmatpush1.xpose.msra.mxu0 0.0
    %3232 = vmatprep.subr.mxu0 0.0
    %3233 = vmatpush1.xpose.msra.mxu0 0.0
    %3234 = vmatprep.subr.mxu0 0.0
    %3235 = vmatpush1.xpose.msra.mxu0 0.0
    %3236 = vmatprep.subr.mxu0 0.0
    %3237 = vmatpush1.xpose.msra.mxu0 0.0
    %3238 = vmatprep.subr.mxu0 0.0
    %3239 = vmatpush1.xpose.msra.mxu0 0.0
    %3240 = vmatprep.subr.mxu0 0.0
    %3241 = vmatpush1.xpose.msra.mxu0 0.0
    %3242 = vmatprep.subr.mxu0 0.0
    %3243 = vmatpush1.xpose.msra.mxu0 0.0
    %3244 = vmatprep.subr.mxu0 0.0
    %3245 = vmatpush1.xpose.msra.mxu0 0.0
    %3246 = vmatprep.subr.mxu0 0.0
    %3247 = vmatpush1.xpose.msra.mxu0 0.0
    %3248 = vmatprep.subr.mxu0 0.0
    %3249 = vmatpush1.xpose.msra.mxu0 0.0
    %3250 = vmatprep.subr.mxu0 0.0
    %3251 = vmatpush1.xpose.msra.mxu0 0.0
    %3252 = vmatprep.subr.mxu0 0.0
    %3253 = vmatpush1.xpose.msra.mxu0 0.0
    %3254 = vmatprep.subr.mxu0 0.0
    %3255 = vmatpush1.xpose.msra.mxu0 0.0
    %3256 = vmatprep.subr.mxu0 0.0
    %3257 = vmatpush1.xpose.msra.mxu0 0.0
    %3258 = vmatprep.mubr.f32.mxu0 0.0
    %3259 = vmatmul.mubr.f32.gmra.mrb[0].mxu0 %v3186
    %v3260 = vpop.f32.mrb[0].mxu0
    %v3261 = vadd.f32 %v681, %v3260
    %v3262 = vpop.f32.mrb[0].mxu0
    %3263 = vmatprep.mubr.f32.mxu0 0.0
    %3264 = vmatmul.mubr.f32.gmra.mrb[0].mxu0 %v3188
    %v3265 = vpop.f32.mrb[0].mxu0
    %v3266 = vadd.f32 %v682, %v3265
    %v3267 = vpop.f32.mrb[0].mxu0
    %3268 = vdwg.mxu0
    %v3269 = vsel %vm590, %v3261, -inf
    %3270 = vmax.xlane.f32.xlu0 %v3269
    %v3271 = vpop.xlane.xlu0 %3270
    %v3272 = vsel %vm590, %v3266, -inf
    %3273 = vmax.xlane.f32.xlu0 %v3272
    %v3274 = vpop.xlane.xlu0 %3273
    %v3275 = vsub.f32 %v3261, %v3271
    %v3276 = vsub.f32 %v3266, %v3274
    %v3277 = vmul.f32 %v3275, 1.442695
    %v3278 = vpow.pop %v3277
    %v3279 = vmul.f32 %v3276, 1.442695
    %v3280 = vpow.pop %v3279
    %v3281 = vsel %vm590, %v3278, 0.0
    %3282 = vadd.xlane.f32.xlu0 %v3281
    %v3283 = vpop.xlane.xlu0 %3282
    %v3284 = vsel %vm590, %v3280, 0.0
    %3285 = vadd.xlane.f32.xlu0 %v3284
    %v3286 = vpop.xlane.xlu0 %3285
    %v3287 = vrcp.pop %v3283
    %v3288 = vrcp.pop %v3286
    %v3289 = vmul.f32 %v3278, %v3287
    %v3290 = vmul.f32 %v3280, %v3288
    %3291 = vrot.lane.b32.xlu0 %v2323, 40
    %v3292 = vpop.permute.xlu0 %3291
    %3293 = vrot.lane.b32.xlu0 %v2328, 40
    %v3294 = vpop.permute.xlu0 %3293
    %v3298 = vsel %vm590, %v3289, 0
    %v3301 = vsel %vm590, %v3290, 0
    %3303 = vmatprep.subr.mxu0 0.0
    %3304 = vmatpush1.msra.mxu0 %v3292
    %3305 = vmatprep.subr.mxu0 0.0
    %3306 = vmatpush1.msra.mxu0 %v3294
    %3307 = vmatprep.subr.mxu0 0.0
    %3308 = vmatpush1.msra.mxu0 0.0
    %3309 = vmatprep.subr.mxu0 0.0
    %3310 = vmatpush1.msra.mxu0 0.0
    %3311 = vmatprep.subr.mxu0 0.0
    %3312 = vmatpush1.msra.mxu0 0.0
    %3313 = vmatprep.subr.mxu0 0.0
    %3314 = vmatpush1.msra.mxu0 0.0
    %3315 = vmatprep.subr.mxu0 0.0
    %3316 = vmatpush1.msra.mxu0 0.0
    %3317 = vmatprep.subr.mxu0 0.0
    %3318 = vmatpush1.msra.mxu0 0.0
    %3319 = vmatprep.subr.mxu0 0.0
    %3320 = vmatpush1.msra.mxu0 0.0
    %3321 = vmatprep.subr.mxu0 0.0
    %3322 = vmatpush1.msra.mxu0 0.0
    %3323 = vmatprep.subr.mxu0 0.0
    %3324 = vmatpush1.msra.mxu0 0.0
    %3325 = vmatprep.subr.mxu0 0.0
    %3326 = vmatpush1.msra.mxu0 0.0
    %3327 = vmatprep.subr.mxu0 0.0
    %3328 = vmatpush1.msra.mxu0 0.0
    %3329 = vmatprep.subr.mxu0 0.0
    %3330 = vmatpush1.msra.mxu0 0.0
    %3331 = vmatprep.subr.mxu0 0.0
    %3332 = vmatpush1.msra.mxu0 0.0
    %3333 = vmatprep.subr.mxu0 0.0
    %3334 = vmatpush1.msra.mxu0 0.0
    %3335 = vmatprep.subr.mxu0 0.0
    %3336 = vmatpush1.msra.mxu0 0.0
    %3337 = vmatprep.subr.mxu0 0.0
    %3338 = vmatpush1.msra.mxu0 0.0
    %3339 = vmatprep.subr.mxu0 0.0
    %3340 = vmatpush1.msra.mxu0 0.0
    %3341 = vmatprep.subr.mxu0 0.0
    %3342 = vmatpush1.msra.mxu0 0.0
    %3343 = vmatprep.subr.mxu0 0.0
    %3344 = vmatpush1.msra.mxu0 0.0
    %3345 = vmatprep.subr.mxu0 0.0
    %3346 = vmatpush1.msra.mxu0 0.0
    %3347 = vmatprep.subr.mxu0 0.0
    %3348 = vmatpush1.msra.mxu0 0.0
    %3349 = vmatprep.subr.mxu0 0.0
    %3350 = vmatpush1.msra.mxu0 0.0
    %3351 = vmatprep.subr.mxu0 0.0
    %3352 = vmatpush1.msra.mxu0 0.0
    %3353 = vmatprep.subr.mxu0 0.0
    %3354 = vmatpush1.msra.mxu0 0.0
    %3355 = vmatprep.subr.mxu0 0.0
    %3356 = vmatpush1.msra.mxu0 0.0
    %3357 = vmatprep.subr.mxu0 0.0
    %3358 = vmatpush1.msra.mxu0 0.0
    %3359 = vmatprep.subr.mxu0 0.0
    %3360 = vmatpush1.msra.mxu0 0.0
    %3361 = vmatprep.subr.mxu0 0.0
    %3362 = vmatpush1.msra.mxu0 0.0
    %3363 = vmatprep.subr.mxu0 0.0
    %3364 = vmatpush1.msra.mxu0 0.0
    %3365 = vmatprep.subr.mxu0 0.0
    %3366 = vmatpush1.msra.mxu0 0.0
    %3367 = vmatprep.mubr.f32.mxu0 0.0
    %3368 = vmatmul.mubr.f32.gmra.mrb[0].mxu0 %v3298
    %v3369 = vpop.f32.mrb[0].mxu0
    %v3370 = vadd.f32 0.0, %v3369
    %v3371 = vpop.f32.mrb[0].mxu0
    %3372 = vmatprep.mubr.f32.mxu0 0.0
    %3373 = vmatmul.mubr.f32.gmra.mrb[0].mxu0 %v3301
    %v3374 = vpop.f32.mrb[0].mxu0
    %v3375 = vadd.f32 0.0, %v3374
    %v3376 = vpop.f32.mrb[0].mxu0
    %3377 = vdwg.mxu0
    %v3379 = vsel %vm825, %v3370, 0
    %v3382 = vsel %vm825, %v3375, 0
    %3384 = vmatprep.subr.mxu0 0.0
    %3385 = vmatpush1.msra.mxu0 %v2334
    %3386 = vmatprep.subr.mxu0 0.0
    %3387 = vmatpush1.msra.mxu0 0.0
    %3388 = vmatprep.subr.mxu0 0.0
    %3389 = vmatpush1.msra.mxu0 0.0
    %3390 = vmatprep.subr.mxu0 0.0
    %3391 = vmatpush1.msra.mxu0 0.0
    %3392 = vmatprep.subr.mxu0 0.0
    %3393 = vmatpush1.msra.mxu0 0.0
    %3394 = vmatprep.subr.mxu0 0.0
    %3395 = vmatpush1.msra.mxu0 0.0
    %3396 = vmatprep.subr.mxu0 0.0
    %3397 = vmatpush1.msra.mxu0 0.0
    %3398 = vmatprep.subr.mxu0 0.0
    %3399 = vmatpush1.msra.mxu0 0.0
    %3400 = vmatprep.subr.mxu0 0.0
    %3401 = vmatpush1.msra.mxu0 0.0
    %3402 = vmatprep.subr.mxu0 0.0
    %3403 = vmatpush1.msra.mxu0 0.0
    %3404 = vmatprep.subr.mxu0 0.0
    %3405 = vmatpush1.msra.mxu0 0.0
    %3406 = vmatprep.subr.mxu0 0.0
    %3407 = vmatpush1.msra.mxu0 0.0
    %3408 = vmatprep.subr.mxu0 0.0
    %3409 = vmatpush1.msra.mxu0 0.0
    %3410 = vmatprep.subr.mxu0 0.0
    %3411 = vmatpush1.msra.mxu0 0.0
    %3412 = vmatprep.subr.mxu0 0.0
    %3413 = vmatpush1.msra.mxu0 0.0
    %3414 = vmatprep.subr.mxu0 0.0
    %3415 = vmatpush1.msra.mxu0 0.0
    %3416 = vmatprep.subr.mxu0 0.0
    %3417 = vmatpush1.msra.mxu0 0.0
    %3418 = vmatprep.subr.mxu0 0.0
    %3419 = vmatpush1.msra.mxu0 0.0
    %3420 = vmatprep.subr.mxu0 0.0
    %3421 = vmatpush1.msra.mxu0 0.0
    %3422 = vmatprep.subr.mxu0 0.0
    %3423 = vmatpush1.msra.mxu0 0.0
    %3424 = vmatprep.subr.mxu0 0.0
    %3425 = vmatpush1.msra.mxu0 0.0
    %3426 = vmatprep.subr.mxu0 0.0
    %3427 = vmatpush1.msra.mxu0 0.0
    %3428 = vmatprep.subr.mxu0 0.0
    %3429 = vmatpush1.msra.mxu0 0.0
    %3430 = vmatprep.subr.mxu0 0.0
    %3431 = vmatpush1.msra.mxu0 0.0
    %3432 = vmatprep.subr.mxu0 0.0
    %3433 = vmatpush1.msra.mxu0 0.0
    %3434 = vmatprep.subr.mxu0 0.0
    %3435 = vmatpush1.msra.mxu0 0.0
    %3436 = vmatprep.subr.mxu0 0.0
    %3437 = vmatpush1.msra.mxu0 0.0
    %3438 = vmatprep.subr.mxu0 0.0
    %3439 = vmatpush1.msra.mxu0 0.0
    %3440 = vmatprep.subr.mxu0 0.0
    %3441 = vmatpush1.msra.mxu0 0.0
    %3442 = vmatprep.subr.mxu0 0.0
    %3443 = vmatpush1.msra.mxu0 0.0
    %3444 = vmatprep.subr.mxu0 0.0
    %3445 = vmatpush1.msra.mxu0 0.0
    %3446 = vmatprep.subr.mxu0 0.0
    %3447 = vmatpush1.msra.mxu0 0.0
    %3448 = vmatprep.mubr.f32.mxu0 0.0
    %3449 = vmatmul.mubr.f32.gmra.mrb[0].mxu0 %v3379
    %v3450 = vpop.f32.mrb[0].mxu0
    %v3451 = vadd.f32 0.0, %v3450
    %v3452 = vpop.f32.mrb[0].mxu0
    %3453 = vmatprep.mubr.f32.mxu0 0.0
    %3454 = vmatmul.mubr.f32.gmra.mrb[0].mxu0 %v3382
    %v3455 = vpop.f32.mrb[0].mxu0
    %v3456 = vadd.f32 0.0, %v3455
    %v3457 = vpop.f32.mrb[0].mxu0
    %3458 = vdwg.mxu0
    %v3459 = vadd.f32 %v3176, %v3451
    %v3460 = vadd.f32 %v3177, %v3456
    %v3461 = vadd.f32 %v2199, %v3459
    %v3462 = vadd.f32 %v2200, %v3460
    %v3463 = vld [vmem:[#allocation2 + $0x1b0] sm:$0x1]
    %v3464 = vlaneseq
    %v3465 = vshrl.u32 %v3464, 7
    %v3466 = vsub.s32 0, %v3465
    %v3467 = vrot.slane %v3463, %v3466
    %v3468 = vadd.f32 %v3461, %v3467
    %v3469 = vadd.f32 %v3462, %v3467
    %v3470 = vld [vmem:[#allocation2 + $0x1b8] sm:$0x1]
    %v3471 = vld [vmem:[#allocation2 + $0x1c0] sm:$0x1]
    %v3472 = vsel %vm685, %v3468, 0.0
    %3473 = vadd.xlane.f32.xlu0 %v3472
    %v3474 = vpop.xlane.xlu0 %3473
    %v3475 = vsel %vm685, %v3469, 0.0
    %3476 = vadd.xlane.f32.xlu0 %v3475
    %v3477 = vpop.xlane.xlu0 %3476
    %v3478 = vmul.f32 %v3474, %v692
    %v3479 = vmul.f32 %v3477, %v692
    %v3480 = vsub.f32 %v3468, %v3478
    %v3481 = vsub.f32 %v3469, %v3479
    %v3482 = vmul.f32 %v3480, %v3480
    %v3483 = vmul.f32 %v3481, %v3481
    %v3484 = vsel %vm685, %v3482, 0.0
    %3485 = vadd.xlane.f32.xlu0 %v3484
    %v3486 = vpop.xlane.xlu0 %3485
    %v3487 = vsel %vm685, %v3483, 0.0
    %3488 = vadd.xlane.f32.xlu0 %v3487
    %v3489 = vpop.xlane.xlu0 %3488
    %v3490 = vmul.f32 %v3486, %v692
    %v3491 = vmul.f32 %v3489, %v692
    %v3492 = vadd.f32 %v3490, 1e-05
    %v3493 = vadd.f32 %v3491, 1e-05
    %v3494 = vrsqrt.pop %v3492
    %v3495 = vrsqrt.pop %v3493
    %v3496 = vmul.f32 %v3480, %v3494
    %v3497 = vmul.f32 %v3481, %v3495
    %v3498 = vlaneseq
    %v3499 = vshrl.u32 %v3498, 7
    %v3500 = vsub.s32 0, %v3499
    %v3501 = vrot.slane %v3470, %v3500
    %v3502 = vmul.f32 %v3496, %v3501
    %v3503 = vmul.f32 %v3497, %v3501
    %v3504 = vlaneseq
    %v3505 = vshrl.u32 %v3504, 7
    %v3506 = vsub.s32 0, %v3505
    %v3507 = vrot.slane %v3471, %v3506
    %v3508 = vadd.f32 %v3502, %v3507
    %v3509 = vadd.f32 %v3503, %v3507
    %v3510 = vld [vmem:[#allocation2 + $0x1c8] sm:$0xff]
    %v3511 = vld [vmem:[#allocation2 + $0x1d0] sm:$0xff]
    %v3512 = vld [vmem:[#allocation2 + $0x1d8] sm:$0xff]
    %v3513 = vld [vmem:[#allocation2 + $0x1e0] sm:$0xff]
    %v3514 = vld [vmem:[#allocation2 + $0x1e8] sm:$0x1]
    %v3515 = vlaneseq
    %v3516 = vshrl.u32 %v3515, 7
    %v3517 = vsub.s32 0, %v3516
    %v3518 = vrot.slane %v3514, %v3517
    %v3520 = vsel %vm685, %v3508, 0
    %v3523 = vsel %vm685, %v3509, 0
    %3525 = vmatprep.subr.mxu0 0.0
    %3526 = vmatpush1.msra.mxu0 %v3510
    %3527 = vmatprep.subr.mxu0 0.0
    %3528 = vmatpush1.msra.mxu0 %v3511
    %3529 = vmatprep.subr.mxu0 0.0
    %3530 = vmatpush1.msra.mxu0 %v3512
    %3531 = vmatprep.subr.mxu0 0.0
    %3532 = vmatpush1.msra.mxu0 %v3513
    %3533 = vmatprep.subr.mxu0 0.0
    %3534 = vmatpush1.msra.mxu0 0.0
    %3535 = vmatprep.subr.mxu0 0.0
    %3536 = vmatpush1.msra.mxu0 0.0
    %3537 = vmatprep.subr.mxu0 0.0
    %3538 = vmatpush1.msra.mxu0 0.0
    %3539 = vmatprep.subr.mxu0 0.0
    %3540 = vmatpush1.msra.mxu0 0.0
    %3541 = vmatprep.subr.mxu0 0.0
    %3542 = vmatpush1.msra.mxu0 0.0
    %3543 = vmatprep.subr.mxu0 0.0
    %3544 = vmatpush1.msra.mxu0 0.0
    %3545 = vmatprep.subr.mxu0 0.0
    %3546 = vmatpush1.msra.mxu0 0.0
    %3547 = vmatprep.subr.mxu0 0.0
    %3548 = vmatpush1.msra.mxu0 0.0
    %3549 = vmatprep.subr.mxu0 0.0
    %3550 = vmatpush1.msra.mxu0 0.0
    %3551 = vmatprep.subr.mxu0 0.0
    %3552 = vmatpush1.msra.mxu0 0.0
    %3553 = vmatprep.subr.mxu0 0.0
    %3554 = vmatpush1.msra.mxu0 0.0
    %3555 = vmatprep.subr.mxu0 0.0
    %3556 = vmatpush1.msra.mxu0 0.0
    %3557 = vmatprep.subr.mxu0 0.0
    %3558 = vmatpush1.msra.mxu0 0.0
    %3559 = vmatprep.subr.mxu0 0.0
    %3560 = vmatpush1.msra.mxu0 0.0
    %3561 = vmatprep.subr.mxu0 0.0
    %3562 = vmatpush1.msra.mxu0 0.0
    %3563 = vmatprep.subr.mxu0 0.0
    %3564 = vmatpush1.msra.mxu0 0.0
    %3565 = vmatprep.subr.mxu0 0.0
    %3566 = vmatpush1.msra.mxu0 0.0
    %3567 = vmatprep.subr.mxu0 0.0
    %3568 = vmatpush1.msra.mxu0 0.0
    %3569 = vmatprep.subr.mxu0 0.0
    %3570 = vmatpush1.msra.mxu0 0.0
    %3571 = vmatprep.subr.mxu0 0.0
    %3572 = vmatpush1.msra.mxu0 0.0
    %3573 = vmatprep.subr.mxu0 0.0
    %3574 = vmatpush1.msra.mxu0 0.0
    %3575 = vmatprep.subr.mxu0 0.0
    %3576 = vmatpush1.msra.mxu0 0.0
    %3577 = vmatprep.subr.mxu0 0.0
    %3578 = vmatpush1.msra.mxu0 0.0
    %3579 = vmatprep.subr.mxu0 0.0
    %3580 = vmatpush1.msra.mxu0 0.0
    %3581 = vmatprep.subr.mxu0 0.0
    %3582 = vmatpush1.msra.mxu0 0.0
    %3583 = vmatprep.subr.mxu0 0.0
    %3584 = vmatpush1.msra.mxu0 0.0
    %3585 = vmatprep.subr.mxu0 0.0
    %3586 = vmatpush1.msra.mxu0 0.0
    %3587 = vmatprep.subr.mxu0 0.0
    %3588 = vmatpush1.msra.mxu0 0.0
    %3589 = vmatprep.mubr.f32.mxu0 0.0
    %3590 = vmatmul.mubr.f32.gmra.mrb[0].mxu0 %v3520
    %v3591 = vpop.f32.mrb[0].mxu0
    %v3592 = vadd.f32 %v3518, %v3591
    %v3593 = vpop.f32.mrb[0].mxu0
    %3594 = vmatprep.mubr.f32.mxu0 0.0
    %3595 = vmatmul.mubr.f32.gmra.mrb[0].mxu0 %v3523
    %v3596 = vpop.f32.mrb[0].mxu0
    %v3597 = vadd.f32 %v3518, %v3596
    %v3598 = vpop.f32.mrb[0].mxu0
    %3599 = vdwg.mxu0
    %v3600 = vmul.f32 %v3592, %v3592
    %v3601 = vmul.f32 %v3597, %v3597
    %v3602 = vmul.f32 %v3592, %v3600
    %v3603 = vmul.f32 %v3597, %v3601
    %v3604 = vmul.f32 %v3602, 0.044715
    %v3605 = vmul.f32 %v3603, 0.044715
    %v3606 = vadd.f32 %v3592, %v3604
    %v3607 = vadd.f32 %v3597, %v3605
    %v3608 = vmul.f32 %v3606, 0.7978846
    %v3609 = vmul.f32 %v3607, 0.7978846
    %v3610 = vtanh.pop %v3608
    %v3611 = vtanh.pop %v3609
    %v3612 = vadd.f32 %v3610, 1.0
    %v3613 = vadd.f32 %v3611, 1.0
    %v3614 = vmul.f32 %v3612, 0.5
    %v3615 = vmul.f32 %v3613, 0.5
    %v3616 = vmul.f32 %v3592, %v3614
    %v3617 = vmul.f32 %v3597, %v3615
    %v3618 = vld [vmem:[#allocation2 + $0x1f0] sm:$0xff]
    %v3619 = vld [vmem:[#allocation2 + $0x1f8] sm:$0xff]
    %v3620 = vld [vmem:[#allocation2 + $0x200] sm:$0xff]
    %v3621 = vld [vmem:[#allocation2 + $0x208] sm:$0xff]
    %v3622 = vld [vmem:[#allocation2 + $0x210] sm:$0xff]
    %v3623 = vld [vmem:[#allocation2 + $0x218] sm:$0xff]
    %v3624 = vld [vmem:[#allocation2 + $0x220] sm:$0xff]
    %v3625 = vld [vmem:[#allocation2 + $0x228] sm:$0xff]
    %v3627 = vsel %vm289, %v3616, 0
    %v3630 = vsel %vm289, %v3617, 0
    %3632 = vmatprep.subr.mxu0 0.0
    %3633 = vmatpush1.msra.mxu0 %v3618
    %3634 = vmatprep.subr.mxu0 0.0
    %3635 = vmatpush1.msra.mxu0 %v3619
    %3636 = vmatprep.subr.mxu0 0.0
    %3637 = vmatpush1.msra.mxu0 %v3620
    %3638 = vmatprep.subr.mxu0 0.0
    %3639 = vmatpush1.msra.mxu0 %v3621
    %3640 = vmatprep.subr.mxu0 0.0
    %3641 = vmatpush1.msra.mxu0 %v3622
    %3642 = vmatprep.subr.mxu0 0.0
    %3643 = vmatpush1.msra.mxu0 %v3623
    %3644 = vmatprep.subr.mxu0 0.0
    %3645 = vmatpush1.msra.mxu0 %v3624
    %3646 = vmatprep.subr.mxu0 0.0
    %3647 = vmatpush1.msra.mxu0 %v3625
    %3648 = vmatprep.subr.mxu0 0.0
    %3649 = vmatpush1.msra.mxu0 0.0
    %3650 = vmatprep.subr.mxu0 0.0
    %3651 = vmatpush1.msra.mxu0 0.0
    %3652 = vmatprep.subr.mxu0 0.0
    %3653 = vmatpush1.msra.mxu0 0.0
    %3654 = vmatprep.subr.mxu0 0.0
    %3655 = vmatpush1.msra.mxu0 0.0
    %3656 = vmatprep.subr.mxu0 0.0
    %3657 = vmatpush1.msra.mxu0 0.0
    %3658 = vmatprep.subr.mxu0 0.0
    %3659 = vmatpush1.msra.mxu0 0.0
    %3660 = vmatprep.subr.mxu0 0.0
    %3661 = vmatpush1.msra.mxu0 0.0
    %3662 = vmatprep.subr.mxu0 0.0
    %3663 = vmatpush1.msra.mxu0 0.0
    %3664 = vmatprep.subr.mxu0 0.0
    %3665 = vmatpush1.msra.mxu0 0.0
    %3666 = vmatprep.subr.mxu0 0.0
    %3667 = vmatpush1.msra.mxu0 0.0
    %3668 = vmatprep.subr.mxu0 0.0
    %3669 = vmatpush1.msra.mxu0 0.0
    %3670 = vmatprep.subr.mxu0 0.0
    %3671 = vmatpush1.msra.mxu0 0.0
    %3672 = vmatprep.subr.mxu0 0.0
    %3673 = vmatpush1.msra.mxu0 0.0
    %3674 = vmatprep.subr.mxu0 0.0
    %3675 = vmatpush1.msra.mxu0 0.0
    %3676 = vmatprep.subr.mxu0 0.0
    %3677 = vmatpush1.msra.mxu0 0.0
    %3678 = vmatprep.subr.mxu0 0.0
    %3679 = vmatpush1.msra.mxu0 0.0
    %3680 = vmatprep.subr.mxu0 0.0
    %3681 = vmatpush1.msra.mxu0 0.0
    %3682 = vmatprep.subr.mxu0 0.0
    %3683 = vmatpush1.msra.mxu0 0.0
    %3684 = vmatprep.subr.mxu0 0.0
    %3685 = vmatpush1.msra.mxu0 0.0
    %3686 = vmatprep.subr.mxu0 0.0
    %3687 = vmatpush1.msra.mxu0 0.0
    %3688 = vmatprep.subr.mxu0 0.0
    %3689 = vmatpush1.msra.mxu0 0.0
    %3690 = vmatprep.subr.mxu0 0.0
    %3691 = vmatpush1.msra.mxu0 0.0
    %3692 = vmatprep.subr.mxu0 0.0
    %3693 = vmatpush1.msra.mxu0 0.0
    %3694 = vmatprep.subr.mxu0 0.0
    %3695 = vmatpush1.msra.mxu0 0.0
    %3696 = vmatprep.mubr.f32.mxu0 0.0
    %3697 = vmatmul.mubr.f32.gmra.mrb[0].mxu0 %v3627
    %v3698 = vpop.f32.mrb[0].mxu0
    %v3699 = vadd.f32 0.0, %v3698
    %v3700 = vpop.f32.mrb[0].mxu0
    %3701 = vmatprep.mubr.f32.mxu0 0.0
    %3702 = vmatmul.mubr.f32.gmra.mrb[0].mxu0 %v3630
    %v3703 = vpop.f32.mrb[0].mxu0
    %v3704 = vadd.f32 0.0, %v3703
    %v3705 = vpop.f32.mrb[0].mxu0
    %3706 = vdwg.mxu0
    %v3707 = vadd.f32 %v3468, %v3699
    %v3708 = vadd.f32 %v3469, %v3704
    %v3709 = vld [vmem:[#allocation2 + $0x230] sm:$0x1]
    %v3710 = vlaneseq
    %v3711 = vshrl.u32 %v3710, 7
    %v3712 = vsub.s32 0, %v3711
    %v3713 = vrot.slane %v3709, %v3712
    %v3714 = vadd.f32 %v3707, %v3713
    %v3715 = vadd.f32 %v3708, %v3713
    %v3716 = vld [vmem:[#allocation2 + $0x238] sm:$0x1]
    %v3717 = vld [vmem:[#allocation2 + $0x240] sm:$0x1]
    %v3718 = vsel %vm685, %v3714, 0.0
    %3719 = vadd.xlane.f32.xlu0 %v3718
    %v3720 = vpop.xlane.xlu0 %3719
    %v3721 = vsel %vm685, %v3715, 0.0
    %3722 = vadd.xlane.f32.xlu0 %v3721
    %v3723 = vpop.xlane.xlu0 %3722
    %v3724 = vmul.f32 %v3720, %v692
    %v3725 = vmul.f32 %v3723, %v692
    %v3726 = vsub.f32 %v3714, %v3724
    %v3727 = vsub.f32 %v3715, %v3725
    %v3728 = vmul.f32 %v3726, %v3726
    %v3729 = vmul.f32 %v3727, %v3727
    %v3730 = vsel %vm685, %v3728, 0.0
    %3731 = vadd.xlane.f32.xlu0 %v3730
    %v3732 = vpop.xlane.xlu0 %3731
    %v3733 = vsel %vm685, %v3729, 0.0
    %3734 = vadd.xlane.f32.xlu0 %v3733
    %v3735 = vpop.xlane.xlu0 %3734
    %v3736 = vmul.f32 %v3732, %v692
    %v3737 = vmul.f32 %v3735, %v692
    %v3738 = vadd.f32 %v3736, 1e-05
    %v3739 = vadd.f32 %v3737, 1e-05
    %v3740 = vrsqrt.pop %v3738
    %v3741 = vrsqrt.pop %v3739
    %v3742 = vmul.f32 %v3726, %v3740
    %v3743 = vmul.f32 %v3727, %v3741
    %v3744 = vlaneseq
    %v3745 = vshrl.u32 %v3744, 7
    %v3746 = vsub.s32 0, %v3745
    %v3747 = vrot.slane %v3716, %v3746
    %v3748 = vmul.f32 %v3742, %v3747
    %v3749 = vmul.f32 %v3743, %v3747
    %v3750 = vlaneseq
    %v3751 = vshrl.u32 %v3750, 7
    %v3752 = vsub.s32 0, %v3751
    %v3753 = vrot.slane %v3717, %v3752
    %v3754 = vadd.f32 %v3748, %v3753
    %v3755 = vadd.f32 %v3749, %v3753
    %v3756 = vld [vmem:[#allocation2 + $0x248] sm:$0xff]
    %v3757 = vld [vmem:[#allocation2 + $0x250] sm:$0xff]
    %v3758 = vld [vmem:[#allocation2 + $0x258] sm:$0xff]
    %v3759 = vld [vmem:[#allocation2 + $0x260] sm:$0xff]
    %v3760 = vld [vmem:[#allocation2 + $0x268] sm:$0x1]
    %v3761 = vlaneseq
    %v3762 = vshrl.u32 %v3761, 7
    %v3763 = vsub.s32 0, %v3762
    %v3764 = vrot.slane %v3760, %v3763
    %v3766 = vsel %vm685, %v3754, 0
    %v3769 = vsel %vm685, %v3755, 0
    %3771 = vmatprep.subr.mxu0 0.0
    %3772 = vmatpush1.msra.mxu0 %v3756
    %3773 = vmatprep.subr.mxu0 0.0
    %3774 = vmatpush1.msra.mxu0 %v3757
    %3775 = vmatprep.subr.mxu0 0.0
    %3776 = vmatpush1.msra.mxu0 %v3758
    %3777 = vmatprep.subr.mxu0 0.0
    %3778 = vmatpush1.msra.mxu0 %v3759
    %3779 = vmatprep.subr.mxu0 0.0
    %3780 = vmatpush1.msra.mxu0 0.0
    %3781 = vmatprep.subr.mxu0 0.0
    %3782 = vmatpush1.msra.mxu0 0.0
    %3783 = vmatprep.subr.mxu0 0.0
    %3784 = vmatpush1.msra.mxu0 0.0
    %3785 = vmatprep.subr.mxu0 0.0
    %3786 = vmatpush1.msra.mxu0 0.0
    %3787 = vmatprep.subr.mxu0 0.0
    %3788 = vmatpush1.msra.mxu0 0.0
    %3789 = vmatprep.subr.mxu0 0.0
    %3790 = vmatpush1.msra.mxu0 0.0
    %3791 = vmatprep.subr.mxu0 0.0
    %3792 = vmatpush1.msra.mxu0 0.0
    %3793 = vmatprep.subr.mxu0 0.0
    %3794 = vmatpush1.msra.mxu0 0.0
    %3795 = vmatprep.subr.mxu0 0.0
    %3796 = vmatpush1.msra.mxu0 0.0
    %3797 = vmatprep.subr.mxu0 0.0
    %3798 = vmatpush1.msra.mxu0 0.0
    %3799 = vmatprep.subr.mxu0 0.0
    %3800 = vmatpush1.msra.mxu0 0.0
    %3801 = vmatprep.subr.mxu0 0.0
    %3802 = vmatpush1.msra.mxu0 0.0
    %3803 = vmatprep.subr.mxu0 0.0
    %3804 = vmatpush1.msra.mxu0 0.0
    %3805 = vmatprep.subr.mxu0 0.0
    %3806 = vmatpush1.msra.mxu0 0.0
    %3807 = vmatprep.subr.mxu0 0.0
    %3808 = vmatpush1.msra.mxu0 0.0
    %3809 = vmatprep.subr.mxu0 0.0
    %3810 = vmatpush1.msra.mxu0 0.0
    %3811 = vmatprep.subr.mxu0 0.0
    %3812 = vmatpush1.msra.mxu0 0.0
    %3813 = vmatprep.subr.mxu0 0.0
    %3814 = vmatpush1.msra.mxu0 0.0
    %3815 = vmatprep.subr.mxu0 0.0
    %3816 = vmatpush1.msra.mxu0 0.0
    %3817 = vmatprep.subr.mxu0 0.0
    %3818 = vmatpush1.msra.mxu0 0.0
    %3819 = vmatprep.subr.mxu0 0.0
    %3820 = vmatpush1.msra.mxu0 0.0
    %3821 = vmatprep.subr.mxu0 0.0
    %3822 = vmatpush1.msra.mxu0 0.0
    %3823 = vmatprep.subr.mxu0 0.0
    %3824 = vmatpush1.msra.mxu0 0.0
    %3825 = vmatprep.subr.mxu0 0.0
    %3826 = vmatpush1.msra.mxu0 0.0
    %3827 = vmatprep.subr.mxu0 0.0
    %3828 = vmatpush1.msra.mxu0 0.0
    %3829 = vmatprep.subr.mxu0 0.0
    %3830 = vmatpush1.msra.mxu0 0.0
    %3831 = vmatprep.subr.mxu0 0.0
    %3832 = vmatpush1.msra.mxu0 0.0
    %3833 = vmatprep.subr.mxu0 0.0
    %3834 = vmatpush1.msra.mxu0 0.0
    %3835 = vmatprep.mubr.f32.mxu0 0.0
    %3836 = vmatmul.mubr.f32.gmra.mrb[0].mxu0 %v3766
    %v3837 = vpop.f32.mrb[0].mxu0
    %v3838 = vadd.f32 %v3764, %v3837
    %v3839 = vpop.f32.mrb[0].mxu0
    %3840 = vmatprep.mubr.f32.mxu0 0.0
    %3841 = vmatmul.mubr.f32.gmra.mrb[0].mxu0 %v3769
    %v3842 = vpop.f32.mrb[0].mxu0
    %v3843 = vadd.f32 %v3764, %v3842
    %v3844 = vpop.f32.mrb[0].mxu0
    %3845 = vdwg.mxu0
    %3846 = vst [vmem:[%s4] sm:$0xff] %v3838
    %3847 = vst [vmem:[%s4 + $0x8] sm:$0xff] %v3843
    // Predicated region
    $region22: #{fwd.1} parent=1 // pred_check
      _
    $region23: #{fwd.1} parent=1 // pred_check_branch
      %3849 = sbr.rel (0) target = $region25
    $region24: #{fwd.1} parent=1 // pred_region
      _
    $region25: #{fwd.1} parent=1 // pred_fallthru
      _
    // Predicated region
    $region26: #{fwd.1} parent=1 // pred_check
      _
    $region27: #{fwd.1} parent=1 // pred_check_branch
      %3851 = sbr.rel (0) target = $region29
    $region28: #{fwd.1} parent=1 // pred_region
      _
    $region29: #{fwd.1} parent=1 // pred_fallthru
      _
    %3852 = vsyncpa [#allocation3], 1

</llo_original>
